<compile_context>
chip_gen: v7x
topology: tpu7x:2x2x1
jax: 0.10.0
libtpu: 0.0.40
codegen_flags: <defaults>
</compile_context>

<pallas_src>
import numpy as np
import jax
import jax.numpy as jnp
from jax.experimental import pallas as pl
from jax.experimental.pallas import tpu as pltpu

_inner_mlp_mult = 2
_BN_EPS = 1e-5


def _dot(a, b):
    return jnp.dot(a, b, preferred_element_type=jnp.float32)


# --------------------------- fused forward kernel ---------------------------

def _make_kernel(layout, slab_names, num_layers):
    """Build the single fused kernel.

    layout: name -> (slab_key, row_start, n_rows)   (static Python data)
    Kernel refs: [slab_0, ..., slab_{S-1}, node0, edge0, out]
    """
    n_slabs = len(slab_names)

    def kernel(*refs):
        out_ref = refs[-1]
        slabs = dict(zip(slab_names, refs[:n_slabs]))
        node0 = refs[n_slabs][...]          # [Nn, E]
        edge0 = refs[n_slabs + 1][...]      # [2*Ne, E]

        def ld(name):
            key, start, rows = layout[name]
            return slabs[key][start:start + rows, :]

        def relu(x):
            return jnp.maximum(x, 0.0)

        def cat(*xs):
            return jnp.concatenate(xs, axis=-1)

        def bn_relu(y):
            # BatchNorm1d, training-mode batch stats, gamma=1, beta=0.
            mean = jnp.mean(y, axis=0, keepdims=True)
            d = y - mean
            var = jnp.mean(d * d, axis=0, keepdims=True)
            return relu(d * jax.lax.rsqrt(var + _BN_EPS))

        def linear(x, w, b=None):
            y = _dot(x, ld(w))
            return y if b is None else y + ld(b)

        def mlp2_bn(x, w1, w2):
            # Linear(no bias)+BN+ReLU -> Linear(no bias)+BN+ReLU, one matmul each.
            return bn_relu(_dot(bn_relu(_dot(x, ld(w1))), ld(w2)))

        # -------- structural matrices (loaded once, resident in VMEM) -------
        n2e01, de2e01 = ld('n2e01'), ld('de2e01')
        SS_ee, SL_ee = ld('SS_ee'), ld('SL_ee')
        LS_ee, LL_ee = ld('LS_ee'), ld('LL_ee')
        Sn2e, Ln2e = ld('Sn2e'), ld('Ln2e')
        Cn2c_S, Cn2c_L = ld('Cn2c_S'), ld('Cn2c_L')
        E2C_SS, E2C_SL = ld('E2C_SS'), ld('E2C_SL')
        E2C_LS, E2C_LL = ld('E2C_LS'), ld('E2C_LL')
        S_c2e, L_c2e = ld('S_c2e'), ld('L_c2e')
        e2n10, c2n, pool = ld('e2n10'), ld('c2n'), ld('pool')

        # ---------------------- initial representations ---------------------
        edge_rep = relu(linear(cat(_dot(n2e01, node0), _dot(de2e01, edge0)),
                               'edge_mlp1_w', 'edge_mlp1_b'))
        edge_rep = relu(linear(edge_rep, 'edge_mlp2_w', 'edge_mlp2_b'))

        cycle_rep = relu(linear(cat(_dot(Cn2c_S, node0), _dot(Cn2c_L, node0)),
                                'cycle_mlp1_w', 'cycle_mlp1_b'))
        cycle_rep = relu(linear(cycle_rep, 'cycle_mlp2_w', 'cycle_mlp2_b'))

        node_rep = relu(linear(node0, 'node_mlp1_w', 'node_mlp1_b'))
        node_rep = relu(linear(node_rep, 'node_mlp2_w', 'node_mlp2_b'))

        # --------------------------- conv layers ----------------------------
        for l in range(num_layers):
            wn = lambda s, l=l: f'conv{l}_{s}'                    # noqa: E731

            # --- Edge_node ---
            # channel order: [SS@e | SL@e | LS@e | LL@e | S@n2e | L@n2e]
            e_ctx = cat(_dot(SS_ee, edge_rep), _dot(SL_ee, edge_rep),
                        _dot(LS_ee, edge_rep), _dot(LL_ee, edge_rep),
                        _dot(Sn2e, node_rep), _dot(Ln2e, node_rep))   # [Re,6H]
            edge_out = mlp2_bn(cat(edge_rep, e_ctx),                  # 7H -> H
                               wn('en_edge_w1'), wn('en_edge_w2'))
            node_out = mlp2_bn(cat(node_rep, _dot(e2n10, e_ctx)),     # 7H -> H
                               wn('en_node_w1'), wn('en_node_w2'))

            # --- Edge_Cycle (joint 5-/6-cycle row block) ---
            cycle_new = cat(_dot(E2C_SS, edge_rep), _dot(E2C_SL, edge_rep),
                            _dot(E2C_LS, edge_rep), _dot(E2C_LL, edge_rep),
                            cycle_rep)                                # [Rc,5H]
            c2e = cat(_dot(S_c2e, cycle_new), _dot(L_c2e, cycle_new)) # [Re,10H]
            edge_out2 = mlp2_bn(cat(edge_rep, c2e),                   # 11H -> H
                                wn('ec_edge_w1'), wn('ec_edge_w2'))
            cycle_out = mlp2_bn(cycle_new,                            # 5H -> H
                                wn('ec_cycle_w1'), wn('ec_cycle_w2'))

            # --- ConvLayer head + residuals ---
            edge_mix = bn_relu(_dot(cat(edge_out, edge_out2), ld(wn('mlp_w'))))
            node_rep = node_rep + node_out
            edge_rep = edge_rep + edge_mix
            cycle_rep = cycle_rep + cycle_out
            # TODO(synk): Dropout layers are identity here (dropout_rate = 0.0).

        # ----------------------------- readout ------------------------------
        reps = _dot(pool, cat(node_rep,
                              _dot(e2n10, edge_rep),
                              _dot(c2n, cycle_rep)))                  # [G, 3H]
        reps = bn_relu(linear(reps, 'final1_w', 'final1_b'))
        reps = bn_relu(linear(reps, 'final2_w', 'final2_b'))
        out_ref[...] = linear(reps, 'lin_w', 'lin_b')                 # [G, 1]

    return kernel


def make_forward(layout, slab_names, num_layers, num_graphs):
    kernel = _make_kernel(layout, slab_names, num_layers)

    @jax.jit
    def forward(slabs, node_table, edge_table, x_ids, e_ids):
        # Embedding lookups are tiny gathers; keep them in XLA.
        node0 = jnp.take(node_table, x_ids, axis=0)   # [Nn, E]
        edge0 = jnp.take(edge_table, e_ids, axis=0)   # [2*Ne, E]
        vals = [slabs[n] for n in slab_names] + [node0, edge0]
        out = pl.pallas_call(
            kernel,
            out_shape=jax.ShapeDtypeStruct((num_graphs, 1), jnp.float32),
            in_specs=[pl.BlockSpec(memory_space=pltpu.MemorySpace.VMEM)] * len(vals),
            out_specs=pl.BlockSpec(memory_space=pltpu.MemorySpace.VMEM),
        )(*vals)
        return out.reshape(-1)

    return forward


# ------------------------------ host-side packing ----------------------------

def pack_inputs(params, M):
    """Pack all static tensors (weights, biases, structural matrices) into a
    few row-stacked slabs grouped by column width. Each entry is zero-padded
    to an 8-row boundary so in-kernel slices are sublane-tile aligned.

    Returns (slabs: dict[str, jnp.ndarray], layout: name -> (slab, start, rows)).
    """
    entries = []
    for k in sorted(M):
        entries.append((k, np.asarray(M[k], np.float32)))
    for k in sorted(params):
        if k in ('node_table', 'edge_table'):
            continue
        a = np.asarray(params[k], np.float32)
        if a.ndim == 1:
            a = a[None, :]
        entries.append((k, a))

    groups = {}
    for name, arr in entries:
        groups.setdefault(int(arr.shape[1]), []).append((name, arr))

    slabs, layout = {}, {}
    for width in sorted(groups):
        key = f'slab_w{width}'
        blocks, off = [], 0
        for name, arr in groups[width]:
            r = arr.shape[0]
            pad = (-r) % 8
            blocks.append(np.pad(arr, ((0, pad), (0, 0))))
            layout[name] = (key, off, r)
            off += r + pad
        slabs[key] = jnp.asarray(np.concatenate(blocks, axis=0))
    return slabs, layout


# -------------------------- synthetic graph setup ---------------------------

def _g0to1(src_domains, tgt_rows):
    M = np.zeros((len(tgt_rows), len(src_domains)), np.float32)
    for r, (A, a) in enumerate(tgt_rows):
        for s, D in enumerate(src_domains):
            if a in D and (D & A):
                M[r, s] = 1.0
    return M


def _g1to1(src_rows, tgt_rows):
    S = np.zeros((len(tgt_rows), len(src_rows)), np.float32)
    L = np.zeros_like(S)
    for r, (A, a) in enumerate(tgt_rows):
        for s, (D, b) in enumerate(src_rows):
            inter = D & A
            if a in inter:
                if b in inter:
                    S[r, s] = 1.0
                if b == a:
                    L[r, s] = 1.0
    return S, L


def _g1to0(src_rows, n_nodes):
    M = np.zeros((n_nodes, len(src_rows)), np.float32)
    for s, (D, b) in enumerate(src_rows):
        M[b, s] = 1.0
    return M


def build_graph(num_graphs=2):
    """Two copies of a molecule-like graph: a 6-cycle with a chord (making a
    5-cycle) plus two pendant atoms. All nested ptens gathers are pre-composed
    here into single 0/1 matrices; 5-/6-cycle rows are stacked into one joint
    row block (matching the PyTorch row concatenation)."""
    N = 8
    und_edges = [(0, 1), (1, 2), (2, 3), (3, 4), (4, 5), (5, 0), (1, 5), (0, 6), (3, 7)]
    cyc5 = [(1, 2, 3, 4, 5)]
    cyc6 = [(0, 1, 2, 3, 4, 5)]
    node_domains, dedge_domains = [], []
    edge_rows, c5_rows, c6_rows = [], [], []
    x_ids, e_ids, batch = [], [], []
    for g in range(num_graphs):
        off = g * N
        for v in range(N):
            node_domains.append(frozenset([v + off]))
            x_ids.append((v + 3 * g) % 22)
            batch.append(g)
        for i, (u, v) in enumerate(und_edges):
            A = frozenset([u + off, v + off])
            dedge_domains.append(A); e_ids.append((2 * i + g) % 4)
            dedge_domains.append(A); e_ids.append((2 * i + 1 + g) % 4)
            edge_rows.append((A, u + off))
            edge_rows.append((A, v + off))
        for cyc in cyc5:
            A = frozenset(a + off for a in cyc)
            for a in cyc:
                c5_rows.append((A, a + off))
        for cyc in cyc6:
            A = frozenset(a + off for a in cyc)
            for a in cyc:
                c6_rows.append((A, a + off))
    Nn = N * num_graphs
    cyc_rows = c5_rows + c6_rows

    # elementary gather matrices
    n2e01 = _g0to1(node_domains, edge_rows)
    de2e01 = _g0to1(dedge_domains, edge_rows)
    S_ee, L_ee = _g1to1(edge_rows, edge_rows)
    S_c5, L_c5 = _g1to1(c5_rows, c5_rows)
    S_c6, L_c6 = _g1to1(c6_rows, c6_rows)
    S_e2c5, L_e2c5 = _g1to1(edge_rows, c5_rows)
    S_e2c6, L_e2c6 = _g1to1(edge_rows, c6_rows)
    n2c5_01 = _g0to1(node_domains, c5_rows)
    n2c6_01 = _g0to1(node_domains, c6_rows)
    S_c2e, L_c2e = _g1to1(cyc_rows, edge_rows)

    def vcat(a, b):
        return np.concatenate([a, b], axis=0)

    M = {
        'n2e01': n2e01,
        'de2e01': de2e01,
        # pre-composed nested edge->edge gathers: gather(gather(x,edge),edge)
        'SS_ee': S_ee @ S_ee, 'SL_ee': S_ee @ L_ee,
        'LS_ee': L_ee @ S_ee, 'LL_ee': L_ee @ L_ee,
        # pre-composed node(0)->edge(1)->edge(1)
        'Sn2e': S_ee @ n2e01, 'Ln2e': L_ee @ n2e01,
        # joint (5-cycle rows over 6-cycle rows) node(0)->cycle(1)->cycle(1)
        'Cn2c_S': vcat(S_c5 @ n2c5_01, S_c6 @ n2c6_01),
        'Cn2c_L': vcat(L_c5 @ n2c5_01, L_c6 @ n2c6_01),
        # joint pre-composed edge(1)->cycle(1)->cycle(1)
        'E2C_SS': vcat(S_c5 @ S_e2c5, S_c6 @ S_e2c6),
        'E2C_SL': vcat(S_c5 @ L_e2c5, S_c6 @ L_e2c6),
        'E2C_LS': vcat(L_c5 @ S_e2c5, L_c6 @ S_e2c6),
        'E2C_LL': vcat(L_c5 @ L_e2c5, L_c6 @ L_e2c6),
        # joint cycle(1)->edge(1) and 1->0 gathers
        'S_c2e': S_c2e, 'L_c2e': L_c2e,
        'e2n10': _g1to0(edge_rows, Nn),
        'c2n': _g1to0(cyc_rows, Nn),
    }
    pool = np.zeros((num_graphs, Nn), np.float32)
    for v, g in enumerate(batch):
        pool[g, v] = 1.0
    M['pool'] = pool
    # TODO(synk): structural matrices could be stored bf16 (exact for 0/1) once
    # batch sizes make DMA bytes matter; kept f32 here to avoid in-kernel casts.
    M = {k: np.ascontiguousarray(v, np.float32) for k, v in M.items()}
    return M, np.asarray(x_ids, np.int32), np.asarray(e_ids, np.int32), num_graphs


# ------------------------------- parameters ---------------------------------

def init_params(key, E, H, D, num_layers):
    ks = iter(jax.random.split(key, 24 + 9 * num_layers))

    def lin(fan_in, fan_out):
        bound = 1.0 / np.sqrt(fan_in)
        w = jax.random.uniform(next(ks), (fan_in, fan_out), jnp.float32, -bound, bound)
        b = jax.random.uniform(next(ks), (1, fan_out), jnp.float32, -bound, bound)
        return w, b

    def lin_nob(fan_in, fan_out):
        bound = 1.0 / np.sqrt(fan_in)
        return jax.random.uniform(next(ks), (fan_in, fan_out), jnp.float32, -bound, bound)

    P = {
        'node_table': jax.random.normal(next(ks), (22, E), jnp.float32),
        'edge_table': jax.random.normal(next(ks), (4, E), jnp.float32),
    }
    for name, fi, fo in [('node_mlp1', E, H * _inner_mlp_mult),
                         ('node_mlp2', H * _inner_mlp_mult, H),
                         ('edge_mlp1', 2 * E, H * _inner_mlp_mult),
                         ('edge_mlp2', H * _inner_mlp_mult, H),
                         ('cycle_mlp1', 2 * E, H * _inner_mlp_mult),
                         ('cycle_mlp2', H * _inner_mlp_mult, H),
                         ('final1', 3 * H, D),
                         ('final2', D, D),
                         ('lin', D, 1)]:
        w, b = lin(fi, fo)
        P[name + '_w'] = w
        P[name + '_b'] = b
    for l in range(num_layers):
        P[f'conv{l}_en_node_w1'] = lin_nob(7 * H, 2 * H)
        P[f'conv{l}_en_node_w2'] = lin_nob(2 * H, H)
        P[f'conv{l}_en_edge_w1'] = lin_nob(7 * H, 2 * H)
        P[f'conv{l}_en_edge_w2'] = lin_nob(2 * H, H)
        P[f'conv{l}_ec_edge_w1'] = lin_nob(11 * H, 2 * H)
        P[f'conv{l}_ec_edge_w2'] = lin_nob(2 * H, H)
        P[f'conv{l}_ec_cycle_w1'] = lin_nob(5 * H, 2 * H)
        P[f'conv{l}_ec_cycle_w2'] = lin_nob(2 * H, H)
        P[f'conv{l}_mlp_w'] = lin_nob(2 * H, H)
    return P


# ---------------------------------- main -------------------------------------

if __name__ == "__main__":
    embedding_dim, hidden_dim, dense_dim, num_layers = 16, 16, 32, 1

    key = jax.random.PRNGKey(0)
    params = init_params(key, embedding_dim, hidden_dim, dense_dim, num_layers)
    M, x_ids, e_ids, num_graphs = build_graph(num_graphs=2)

    slabs, layout = pack_inputs(params, M)
    slab_names = tuple(sorted(slabs))

    fwd = make_forward(layout, slab_names, num_layers, num_graphs)
    out = fwd(slabs, params['node_table'], params['edge_table'],
              jnp.asarray(x_ids), jnp.asarray(e_ids))
    out = jax.block_until_ready(out)
    assert out.shape == (num_graphs,) and bool(jnp.all(jnp.isfinite(out)))
    print("KERNEL_OK")
</pallas_src>

<mosaic_0001>
module attributes {stable_mosaic.version = 11 : i64} {
  func.func @kernel(%arg0: memref<40x1xf32, #tpu.memory_space<vmem>>, %arg1: memref<456x16xf32, #tpu.memory_space<vmem>>, %arg2: memref<96x22xf32, #tpu.memory_space<vmem>>, %arg3: memref<680x32xf32, #tpu.memory_space<vmem>>, %arg4: memref<312x36xf32, #tpu.memory_space<vmem>>, %arg5: memref<16x16xf32, #tpu.memory_space<vmem>>, %arg6: memref<36x16xf32, #tpu.memory_space<vmem>>, %arg7: memref<2x1xf32, #tpu.memory_space<vmem>>) attributes {dimension_semantics = [], scalar_prefetch = 0 : i64, scratch_operands = 0 : i64, tpu.core_type = #tpu.core_type<tc>} {
    %c0 = arith.constant 0 : index
    %c0_0 = arith.constant 0 : index
    %0 = vector.load %arg5[%c0, %c0_0] : memref<16x16xf32, #tpu.memory_space<vmem>>, vector<16x16xf32>
    %c0_1 = arith.constant 0 : index
    %c0_2 = arith.constant 0 : index
    %1 = vector.load %arg6[%c0_1, %c0_2] : memref<36x16xf32, #tpu.memory_space<vmem>>, vector<36x16xf32>
    %c128 = arith.constant 128 : index
    %c0_3 = arith.constant 0 : index
    %2 = vector.load %arg1[%c128, %c0_3] : memref<456x16xf32, #tpu.memory_space<vmem>>, vector<36x16xf32>
    %c256 = arith.constant 256 : index
    %c0_4 = arith.constant 0 : index
    %3 = vector.load %arg4[%c256, %c0_4] : memref<312x36xf32, #tpu.memory_space<vmem>>, vector<36x36xf32>
    %c216 = arith.constant 216 : index
    %c0_5 = arith.constant 0 : index
    %4 = vector.load %arg4[%c216, %c0_5] : memref<312x36xf32, #tpu.memory_space<vmem>>, vector<36x36xf32>
    %c176 = arith.constant 176 : index
    %c0_6 = arith.constant 0 : index
    %5 = vector.load %arg4[%c176, %c0_6] : memref<312x36xf32, #tpu.memory_space<vmem>>, vector<36x36xf32>
    %c136 = arith.constant 136 : index
    %c0_7 = arith.constant 0 : index
    %6 = vector.load %arg4[%c136, %c0_7] : memref<312x36xf32, #tpu.memory_space<vmem>>, vector<36x36xf32>
    %c96 = arith.constant 96 : index
    %c0_8 = arith.constant 0 : index
    %7 = vector.load %arg4[%c96, %c0_8] : memref<312x36xf32, #tpu.memory_space<vmem>>, vector<36x36xf32>
    %c88 = arith.constant 88 : index
    %c0_9 = arith.constant 0 : index
    %8 = vector.load %arg1[%c88, %c0_9] : memref<456x16xf32, #tpu.memory_space<vmem>>, vector<36x16xf32>
    %c48 = arith.constant 48 : index
    %c0_10 = arith.constant 0 : index
    %9 = vector.load %arg1[%c48, %c0_10] : memref<456x16xf32, #tpu.memory_space<vmem>>, vector<36x16xf32>
    %c24 = arith.constant 24 : index
    %c0_11 = arith.constant 0 : index
    %10 = vector.load %arg1[%c24, %c0_11] : memref<456x16xf32, #tpu.memory_space<vmem>>, vector<22x16xf32>
    %c0_12 = arith.constant 0 : index
    %c0_13 = arith.constant 0 : index
    %11 = vector.load %arg1[%c0_12, %c0_13] : memref<456x16xf32, #tpu.memory_space<vmem>>, vector<22x16xf32>
    %c72 = arith.constant 72 : index
    %c0_14 = arith.constant 0 : index
    %12 = vector.load %arg4[%c72, %c0_14] : memref<312x36xf32, #tpu.memory_space<vmem>>, vector<22x36xf32>
    %c48_15 = arith.constant 48 : index
    %c0_16 = arith.constant 0 : index
    %13 = vector.load %arg4[%c48_15, %c0_16] : memref<312x36xf32, #tpu.memory_space<vmem>>, vector<22x36xf32>
    %c24_17 = arith.constant 24 : index
    %c0_18 = arith.constant 0 : index
    %14 = vector.load %arg4[%c24_17, %c0_18] : memref<312x36xf32, #tpu.memory_space<vmem>>, vector<22x36xf32>
    %c0_19 = arith.constant 0 : index
    %c0_20 = arith.constant 0 : index
    %15 = vector.load %arg4[%c0_19, %c0_20] : memref<312x36xf32, #tpu.memory_space<vmem>>, vector<22x36xf32>
    %c40 = arith.constant 40 : index
    %c0_21 = arith.constant 0 : index
    %16 = vector.load %arg2[%c40, %c0_21] : memref<96x22xf32, #tpu.memory_space<vmem>>, vector<36x22xf32>
    %c0_22 = arith.constant 0 : index
    %c0_23 = arith.constant 0 : index
    %17 = vector.load %arg2[%c0_22, %c0_23] : memref<96x22xf32, #tpu.memory_space<vmem>>, vector<36x22xf32>
    %c296 = arith.constant 296 : index
    %c0_24 = arith.constant 0 : index
    %18 = vector.load %arg4[%c296, %c0_24] : memref<312x36xf32, #tpu.memory_space<vmem>>, vector<16x36xf32>
    %c80 = arith.constant 80 : index
    %c0_25 = arith.constant 0 : index
    %19 = vector.load %arg2[%c80, %c0_25] : memref<96x22xf32, #tpu.memory_space<vmem>>, vector<16x22xf32>
    %c168 = arith.constant 168 : index
    %c0_26 = arith.constant 0 : index
    %20 = vector.load %arg1[%c168, %c0_26] : memref<456x16xf32, #tpu.memory_space<vmem>>, vector<2x16xf32>
    %cst = arith.constant dense<0.000000e+00> : vector<36x16xf32>
    %21 = tpu.matmul %2, %0, %cst {dimension_numbers = #tpu.dot_dimension_numbers<[1], [0], [0], [1], [0, 0, 1, 1], [], []>} : vector<36x16xf32>, vector<16x16xf32>, vector<36x16xf32> -> vector<36x16xf32>
    %cst_27 = arith.constant dense<0.000000e+00> : vector<36x16xf32>
    %22 = tpu.matmul %3, %1, %cst_27 {dimension_numbers = #tpu.dot_dimension_numbers<[1], [0], [0], [1], [0, 0, 1, 1], [], []>} : vector<36x36xf32>, vector<36x16xf32>, vector<36x16xf32> -> vector<36x16xf32>
    %23 = tpu.concatenate %21, %22 in 1 : vector<36x16xf32>, vector<36x16xf32> -> vector<36x32xf32>
    %c528 = arith.constant 528 : index
    %c0_28 = arith.constant 0 : index
    %24 = vector.load %arg3[%c528, %c0_28] : memref<680x32xf32, #tpu.memory_space<vmem>>, vector<32x32xf32>
    %cst_29 = arith.constant dense<0.000000e+00> : vector<36x32xf32>
    %25 = tpu.matmul %23, %24, %cst_29 {dimension_numbers = #tpu.dot_dimension_numbers<[1], [0], [0], [1], [0, 0, 1, 1], [], []>} : vector<36x32xf32>, vector<32x32xf32>, vector<36x32xf32> -> vector<36x32xf32>
    %c520 = arith.constant 520 : index
    %c0_30 = arith.constant 0 : index
    %26 = vector.load %arg3[%c520, %c0_30] : memref<680x32xf32, #tpu.memory_space<vmem>>, vector<1x32xf32>
    %27 = vector.broadcast %26 : vector<1x32xf32> to vector<36x32xf32>
    %28 = arith.addf %25, %27 : vector<36x32xf32>
    %cst_31 = arith.constant 0.000000e+00 : f32
    %29 = vector.broadcast %cst_31 : f32 to vector<36x32xf32>
    %30 = arith.maximumf %28, %29 : vector<36x32xf32>
    %c384 = arith.constant 384 : index
    %c0_32 = arith.constant 0 : index
    %31 = vector.load %arg1[%c384, %c0_32] : memref<456x16xf32, #tpu.memory_space<vmem>>, vector<32x16xf32>
    %cst_33 = arith.constant dense<0.000000e+00> : vector<36x16xf32>
    %32 = tpu.matmul %30, %31, %cst_33 {dimension_numbers = #tpu.dot_dimension_numbers<[1], [0], [0], [1], [0, 0, 1, 1], [], []>} : vector<36x32xf32>, vector<32x16xf32>, vector<36x16xf32> -> vector<36x16xf32>
    %c376 = arith.constant 376 : index
    %c0_34 = arith.constant 0 : index
    %33 = vector.load %arg1[%c376, %c0_34] : memref<456x16xf32, #tpu.memory_space<vmem>>, vector<1x16xf32>
    %34 = vector.broadcast %33 : vector<1x16xf32> to vector<36x16xf32>
    %35 = arith.addf %32, %34 : vector<36x16xf32>
    %cst_35 = arith.constant 0.000000e+00 : f32
    %36 = vector.broadcast %cst_35 : f32 to vector<36x16xf32>
    %37 = arith.maximumf %35, %36 : vector<36x16xf32>
    %cst_36 = arith.constant dense<0.000000e+00> : vector<22x16xf32>
    %38 = tpu.matmul %10, %0, %cst_36 {dimension_numbers = #tpu.dot_dimension_numbers<[1], [0], [0], [1], [0, 0, 1, 1], [], []>} : vector<22x16xf32>, vector<16x16xf32>, vector<22x16xf32> -> vector<22x16xf32>
    %cst_37 = arith.constant dense<0.000000e+00> : vector<22x16xf32>
    %39 = tpu.matmul %11, %0, %cst_37 {dimension_numbers = #tpu.dot_dimension_numbers<[1], [0], [0], [1], [0, 0, 1, 1], [], []>} : vector<22x16xf32>, vector<16x16xf32>, vector<22x16xf32> -> vector<22x16xf32>
    %40 = tpu.concatenate %38, %39 in 1 : vector<22x16xf32>, vector<22x16xf32> -> vector<22x32xf32>
    %c488 = arith.constant 488 : index
    %c0_38 = arith.constant 0 : index
    %41 = vector.load %arg3[%c488, %c0_38] : memref<680x32xf32, #tpu.memory_space<vmem>>, vector<32x32xf32>
    %cst_39 = arith.constant dense<0.000000e+00> : vector<22x32xf32>
    %42 = tpu.matmul %40, %41, %cst_39 {dimension_numbers = #tpu.dot_dimension_numbers<[1], [0], [0], [1], [0, 0, 1, 1], [], []>} : vector<22x32xf32>, vector<32x32xf32>, vector<22x32xf32> -> vector<22x32xf32>
    %c480 = arith.constant 480 : index
    %c0_40 = arith.constant 0 : index
    %43 = vector.load %arg3[%c480, %c0_40] : memref<680x32xf32, #tpu.memory_space<vmem>>, vector<1x32xf32>
    %44 = vector.broadcast %43 : vector<1x32xf32> to vector<22x32xf32>
    %45 = arith.addf %42, %44 : vector<22x32xf32>
    %cst_41 = arith.constant 0.000000e+00 : f32
    %46 = vector.broadcast %cst_41 : f32 to vector<22x32xf32>
    %47 = arith.maximumf %45, %46 : vector<22x32xf32>
    %c344 = arith.constant 344 : index
    %c0_42 = arith.constant 0 : index
    %48 = vector.load %arg1[%c344, %c0_42] : memref<456x16xf32, #tpu.memory_space<vmem>>, vector<32x16xf32>
    %cst_43 = arith.constant dense<0.000000e+00> : vector<22x16xf32>
    %49 = tpu.matmul %47, %48, %cst_43 {dimension_numbers = #tpu.dot_dimension_numbers<[1], [0], [0], [1], [0, 0, 1, 1], [], []>} : vector<22x32xf32>, vector<32x16xf32>, vector<22x16xf32> -> vector<22x16xf32>
    %c336 = arith.constant 336 : index
    %c0_44 = arith.constant 0 : index
    %50 = vector.load %arg1[%c336, %c0_44] : memref<456x16xf32, #tpu.memory_space<vmem>>, vector<1x16xf32>
    %51 = vector.broadcast %50 : vector<1x16xf32> to vector<22x16xf32>
    %52 = arith.addf %49, %51 : vector<22x16xf32>
    %cst_45 = arith.constant 0.000000e+00 : f32
    %53 = vector.broadcast %cst_45 : f32 to vector<22x16xf32>
    %54 = arith.maximumf %52, %53 : vector<22x16xf32>
    %c664 = arith.constant 664 : index
    %c0_46 = arith.constant 0 : index
    %55 = vector.load %arg3[%c664, %c0_46] : memref<680x32xf32, #tpu.memory_space<vmem>>, vector<16x32xf32>
    %cst_47 = arith.constant dense<0.000000e+00> : vector<16x32xf32>
    %56 = tpu.matmul %0, %55, %cst_47 {dimension_numbers = #tpu.dot_dimension_numbers<[1], [0], [0], [1], [0, 0, 1, 1], [], []>} : vector<16x16xf32>, vector<16x32xf32>, vector<16x32xf32> -> vector<16x32xf32>
    %c656 = arith.constant 656 : index
    %c0_48 = arith.constant 0 : index
    %57 = vector.load %arg3[%c656, %c0_48] : memref<680x32xf32, #tpu.memory_space<vmem>>, vector<1x32xf32>
    %58 = vector.broadcast %57 : vector<1x32xf32> to vector<16x32xf32>
    %59 = arith.addf %56, %58 : vector<16x32xf32>
    %cst_49 = arith.constant 0.000000e+00 : f32
    %60 = vector.broadcast %cst_49 : f32 to vector<16x32xf32>
    %61 = arith.maximumf %59, %60 : vector<16x32xf32>
    %c424 = arith.constant 424 : index
    %c0_50 = arith.constant 0 : index
    %62 = vector.load %arg1[%c424, %c0_50] : memref<456x16xf32, #tpu.memory_space<vmem>>, vector<32x16xf32>
    %cst_51 = arith.constant dense<0.000000e+00> : vector<16x16xf32>
    %63 = tpu.matmul %61, %62, %cst_51 {dimension_numbers = #tpu.dot_dimension_numbers<[1], [0], [0], [1], [0, 0, 1, 1], [], []>} : vector<16x32xf32>, vector<32x16xf32>, vector<16x16xf32> -> vector<16x16xf32>
    %c416 = arith.constant 416 : index
    %c0_52 = arith.constant 0 : index
    %64 = vector.load %arg1[%c416, %c0_52] : memref<456x16xf32, #tpu.memory_space<vmem>>, vector<1x16xf32>
    %65 = vector.broadcast %64 : vector<1x16xf32> to vector<16x16xf32>
    %66 = arith.addf %63, %65 : vector<16x16xf32>
    %cst_53 = arith.constant 0.000000e+00 : f32
    %67 = vector.broadcast %cst_53 : f32 to vector<16x16xf32>
    %68 = arith.maximumf %66, %67 : vector<16x16xf32>
    %cst_54 = arith.constant dense<0.000000e+00> : vector<36x16xf32>
    %69 = tpu.matmul %4, %37, %cst_54 {dimension_numbers = #tpu.dot_dimension_numbers<[1], [0], [0], [1], [0, 0, 1, 1], [], []>} : vector<36x36xf32>, vector<36x16xf32>, vector<36x16xf32> -> vector<36x16xf32>
    %cst_55 = arith.constant dense<0.000000e+00> : vector<36x16xf32>
    %70 = tpu.matmul %5, %37, %cst_55 {dimension_numbers = #tpu.dot_dimension_numbers<[1], [0], [0], [1], [0, 0, 1, 1], [], []>} : vector<36x36xf32>, vector<36x16xf32>, vector<36x16xf32> -> vector<36x16xf32>
    %cst_56 = arith.constant dense<0.000000e+00> : vector<36x16xf32>
    %71 = tpu.matmul %6, %37, %cst_56 {dimension_numbers = #tpu.dot_dimension_numbers<[1], [0], [0], [1], [0, 0, 1, 1], [], []>} : vector<36x36xf32>, vector<36x16xf32>, vector<36x16xf32> -> vector<36x16xf32>
    %cst_57 = arith.constant dense<0.000000e+00> : vector<36x16xf32>
    %72 = tpu.matmul %7, %37, %cst_57 {dimension_numbers = #tpu.dot_dimension_numbers<[1], [0], [0], [1], [0, 0, 1, 1], [], []>} : vector<36x36xf32>, vector<36x16xf32>, vector<36x16xf32> -> vector<36x16xf32>
    %cst_58 = arith.constant dense<0.000000e+00> : vector<36x16xf32>
    %73 = tpu.matmul %8, %68, %cst_58 {dimension_numbers = #tpu.dot_dimension_numbers<[1], [0], [0], [1], [0, 0, 1, 1], [], []>} : vector<36x16xf32>, vector<16x16xf32>, vector<36x16xf32> -> vector<36x16xf32>
    %cst_59 = arith.constant dense<0.000000e+00> : vector<36x16xf32>
    %74 = tpu.matmul %9, %68, %cst_59 {dimension_numbers = #tpu.dot_dimension_numbers<[1], [0], [0], [1], [0, 0, 1, 1], [], []>} : vector<36x16xf32>, vector<16x16xf32>, vector<36x16xf32> -> vector<36x16xf32>
    %75 = tpu.concatenate %69, %70, %71, %72, %73, %74 in 1 : vector<36x16xf32>, vector<36x16xf32>, vector<36x16xf32>, vector<36x16xf32>, vector<36x16xf32>, vector<36x16xf32> -> vector<36x96xf32>
    %76 = tpu.concatenate %37, %75 in 1 : vector<36x16xf32>, vector<36x96xf32> -> vector<36x112xf32>
    %c256_60 = arith.constant 256 : index
    %c0_61 = arith.constant 0 : index
    %77 = vector.load %arg3[%c256_60, %c0_61] : memref<680x32xf32, #tpu.memory_space<vmem>>, vector<112x32xf32>
    %cst_62 = arith.constant dense<0.000000e+00> : vector<36x32xf32>
    %78 = tpu.matmul %76, %77, %cst_62 {dimension_numbers = #tpu.dot_dimension_numbers<[1], [0], [0], [1], [0, 0, 1, 1], [], []>} : vector<36x112xf32>, vector<112x32xf32>, vector<36x32xf32> -> vector<36x32xf32>
    %cst_63 = arith.constant dense<0.000000e+00> : vector<32xf32>
    %79 = vector.multi_reduction <add>, %78, %cst_63 [0] : vector<36x32xf32> to vector<32xf32>
    %80 = vector.shape_cast %79 : vector<32xf32> to vector<1x32xf32>
    %cst_64 = arith.constant 3.600000e+01 : f32
    %81 = vector.broadcast %cst_64 : f32 to vector<1x32xf32>
    %82 = arith.divf %80, %81 : vector<1x32xf32>
    %83 = vector.broadcast %82 : vector<1x32xf32> to vector<36x32xf32>
    %84 = arith.subf %78, %83 : vector<36x32xf32>
    %85 = arith.mulf %84, %84 : vector<36x32xf32>
    %cst_65 = arith.constant dense<0.000000e+00> : vector<32xf32>
    %86 = vector.multi_reduction <add>, %85, %cst_65 [0] : vector<36x32xf32> to vector<32xf32>
    %87 = vector.shape_cast %86 : vector<32xf32> to vector<1x32xf32>
    %cst_66 = arith.constant 3.600000e+01 : f32
    %88 = vector.broadcast %cst_66 : f32 to vector<1x32xf32>
    %89 = arith.divf %87, %88 : vector<1x32xf32>
    %cst_67 = arith.constant 9.99999974E-6 : f32
    %90 = vector.broadcast %cst_67 : f32 to vector<1x32xf32>
    %91 = arith.addf %89, %90 : vector<1x32xf32>
    %92 = math.rsqrt %91 : vector<1x32xf32>
    %93 = vector.broadcast %92 : vector<1x32xf32> to vector<36x32xf32>
    %94 = arith.mulf %84, %93 : vector<36x32xf32>
    %cst_68 = arith.constant 0.000000e+00 : f32
    %95 = vector.broadcast %cst_68 : f32 to vector<36x32xf32>
    %96 = arith.maximumf %94, %95 : vector<36x32xf32>
    %c240 = arith.constant 240 : index
    %c0_69 = arith.constant 0 : index
    %97 = vector.load %arg1[%c240, %c0_69] : memref<456x16xf32, #tpu.memory_space<vmem>>, vector<32x16xf32>
    %cst_70 = arith.constant dense<0.000000e+00> : vector<36x16xf32>
    %98 = tpu.matmul %96, %97, %cst_70 {dimension_numbers = #tpu.dot_dimension_numbers<[1], [0], [0], [1], [0, 0, 1, 1], [], []>} : vector<36x32xf32>, vector<32x16xf32>, vector<36x16xf32> -> vector<36x16xf32>
    %cst_71 = arith.constant dense<0.000000e+00> : vector<16xf32>
    %99 = vector.multi_reduction <add>, %98, %cst_71 [0] : vector<36x16xf32> to vector<16xf32>
    %100 = vector.shape_cast %99 : vector<16xf32> to vector<1x16xf32>
    %cst_72 = arith.constant 3.600000e+01 : f32
    %101 = vector.broadcast %cst_72 : f32 to vector<1x16xf32>
    %102 = arith.divf %100, %101 : vector<1x16xf32>
    %103 = vector.broadcast %102 : vector<1x16xf32> to vector<36x16xf32>
    %104 = arith.subf %98, %103 : vector<36x16xf32>
    %105 = arith.mulf %104, %104 : vector<36x16xf32>
    %cst_73 = arith.constant dense<0.000000e+00> : vector<16xf32>
    %106 = vector.multi_reduction <add>, %105, %cst_73 [0] : vector<36x16xf32> to vector<16xf32>
    %107 = vector.shape_cast %106 : vector<16xf32> to vector<1x16xf32>
    %cst_74 = arith.constant 3.600000e+01 : f32
    %108 = vector.broadcast %cst_74 : f32 to vector<1x16xf32>
    %109 = arith.divf %107, %108 : vector<1x16xf32>
    %cst_75 = arith.constant 9.99999974E-6 : f32
    %110 = vector.broadcast %cst_75 : f32 to vector<1x16xf32>
    %111 = arith.addf %109, %110 : vector<1x16xf32>
    %112 = math.rsqrt %111 : vector<1x16xf32>
    %113 = vector.broadcast %112 : vector<1x16xf32> to vector<36x16xf32>
    %114 = arith.mulf %104, %113 : vector<36x16xf32>
    %cst_76 = arith.constant 0.000000e+00 : f32
    %115 = vector.broadcast %cst_76 : f32 to vector<36x16xf32>
    %116 = arith.maximumf %114, %115 : vector<36x16xf32>
    %cst_77 = arith.constant dense<0.000000e+00> : vector<16x96xf32>
    %117 = tpu.matmul %18, %75, %cst_77 {dimension_numbers = #tpu.dot_dimension_numbers<[1], [0], [0], [1], [0, 0, 1, 1], [], []>} : vector<16x36xf32>, vector<36x96xf32>, vector<16x96xf32> -> vector<16x96xf32>
    %118 = tpu.concatenate %68, %117 in 1 : vector<16x16xf32>, vector<16x96xf32> -> vector<16x112xf32>
    %c368 = arith.constant 368 : index
    %c0_78 = arith.constant 0 : index
    %119 = vector.load %arg3[%c368, %c0_78] : memref<680x32xf32, #tpu.memory_space<vmem>>, vector<112x32xf32>
    %cst_79 = arith.constant dense<0.000000e+00> : vector<16x32xf32>
    %120 = tpu.matmul %118, %119, %cst_79 {dimension_numbers = #tpu.dot_dimension_numbers<[1], [0], [0], [1], [0, 0, 1, 1], [], []>} : vector<16x112xf32>, vector<112x32xf32>, vector<16x32xf32> -> vector<16x32xf32>
    %cst_80 = arith.constant dense<0.000000e+00> : vector<32xf32>
    %121 = vector.multi_reduction <add>, %120, %cst_80 [0] : vector<16x32xf32> to vector<32xf32>
    %122 = vector.shape_cast %121 : vector<32xf32> to vector<1x32xf32>
    %cst_81 = arith.constant 1.600000e+01 : f32
    %123 = vector.broadcast %cst_81 : f32 to vector<1x32xf32>
    %124 = arith.divf %122, %123 : vector<1x32xf32>
    %125 = vector.broadcast %124 : vector<1x32xf32> to vector<16x32xf32>
    %126 = arith.subf %120, %125 : vector<16x32xf32>
    %127 = arith.mulf %126, %126 : vector<16x32xf32>
    %cst_82 = arith.constant dense<0.000000e+00> : vector<32xf32>
    %128 = vector.multi_reduction <add>, %127, %cst_82 [0] : vector<16x32xf32> to vector<32xf32>
    %129 = vector.shape_cast %128 : vector<32xf32> to vector<1x32xf32>
    %cst_83 = arith.constant 1.600000e+01 : f32
    %130 = vector.broadcast %cst_83 : f32 to vector<1x32xf32>
    %131 = arith.divf %129, %130 : vector<1x32xf32>
    %cst_84 = arith.constant 9.99999974E-6 : f32
    %132 = vector.broadcast %cst_84 : f32 to vector<1x32xf32>
    %133 = arith.addf %131, %132 : vector<1x32xf32>
    %134 = math.rsqrt %133 : vector<1x32xf32>
    %135 = vector.broadcast %134 : vector<1x32xf32> to vector<16x32xf32>
    %136 = arith.mulf %126, %135 : vector<16x32xf32>
    %cst_85 = arith.constant 0.000000e+00 : f32
    %137 = vector.broadcast %cst_85 : f32 to vector<16x32xf32>
    %138 = arith.maximumf %136, %137 : vector<16x32xf32>
    %c272 = arith.constant 272 : index
    %c0_86 = arith.constant 0 : index
    %139 = vector.load %arg1[%c272, %c0_86] : memref<456x16xf32, #tpu.memory_space<vmem>>, vector<32x16xf32>
    %cst_87 = arith.constant dense<0.000000e+00> : vector<16x16xf32>
    %140 = tpu.matmul %138, %139, %cst_87 {dimension_numbers = #tpu.dot_dimension_numbers<[1], [0], [0], [1], [0, 0, 1, 1], [], []>} : vector<16x32xf32>, vector<32x16xf32>, vector<16x16xf32> -> vector<16x16xf32>
    %cst_88 = arith.constant dense<0.000000e+00> : vector<16xf32>
    %141 = vector.multi_reduction <add>, %140, %cst_88 [0] : vector<16x16xf32> to vector<16xf32>
    %142 = vector.shape_cast %141 : vector<16xf32> to vector<1x16xf32>
    %cst_89 = arith.constant 1.600000e+01 : f32
    %143 = vector.broadcast %cst_89 : f32 to vector<1x16xf32>
    %144 = arith.divf %142, %143 : vector<1x16xf32>
    %145 = vector.broadcast %144 : vector<1x16xf32> to vector<16x16xf32>
    %146 = arith.subf %140, %145 : vector<16x16xf32>
    %147 = arith.mulf %146, %146 : vector<16x16xf32>
    %cst_90 = arith.constant dense<0.000000e+00> : vector<16xf32>
    %148 = vector.multi_reduction <add>, %147, %cst_90 [0] : vector<16x16xf32> to vector<16xf32>
    %149 = vector.shape_cast %148 : vector<16xf32> to vector<1x16xf32>
    %cst_91 = arith.constant 1.600000e+01 : f32
    %150 = vector.broadcast %cst_91 : f32 to vector<1x16xf32>
    %151 = arith.divf %149, %150 : vector<1x16xf32>
    %cst_92 = arith.constant 9.99999974E-6 : f32
    %152 = vector.broadcast %cst_92 : f32 to vector<1x16xf32>
    %153 = arith.addf %151, %152 : vector<1x16xf32>
    %154 = math.rsqrt %153 : vector<1x16xf32>
    %155 = vector.broadcast %154 : vector<1x16xf32> to vector<16x16xf32>
    %156 = arith.mulf %146, %155 : vector<16x16xf32>
    %cst_93 = arith.constant 0.000000e+00 : f32
    %157 = vector.broadcast %cst_93 : f32 to vector<16x16xf32>
    %158 = arith.maximumf %156, %157 : vector<16x16xf32>
    %cst_94 = arith.constant dense<0.000000e+00> : vector<22x16xf32>
    %159 = tpu.matmul %12, %37, %cst_94 {dimension_numbers = #tpu.dot_dimension_numbers<[1], [0], [0], [1], [0, 0, 1, 1], [], []>} : vector<22x36xf32>, vector<36x16xf32>, vector<22x16xf32> -> vector<22x16xf32>
    %cst_95 = arith.constant dense<0.000000e+00> : vector<22x16xf32>
    %160 = tpu.matmul %13, %37, %cst_95 {dimension_numbers = #tpu.dot_dimension_numbers<[1], [0], [0], [1], [0, 0, 1, 1], [], []>} : vector<22x36xf32>, vector<36x16xf32>, vector<22x16xf32> -> vector<22x16xf32>
    %cst_96 = arith.constant dense<0.000000e+00> : vector<22x16xf32>
    %161 = tpu.matmul %14, %37, %cst_96 {dimension_numbers = #tpu.dot_dimension_numbers<[1], [0], [0], [1], [0, 0, 1, 1], [], []>} : vector<22x36xf32>, vector<36x16xf32>, vector<22x16xf32> -> vector<22x16xf32>
    %cst_97 = arith.constant dense<0.000000e+00> : vector<22x16xf32>
    %162 = tpu.matmul %15, %37, %cst_97 {dimension_numbers = #tpu.dot_dimension_numbers<[1], [0], [0], [1], [0, 0, 1, 1], [], []>} : vector<22x36xf32>, vector<36x16xf32>, vector<22x16xf32> -> vector<22x16xf32>
    %163 = tpu.concatenate %159, %160, %161, %162, %54 in 1 : vector<22x16xf32>, vector<22x16xf32>, vector<22x16xf32>, vector<22x16xf32>, vector<22x16xf32> -> vector<22x80xf32>
    %cst_98 = arith.constant dense<0.000000e+00> : vector<36x80xf32>
    %164 = tpu.matmul %16, %163, %cst_98 {dimension_numbers = #tpu.dot_dimension_numbers<[1], [0], [0], [1], [0, 0, 1, 1], [], []>} : vector<36x22xf32>, vector<22x80xf32>, vector<36x80xf32> -> vector<36x80xf32>
    %cst_99 = arith.constant dense<0.000000e+00> : vector<36x80xf32>
    %165 = tpu.matmul %17, %163, %cst_99 {dimension_numbers = #tpu.dot_dimension_numbers<[1], [0], [0], [1], [0, 0, 1, 1], [], []>} : vector<36x22xf32>, vector<22x80xf32>, vector<36x80xf32> -> vector<36x80xf32>
    %166 = tpu.concatenate %164, %165 in 1 : vector<36x80xf32>, vector<36x80xf32> -> vector<36x160xf32>
    %167 = tpu.concatenate %37, %166 in 1 : vector<36x16xf32>, vector<36x160xf32> -> vector<36x176xf32>
    %c80_100 = arith.constant 80 : index
    %c0_101 = arith.constant 0 : index
    %168 = vector.load %arg3[%c80_100, %c0_101] : memref<680x32xf32, #tpu.memory_space<vmem>>, vector<176x32xf32>
    %cst_102 = arith.constant dense<0.000000e+00> : vector<36x32xf32>
    %169 = tpu.matmul %167, %168, %cst_102 {dimension_numbers = #tpu.dot_dimension_numbers<[1], [0], [0], [1], [0, 0, 1, 1], [], []>} : vector<36x176xf32>, vector<176x32xf32>, vector<36x32xf32> -> vector<36x32xf32>
    %cst_103 = arith.constant dense<0.000000e+00> : vector<32xf32>
    %170 = vector.multi_reduction <add>, %169, %cst_103 [0] : vector<36x32xf32> to vector<32xf32>
    %171 = vector.shape_cast %170 : vector<32xf32> to vector<1x32xf32>
    %cst_104 = arith.constant 3.600000e+01 : f32
    %172 = vector.broadcast %cst_104 : f32 to vector<1x32xf32>
    %173 = arith.divf %171, %172 : vector<1x32xf32>
    %174 = vector.broadcast %173 : vector<1x32xf32> to vector<36x32xf32>
    %175 = arith.subf %169, %174 : vector<36x32xf32>
    %176 = arith.mulf %175, %175 : vector<36x32xf32>
    %cst_105 = arith.constant dense<0.000000e+00> : vector<32xf32>
    %177 = vector.multi_reduction <add>, %176, %cst_105 [0] : vector<36x32xf32> to vector<32xf32>
    %178 = vector.shape_cast %177 : vector<32xf32> to vector<1x32xf32>
    %cst_106 = arith.constant 3.600000e+01 : f32
    %179 = vector.broadcast %cst_106 : f32 to vector<1x32xf32>
    %180 = arith.divf %178, %179 : vector<1x32xf32>
    %cst_107 = arith.constant 9.99999974E-6 : f32
    %181 = vector.broadcast %cst_107 : f32 to vector<1x32xf32>
    %182 = arith.addf %180, %181 : vector<1x32xf32>
    %183 = math.rsqrt %182 : vector<1x32xf32>
    %184 = vector.broadcast %183 : vector<1x32xf32> to vector<36x32xf32>
    %185 = arith.mulf %175, %184 : vector<36x32xf32>
    %cst_108 = arith.constant 0.000000e+00 : f32
    %186 = vector.broadcast %cst_108 : f32 to vector<36x32xf32>
    %187 = arith.maximumf %185, %186 : vector<36x32xf32>
    %c208 = arith.constant 208 : index
    %c0_109 = arith.constant 0 : index
    %188 = vector.load %arg1[%c208, %c0_109] : memref<456x16xf32, #tpu.memory_space<vmem>>, vector<32x16xf32>
    %cst_110 = arith.constant dense<0.000000e+00> : vector<36x16xf32>
    %189 = tpu.matmul %187, %188, %cst_110 {dimension_numbers = #tpu.dot_dimension_numbers<[1], [0], [0], [1], [0, 0, 1, 1], [], []>} : vector<36x32xf32>, vector<32x16xf32>, vector<36x16xf32> -> vector<36x16xf32>
    %cst_111 = arith.constant dense<0.000000e+00> : vector<16xf32>
    %190 = vector.multi_reduction <add>, %189, %cst_111 [0] : vector<36x16xf32> to vector<16xf32>
    %191 = vector.shape_cast %190 : vector<16xf32> to vector<1x16xf32>
    %cst_112 = arith.constant 3.600000e+01 : f32
    %192 = vector.broadcast %cst_112 : f32 to vector<1x16xf32>
    %193 = arith.divf %191, %192 : vector<1x16xf32>
    %194 = vector.broadcast %193 : vector<1x16xf32> to vector<36x16xf32>
    %195 = arith.subf %189, %194 : vector<36x16xf32>
    %196 = arith.mulf %195, %195 : vector<36x16xf32>
    %cst_113 = arith.constant dense<0.000000e+00> : vector<16xf32>
    %197 = vector.multi_reduction <add>, %196, %cst_113 [0] : vector<36x16xf32> to vector<16xf32>
    %198 = vector.shape_cast %197 : vector<16xf32> to vector<1x16xf32>
    %cst_114 = arith.constant 3.600000e+01 : f32
    %199 = vector.broadcast %cst_114 : f32 to vector<1x16xf32>
    %200 = arith.divf %198, %199 : vector<1x16xf32>
    %cst_115 = arith.constant 9.99999974E-6 : f32
    %201 = vector.broadcast %cst_115 : f32 to vector<1x16xf32>
    %202 = arith.addf %200, %201 : vector<1x16xf32>
    %203 = math.rsqrt %202 : vector<1x16xf32>
    %204 = vector.broadcast %203 : vector<1x16xf32> to vector<36x16xf32>
    %205 = arith.mulf %195, %204 : vector<36x16xf32>
    %cst_116 = arith.constant 0.000000e+00 : f32
    %206 = vector.broadcast %cst_116 : f32 to vector<36x16xf32>
    %207 = arith.maximumf %205, %206 : vector<36x16xf32>
    %c0_117 = arith.constant 0 : index
    %c0_118 = arith.constant 0 : index
    %208 = vector.load %arg3[%c0_117, %c0_118] : memref<680x32xf32, #tpu.memory_space<vmem>>, vector<80x32xf32>
    %cst_119 = arith.constant dense<0.000000e+00> : vector<22x32xf32>
    %209 = tpu.matmul %163, %208, %cst_119 {dimension_numbers = #tpu.dot_dimension_numbers<[1], [0], [0], [1], [0, 0, 1, 1], [], []>} : vector<22x80xf32>, vector<80x32xf32>, vector<22x32xf32> -> vector<22x32xf32>
    %cst_120 = arith.constant dense<0.000000e+00> : vector<32xf32>
    %210 = vector.multi_reduction <add>, %209, %cst_120 [0] : vector<22x32xf32> to vector<32xf32>
    %211 = vector.shape_cast %210 : vector<32xf32> to vector<1x32xf32>
    %cst_121 = arith.constant 2.200000e+01 : f32
    %212 = vector.broadcast %cst_121 : f32 to vector<1x32xf32>
    %213 = arith.divf %211, %212 : vector<1x32xf32>
    %214 = vector.broadcast %213 : vector<1x32xf32> to vector<22x32xf32>
    %215 = arith.subf %209, %214 : vector<22x32xf32>
    %216 = arith.mulf %215, %215 : vector<22x32xf32>
    %cst_122 = arith.constant dense<0.000000e+00> : vector<32xf32>
    %217 = vector.multi_reduction <add>, %216, %cst_122 [0] : vector<22x32xf32> to vector<32xf32>
    %218 = vector.shape_cast %217 : vector<32xf32> to vector<1x32xf32>
    %cst_123 = arith.constant 2.200000e+01 : f32
    %219 = vector.broadcast %cst_123 : f32 to vector<1x32xf32>
    %220 = arith.divf %218, %219 : vector<1x32xf32>
    %cst_124 = arith.constant 9.99999974E-6 : f32
    %221 = vector.broadcast %cst_124 : f32 to vector<1x32xf32>
    %222 = arith.addf %220, %221 : vector<1x32xf32>
    %223 = math.rsqrt %222 : vector<1x32xf32>
    %224 = vector.broadcast %223 : vector<1x32xf32> to vector<22x32xf32>
    %225 = arith.mulf %215, %224 : vector<22x32xf32>
    %cst_125 = arith.constant 0.000000e+00 : f32
    %226 = vector.broadcast %cst_125 : f32 to vector<22x32xf32>
    %227 = arith.maximumf %225, %226 : vector<22x32xf32>
    %c176_126 = arith.constant 176 : index
    %c0_127 = arith.constant 0 : index
    %228 = vector.load %arg1[%c176_126, %c0_127] : memref<456x16xf32, #tpu.memory_space<vmem>>, vector<32x16xf32>
    %cst_128 = arith.constant dense<0.000000e+00> : vector<22x16xf32>
    %229 = tpu.matmul %227, %228, %cst_128 {dimension_numbers = #tpu.dot_dimension_numbers<[1], [0], [0], [1], [0, 0, 1, 1], [], []>} : vector<22x32xf32>, vector<32x16xf32>, vector<22x16xf32> -> vector<22x16xf32>
    %cst_129 = arith.constant dense<0.000000e+00> : vector<16xf32>
    %230 = vector.multi_reduction <add>, %229, %cst_129 [0] : vector<22x16xf32> to vector<16xf32>
    %231 = vector.shape_cast %230 : vector<16xf32> to vector<1x16xf32>
    %cst_130 = arith.constant 2.200000e+01 : f32
    %232 = vector.broadcast %cst_130 : f32 to vector<1x16xf32>
    %233 = arith.divf %231, %232 : vector<1x16xf32>
    %234 = vector.broadcast %233 : vector<1x16xf32> to vector<22x16xf32>
    %235 = arith.subf %229, %234 : vector<22x16xf32>
    %236 = arith.mulf %235, %235 : vector<22x16xf32>
    %cst_131 = arith.constant dense<0.000000e+00> : vector<16xf32>
    %237 = vector.multi_reduction <add>, %236, %cst_131 [0] : vector<22x16xf32> to vector<16xf32>
    %238 = vector.shape_cast %237 : vector<16xf32> to vector<1x16xf32>
    %cst_132 = arith.constant 2.200000e+01 : f32
    %239 = vector.broadcast %cst_132 : f32 to vector<1x16xf32>
    %240 = arith.divf %238, %239 : vector<1x16xf32>
    %cst_133 = arith.constant 9.99999974E-6 : f32
    %241 = vector.broadcast %cst_133 : f32 to vector<1x16xf32>
    %242 = arith.addf %240, %241 : vector<1x16xf32>
    %243 = math.rsqrt %242 : vector<1x16xf32>
    %244 = vector.broadcast %243 : vector<1x16xf32> to vector<22x16xf32>
    %245 = arith.mulf %235, %244 : vector<22x16xf32>
    %cst_134 = arith.constant 0.000000e+00 : f32
    %246 = vector.broadcast %cst_134 : f32 to vector<22x16xf32>
    %247 = arith.maximumf %245, %246 : vector<22x16xf32>
    %248 = tpu.concatenate %116, %207 in 1 : vector<36x16xf32>, vector<36x16xf32> -> vector<36x32xf32>
    %c304 = arith.constant 304 : index
    %c0_135 = arith.constant 0 : index
    %249 = vector.load %arg1[%c304, %c0_135] : memref<456x16xf32, #tpu.memory_space<vmem>>, vector<32x16xf32>
    %cst_136 = arith.constant dense<0.000000e+00> : vector<36x16xf32>
    %250 = tpu.matmul %248, %249, %cst_136 {dimension_numbers = #tpu.dot_dimension_numbers<[1], [0], [0], [1], [0, 0, 1, 1], [], []>} : vector<36x32xf32>, vector<32x16xf32>, vector<36x16xf32> -> vector<36x16xf32>
    %cst_137 = arith.constant dense<0.000000e+00> : vector<16xf32>
    %251 = vector.multi_reduction <add>, %250, %cst_137 [0] : vector<36x16xf32> to vector<16xf32>
    %252 = vector.shape_cast %251 : vector<16xf32> to vector<1x16xf32>
    %cst_138 = arith.constant 3.600000e+01 : f32
    %253 = vector.broadcast %cst_138 : f32 to vector<1x16xf32>
    %254 = arith.divf %252, %253 : vector<1x16xf32>
    %255 = vector.broadcast %254 : vector<1x16xf32> to vector<36x16xf32>
    %256 = arith.subf %250, %255 : vector<36x16xf32>
    %257 = arith.mulf %256, %256 : vector<36x16xf32>
    %cst_139 = arith.constant dense<0.000000e+00> : vector<16xf32>
    %258 = vector.multi_reduction <add>, %257, %cst_139 [0] : vector<36x16xf32> to vector<16xf32>
    %259 = vector.shape_cast %258 : vector<16xf32> to vector<1x16xf32>
    %cst_140 = arith.constant 3.600000e+01 : f32
    %260 = vector.broadcast %cst_140 : f32 to vector<1x16xf32>
    %261 = arith.divf %259, %260 : vector<1x16xf32>
    %cst_141 = arith.constant 9.99999974E-6 : f32
    %262 = vector.broadcast %cst_141 : f32 to vector<1x16xf32>
    %263 = arith.addf %261, %262 : vector<1x16xf32>
    %264 = math.rsqrt %263 : vector<1x16xf32>
    %265 = vector.broadcast %264 : vector<1x16xf32> to vector<36x16xf32>
    %266 = arith.mulf %256, %265 : vector<36x16xf32>
    %cst_142 = arith.constant 0.000000e+00 : f32
    %267 = vector.broadcast %cst_142 : f32 to vector<36x16xf32>
    %268 = arith.maximumf %266, %267 : vector<36x16xf32>
    %269 = arith.addf %68, %158 : vector<16x16xf32>
    %270 = arith.addf %37, %268 : vector<36x16xf32>
    %271 = arith.addf %54, %247 : vector<22x16xf32>
    %cst_143 = arith.constant dense<0.000000e+00> : vector<16x16xf32>
    %272 = tpu.matmul %18, %270, %cst_143 {dimension_numbers = #tpu.dot_dimension_numbers<[1], [0], [0], [1], [0, 0, 1, 1], [], []>} : vector<16x36xf32>, vector<36x16xf32>, vector<16x16xf32> -> vector<16x16xf32>
    %cst_144 = arith.constant dense<0.000000e+00> : vector<16x16xf32>
    %273 = tpu.matmul %19, %271, %cst_144 {dimension_numbers = #tpu.dot_dimension_numbers<[1], [0], [0], [1], [0, 0, 1, 1], [], []>} : vector<16x22xf32>, vector<22x16xf32>, vector<16x16xf32> -> vector<16x16xf32>
    %274 = tpu.concatenate %269, %272, %273 in 1 : vector<16x16xf32>, vector<16x16xf32>, vector<16x16xf32> -> vector<16x48xf32>
    %cst_145 = arith.constant dense<0.000000e+00> : vector<2x48xf32>
    %275 = tpu.matmul %20, %274, %cst_145 {dimension_numbers = #tpu.dot_dimension_numbers<[1], [0], [0], [1], [0, 0, 1, 1], [], []>} : vector<2x16xf32>, vector<16x48xf32>, vector<2x48xf32> -> vector<2x48xf32>
    %c568 = arith.constant 568 : index
    %c0_146 = arith.constant 0 : index
    %276 = vector.load %arg3[%c568, %c0_146] : memref<680x32xf32, #tpu.memory_space<vmem>>, vector<48x32xf32>
    %cst_147 = arith.constant dense<0.000000e+00> : vector<2x32xf32>
    %277 = tpu.matmul %275, %276, %cst_147 {dimension_numbers = #tpu.dot_dimension_numbers<[1], [0], [0], [1], [0, 0, 1, 1], [], []>} : vector<2x48xf32>, vector<48x32xf32>, vector<2x32xf32> -> vector<2x32xf32>
    %c560 = arith.constant 560 : index
    %c0_148 = arith.constant 0 : index
    %278 = vector.load %arg3[%c560, %c0_148] : memref<680x32xf32, #tpu.memory_space<vmem>>, vector<1x32xf32>
    %279 = vector.broadcast %278 : vector<1x32xf32> to vector<2x32xf32>
    %280 = arith.addf %277, %279 : vector<2x32xf32>
    %cst_149 = arith.constant dense<0.000000e+00> : vector<32xf32>
    %281 = vector.multi_reduction <add>, %280, %cst_149 [0] : vector<2x32xf32> to vector<32xf32>
    %282 = vector.shape_cast %281 : vector<32xf32> to vector<1x32xf32>
    %cst_150 = arith.constant 2.000000e+00 : f32
    %283 = vector.broadcast %cst_150 : f32 to vector<1x32xf32>
    %284 = arith.divf %282, %283 : vector<1x32xf32>
    %285 = vector.broadcast %284 : vector<1x32xf32> to vector<2x32xf32>
    %286 = arith.subf %280, %285 : vector<2x32xf32>
    %287 = arith.mulf %286, %286 : vector<2x32xf32>
    %cst_151 = arith.constant dense<0.000000e+00> : vector<32xf32>
    %288 = vector.multi_reduction <add>, %287, %cst_151 [0] : vector<2x32xf32> to vector<32xf32>
    %289 = vector.shape_cast %288 : vector<32xf32> to vector<1x32xf32>
    %cst_152 = arith.constant 2.000000e+00 : f32
    %290 = vector.broadcast %cst_152 : f32 to vector<1x32xf32>
    %291 = arith.divf %289, %290 : vector<1x32xf32>
    %cst_153 = arith.constant 9.99999974E-6 : f32
    %292 = vector.broadcast %cst_153 : f32 to vector<1x32xf32>
    %293 = arith.addf %291, %292 : vector<1x32xf32>
    %294 = math.rsqrt %293 : vector<1x32xf32>
    %295 = vector.broadcast %294 : vector<1x32xf32> to vector<2x32xf32>
    %296 = arith.mulf %286, %295 : vector<2x32xf32>
    %cst_154 = arith.constant 0.000000e+00 : f32
    %297 = vector.broadcast %cst_154 : f32 to vector<2x32xf32>
    %298 = arith.maximumf %296, %297 : vector<2x32xf32>
    %c624 = arith.constant 624 : index
    %c0_155 = arith.constant 0 : index
    %299 = vector.load %arg3[%c624, %c0_155] : memref<680x32xf32, #tpu.memory_space<vmem>>, vector<32x32xf32>
    %cst_156 = arith.constant dense<0.000000e+00> : vector<2x32xf32>
    %300 = tpu.matmul %298, %299, %cst_156 {dimension_numbers = #tpu.dot_dimension_numbers<[1], [0], [0], [1], [0, 0, 1, 1], [], []>} : vector<2x32xf32>, vector<32x32xf32>, vector<2x32xf32> -> vector<2x32xf32>
    %c616 = arith.constant 616 : index
    %c0_157 = arith.constant 0 : index
    %301 = vector.load %arg3[%c616, %c0_157] : memref<680x32xf32, #tpu.memory_space<vmem>>, vector<1x32xf32>
    %302 = vector.broadcast %301 : vector<1x32xf32> to vector<2x32xf32>
    %303 = arith.addf %300, %302 : vector<2x32xf32>
    %cst_158 = arith.constant dense<0.000000e+00> : vector<32xf32>
    %304 = vector.multi_reduction <add>, %303, %cst_158 [0] : vector<2x32xf32> to vector<32xf32>
    %305 = vector.shape_cast %304 : vector<32xf32> to vector<1x32xf32>
    %cst_159 = arith.constant 2.000000e+00 : f32
    %306 = vector.broadcast %cst_159 : f32 to vector<1x32xf32>
    %307 = arith.divf %305, %306 : vector<1x32xf32>
    %308 = vector.broadcast %307 : vector<1x32xf32> to vector<2x32xf32>
    %309 = arith.subf %303, %308 : vector<2x32xf32>
    %310 = arith.mulf %309, %309 : vector<2x32xf32>
    %cst_160 = arith.constant dense<0.000000e+00> : vector<32xf32>
    %311 = vector.multi_reduction <add>, %310, %cst_160 [0] : vector<2x32xf32> to vector<32xf32>
    %312 = vector.shape_cast %311 : vector<32xf32> to vector<1x32xf32>
    %cst_161 = arith.constant 2.000000e+00 : f32
    %313 = vector.broadcast %cst_161 : f32 to vector<1x32xf32>
    %314 = arith.divf %312, %313 : vector<1x32xf32>
    %cst_162 = arith.constant 9.99999974E-6 : f32
    %315 = vector.broadcast %cst_162 : f32 to vector<1x32xf32>
    %316 = arith.addf %314, %315 : vector<1x32xf32>
    %317 = math.rsqrt %316 : vector<1x32xf32>
    %318 = vector.broadcast %317 : vector<1x32xf32> to vector<2x32xf32>
    %319 = arith.mulf %309, %318 : vector<2x32xf32>
    %cst_163 = arith.constant 0.000000e+00 : f32
    %320 = vector.broadcast %cst_163 : f32 to vector<2x32xf32>
    %321 = arith.maximumf %319, %320 : vector<2x32xf32>
    %c8 = arith.constant 8 : index
    %c0_164 = arith.constant 0 : index
    %322 = vector.load %arg0[%c8, %c0_164] : memref<40x1xf32, #tpu.memory_space<vmem>>, vector<32x1xf32>
    %cst_165 = arith.constant dense<0.000000e+00> : vector<2x1xf32>
    %323 = tpu.matmul %321, %322, %cst_165 {dimension_numbers = #tpu.dot_dimension_numbers<[1], [0], [0], [1], [0, 0, 1, 1], [], []>} : vector<2x32xf32>, vector<32x1xf32>, vector<2x1xf32> -> vector<2x1xf32>
    %c0_166 = arith.constant 0 : index
    %c0_167 = arith.constant 0 : index
    %324 = vector.load %arg0[%c0_166, %c0_167] : memref<40x1xf32, #tpu.memory_space<vmem>>, vector<1x1xf32>
    %325 = vector.broadcast %324 : vector<1x1xf32> to vector<2x1xf32>
    %326 = arith.addf %323, %325 : vector<2x1xf32>
    %c0_168 = arith.constant 0 : index
    %c0_169 = arith.constant 0 : index
    %327 = vector.load %arg7[%c0_168, %c0_169] : memref<2x1xf32, #tpu.memory_space<vmem>>, vector<2x1xf32>
    tpu.vector_store %arg7[%c0_168, %c0_169], %326 {strides = array<i32>} : memref<2x1xf32, #tpu.memory_space<vmem>>, vector<2x1xf32>,
    return
  }
}

</mosaic_0001>

<llo_original>
// kernel: forward.1
$region0: #{forward.1}
  #allocation0 [shape = 'u32[]', space=smem, size = 0x4, offset = 0x4, fixed_abs, tag = 'smem constant byte address 0x4 - core index']
  #allocation1 [shape = 'u32[144,128]{1,0:T(1,128)}', space=vmem, size = 0x12000, scoped, tag = 'internal scratch']
  %s0 = inlined_call_operand.vmem [shape: f32[40,1], index: 0, kind: input, shape index: {}]
  %s1 = inlined_call_operand.vmem [shape: f32[456,16], index: 1, kind: input, shape index: {}]
  %s2 = inlined_call_operand.vmem [shape: f32[96,22], index: 2, kind: input, shape index: {}]
  %s3 = inlined_call_operand.vmem [shape: f32[680,32], index: 3, kind: input, shape index: {}]
  %s4 = inlined_call_operand.vmem [shape: f32[312,36], index: 4, kind: input, shape index: {}]
  %s5 = inlined_call_operand.vmem [shape: f32[16,16], index: 5, kind: input, shape index: {}]
  %s6 = inlined_call_operand.vmem [shape: f32[36,16], index: 6, kind: input, shape index: {}]
  %s7 = inlined_call_operand.vmem [shape: f32[2,1], index: 7, kind: output, shape index: {}]
  %s8 = sld [smem:[#allocation0]]
  $region38: #{forward.1} parent=0
    _
  %s10 = ssub.s32 1, %s8
  %s11 = scalar_select 0, %s10, %s8
  // Predicated region
  $region2: #{forward.1} parent=0 // pred_check
    _
  $region3: #{forward.1} parent=0 // pred_check_branch
    %13 = sbr.rel (0) target = $region5
  $region4: #{forward.1} parent=0 // pred_region
    _
  $region5: #{forward.1} parent=0 // pred_fallthru
    _
  // Predicated region
  $region6: #{forward.1} parent=0 // pred_check
    _
  $region7: #{forward.1} parent=0 // pred_check_branch
    %15 = sbr.rel (0) target = $region9
  $region8: #{forward.1} parent=0 // pred_region
    _
  $region9: #{forward.1} parent=0 // pred_fallthru
    _
  // Predicated region
  $region10: #{forward.1} parent=0 // pred_check
    _
  $region11: #{forward.1} parent=0 // pred_check_branch
    %17 = sbr.rel (0) target = $region13
  $region12: #{forward.1} parent=0 // pred_region
    _
  $region13: #{forward.1} parent=0 // pred_fallthru
    _
  // Predicated region
  $region14: #{forward.1} parent=0 // pred_check
    _
  $region15: #{forward.1} parent=0 // pred_check_branch
    %19 = sbr.rel (0) target = $region17
  $region16: #{forward.1} parent=0 // pred_region
    _
  $region17: #{forward.1} parent=0 // pred_fallthru
    _
  // Predicated region
  $region18: #{forward.1} parent=0 // pred_check
    _
  $region19: #{forward.1} parent=0 // pred_check_branch
    %21 = sbr.rel (0) target = $region21
  $region20: #{forward.1} parent=0 // pred_region
    _
  $region21: #{forward.1} parent=0 // pred_fallthru
    _
  // Predicated region
  $region22: #{forward.1} parent=0 // pred_check
    _
  $region23: #{forward.1} parent=0 // pred_check_branch
    %23 = sbr.rel (0) target = $region25
  $region24: #{forward.1} parent=0 // pred_region
    _
  $region25: #{forward.1} parent=0 // pred_fallthru
    _
  // Predicated region
  $region26: #{forward.1} parent=0 // pred_check
    _
  $region27: #{forward.1} parent=0 // pred_check_branch
    %25 = sbr.rel (0) target = $region29
  $region28: #{forward.1} parent=0 // pred_region
    _
  $region29: #{forward.1} parent=0 // pred_fallthru
    _
  %v26 = vld [vmem:[%s5] sm:$0xff]
  %v27 = vld [vmem:[%s5 + $0x8] sm:$0xff]
  %v28 = vld [vmem:[%s6] sm:$0xff]
  %v29 = vld [vmem:[%s6 + $0x8] sm:$0xff]
  %v30 = vld [vmem:[%s6 + $0x10] sm:$0xff]
  %v31 = vld [vmem:[%s6 + $0x18] sm:$0xff]
  %v32 = vld [vmem:[%s6 + $0x20] sm:$0xf]
  %v33 = vld [vmem:[%s1 + $0x80] sm:$0xff]
  %v34 = vld [vmem:[%s1 + $0x88] sm:$0xff]
  %v35 = vld [vmem:[%s1 + $0x90] sm:$0xff]
  %v36 = vld [vmem:[%s1 + $0x98] sm:$0xff]
  %v37 = vld [vmem:[%s1 + $0xa0] sm:$0xf]
  %v38 = vld [vmem:[%s4 + $0x100] sm:$0xff]
  %v39 = vld [vmem:[%s4 + $0x108] sm:$0xff]
  %v40 = vld [vmem:[%s4 + $0x110] sm:$0xff]
  %v41 = vld [vmem:[%s4 + $0x118] sm:$0xff]
  %v42 = vld [vmem:[%s4 + $0x120] sm:$0xf]
  %v43 = vld [vmem:[%s4 + $0xd8] sm:$0xff]
  %v44 = vld [vmem:[%s4 + $0xe0] sm:$0xff]
  %v45 = vld [vmem:[%s4 + $0xe8] sm:$0xff]
  %v46 = vld [vmem:[%s4 + $0xf0] sm:$0xff]
  %v47 = vld [vmem:[%s4 + $0xf8] sm:$0xf]
  %v48 = vld [vmem:[%s4 + $0xb0] sm:$0xff]
  %v49 = vld [vmem:[%s4 + $0xb8] sm:$0xff]
  %v50 = vld [vmem:[%s4 + $0xc0] sm:$0xff]
  %v51 = vld [vmem:[%s4 + $0xc8] sm:$0xff]
  %v52 = vld [vmem:[%s4 + $0xd0] sm:$0xf]
  %v53 = vld [vmem:[%s4 + $0x88] sm:$0xff]
  %v54 = vld [vmem:[%s4 + $0x90] sm:$0xff]
  %v55 = vld [vmem:[%s4 + $0x98] sm:$0xff]
  %v56 = vld [vmem:[%s4 + $0xa0] sm:$0xff]
  %v57 = vld [vmem:[%s4 + $0xa8] sm:$0xf]
  %v58 = vld [vmem:[%s4 + $0x60] sm:$0xff]
  %v59 = vld [vmem:[%s4 + $0x68] sm:$0xff]
  %v60 = vld [vmem:[%s4 + $0x70] sm:$0xff]
  %v61 = vld [vmem:[%s4 + $0x78] sm:$0xff]
  %v62 = vld [vmem:[%s4 + $0x80] sm:$0xf]
  %v63 = vld [vmem:[%s1 + $0x58] sm:$0xff]
  %v64 = vld [vmem:[%s1 + $0x60] sm:$0xff]
  %v65 = vld [vmem:[%s1 + $0x68] sm:$0xff]
  %v66 = vld [vmem:[%s1 + $0x70] sm:$0xff]
  %v67 = vld [vmem:[%s1 + $0x78] sm:$0xf]
  %v68 = vld [vmem:[%s1 + $0x30] sm:$0xff]
  %v69 = vld [vmem:[%s1 + $0x38] sm:$0xff]
  %v70 = vld [vmem:[%s1 + $0x40] sm:$0xff]
  %v71 = vld [vmem:[%s1 + $0x48] sm:$0xff]
  %v72 = vld [vmem:[%s1 + $0x50] sm:$0xf]
  %v73 = vld [vmem:[%s1 + $0x18] sm:$0xff]
  %v74 = vld [vmem:[%s1 + $0x20] sm:$0xff]
  %v75 = vld [vmem:[%s1 + $0x28] sm:$0x3f]
  %v76 = vld [vmem:[%s1] sm:$0xff]
  %v77 = vld [vmem:[%s1 + $0x8] sm:$0xff]
  %v78 = vld [vmem:[%s1 + $0x10] sm:$0x3f]
  %v79 = vld [vmem:[%s4 + $0x48] sm:$0xff]
  %v80 = vld [vmem:[%s4 + $0x50] sm:$0xff]
  %v81 = vld [vmem:[%s4 + $0x58] sm:$0x3f]
  %v82 = vld [vmem:[%s4 + $0x30] sm:$0xff]
  %v83 = vld [vmem:[%s4 + $0x38] sm:$0xff]
  %v84 = vld [vmem:[%s4 + $0x40] sm:$0x3f]
  %v85 = vld [vmem:[%s4 + $0x18] sm:$0xff]
  %v86 = vld [vmem:[%s4 + $0x20] sm:$0xff]
  %v87 = vld [vmem:[%s4 + $0x28] sm:$0x3f]
  %v88 = vld [vmem:[%s4] sm:$0xff]
  %v89 = vld [vmem:[%s4 + $0x8] sm:$0xff]
  %v90 = vld [vmem:[%s4 + $0x10] sm:$0x3f]
  %v91 = vld [vmem:[%s2 + $0x28] sm:$0xff]
  %v92 = vld [vmem:[%s2 + $0x30] sm:$0xff]
  %v93 = vld [vmem:[%s2 + $0x38] sm:$0xff]
  %v94 = vld [vmem:[%s2 + $0x40] sm:$0xff]
  %v95 = vld [vmem:[%s2 + $0x48] sm:$0xf]
  %v96 = vld [vmem:[%s2] sm:$0xff]
  %v97 = vld [vmem:[%s2 + $0x8] sm:$0xff]
  %v98 = vld [vmem:[%s2 + $0x10] sm:$0xff]
  %v99 = vld [vmem:[%s2 + $0x18] sm:$0xff]
  %v100 = vld [vmem:[%s2 + $0x20] sm:$0xf]
  %v101 = vld [vmem:[%s4 + $0x128] sm:$0xff]
  %v102 = vld [vmem:[%s4 + $0x130] sm:$0xff]
  %v103 = vld [vmem:[%s2 + $0x50] sm:$0xff]
  %v104 = vld [vmem:[%s2 + $0x58] sm:$0xff]
  %v105 = vld [vmem:[%s1 + $0xa8] sm:$0x3]
  %vm106 = vcmask 130048
  %v108 = vsel %vm106, %v33, 0
  %v111 = vsel %vm106, %v34, 0
  %v114 = vsel %vm106, %v35, 0
  %v117 = vsel %vm106, %v36, 0
  %v120 = vsel %vm106, %v37, 0
  %122 = vmatprep.subr.mxu0 0.0
  %123 = vmatpush1.msra.mxu0 %v26
  %124 = vmatprep.subr.mxu0 0.0
  %125 = vmatpush1.msra.mxu0 %v27
  %126 = vmatprep.subr.mxu0 0.0
  %127 = vmatpush1.msra.mxu0 0.0
  %128 = vmatprep.subr.mxu0 0.0
  %129 = vmatpush1.msra.mxu0 0.0
  %130 = vmatprep.subr.mxu0 0.0
  %131 = vmatpush1.msra.mxu0 0.0
  %132 = vmatprep.subr.mxu0 0.0
  %133 = vmatpush1.msra.mxu0 0.0
  %134 = vmatprep.subr.mxu0 0.0
  %135 = vmatpush1.msra.mxu0 0.0
  %136 = vmatprep.subr.mxu0 0.0
  %137 = vmatpush1.msra.mxu0 0.0
  %138 = vmatprep.subr.mxu0 0.0
  %139 = vmatpush1.msra.mxu0 0.0
  %140 = vmatprep.subr.mxu0 0.0
  %141 = vmatpush1.msra.mxu0 0.0
  %142 = vmatprep.subr.mxu0 0.0
  %143 = vmatpush1.msra.mxu0 0.0
  %144 = vmatprep.subr.mxu0 0.0
  %145 = vmatpush1.msra.mxu0 0.0
  %146 = vmatprep.subr.mxu0 0.0
  %147 = vmatpush1.msra.mxu0 0.0
  %148 = vmatprep.subr.mxu0 0.0
  %149 = vmatpush1.msra.mxu0 0.0
  %150 = vmatprep.subr.mxu0 0.0
  %151 = vmatpush1.msra.mxu0 0.0
  %152 = vmatprep.subr.mxu0 0.0
  %153 = vmatpush1.msra.mxu0 0.0
  %154 = vmatprep.subr.mxu0 0.0
  %155 = vmatpush1.msra.mxu0 0.0
  %156 = vmatprep.subr.mxu0 0.0
  %157 = vmatpush1.msra.mxu0 0.0
  %158 = vmatprep.subr.mxu0 0.0
  %159 = vmatpush1.msra.mxu0 0.0
  %160 = vmatprep.subr.mxu0 0.0
  %161 = vmatpush1.msra.mxu0 0.0
  %162 = vmatprep.subr.mxu0 0.0
  %163 = vmatpush1.msra.mxu0 0.0
  %164 = vmatprep.subr.mxu0 0.0
  %165 = vmatpush1.msra.mxu0 0.0
  %166 = vmatprep.subr.mxu0 0.0
  %167 = vmatpush1.msra.mxu0 0.0
  %168 = vmatprep.subr.mxu0 0.0
  %169 = vmatpush1.msra.mxu0 0.0
  %170 = vmatprep.subr.mxu0 0.0
  %171 = vmatpush1.msra.mxu0 0.0
  %172 = vmatprep.subr.mxu0 0.0
  %173 = vmatpush1.msra.mxu0 0.0
  %174 = vmatprep.subr.mxu0 0.0
  %175 = vmatpush1.msra.mxu0 0.0
  %176 = vmatprep.subr.mxu0 0.0
  %177 = vmatpush1.msra.mxu0 0.0
  %178 = vmatprep.subr.mxu0 0.0
  %179 = vmatpush1.msra.mxu0 0.0
  %180 = vmatprep.subr.mxu0 0.0
  %181 = vmatpush1.msra.mxu0 0.0
  %182 = vmatprep.subr.mxu0 0.0
  %183 = vmatpush1.msra.mxu0 0.0
  %184 = vmatprep.subr.mxu0 0.0
  %185 = vmatpush1.msra.mxu0 0.0
  %186 = vmatprep.mubr.f32.mxu0 0.0
  %187 = vmatmul.mubr.f32.gmra.mrb[0].mxu0 %v108
  %v188 = vpop.f32.mrb[0].mxu0
  %v189 = vadd.f32 0.0, %v188
  %v190 = vpop.f32.mrb[0].mxu0
  %191 = vmatprep.mubr.f32.mxu0 0.0
  %192 = vmatmul.mubr.f32.gmra.mrb[0].mxu0 %v111
  %v193 = vpop.f32.mrb[0].mxu0
  %v194 = vadd.f32 0.0, %v193
  %v195 = vpop.f32.mrb[0].mxu0
  %196 = vmatprep.mubr.f32.mxu0 0.0
  %197 = vmatmul.mubr.f32.gmra.mrb[0].mxu0 %v114
  %v198 = vpop.f32.mrb[0].mxu0
  %v199 = vadd.f32 0.0, %v198
  %v200 = vpop.f32.mrb[0].mxu0
  %201 = vmatprep.mubr.f32.mxu0 0.0
  %202 = vmatmul.mubr.f32.gmra.mrb[0].mxu0 %v117
  %v203 = vpop.f32.mrb[0].mxu0
  %v204 = vadd.f32 0.0, %v203
  %v205 = vpop.f32.mrb[0].mxu0
  %206 = vmatprep.mubr.f32.mxu0 0.0
  %207 = vmatmul.mubr.f32.gmra.mrb[0].mxu0 %v120
  %v208 = vpop.f32.mrb[0].mxu0
  %v209 = vadd.f32 0.0, %v208
  %v210 = vpop.f32.mrb[0].mxu0
  %211 = vdwg.mxu0
  %vm212 = vcmask 293888
  %v214 = vsel %vm212, %v38, 0
  %v217 = vsel %vm212, %v39, 0
  %v220 = vsel %vm212, %v40, 0
  %v223 = vsel %vm212, %v41, 0
  %v226 = vsel %vm212, %v42, 0
  %vm228 = vcmask 1043456
  %v230 = vsel %vm228, %v32, 0
  %232 = vmatprep.subr.mxu0 0.0
  %233 = vmatpush1.msra.mxu0 %v28
  %234 = vmatprep.subr.mxu0 0.0
  %235 = vmatpush1.msra.mxu0 %v29
  %236 = vmatprep.subr.mxu0 0.0
  %237 = vmatpush1.msra.mxu0 %v30
  %238 = vmatprep.subr.mxu0 0.0
  %239 = vmatpush1.msra.mxu0 %v31
  %240 = vmatprep.subr.mxu0 0.0
  %241 = vmatpush1.msra.mxu0 %v230
  %242 = vmatprep.subr.mxu0 0.0
  %243 = vmatpush1.msra.mxu0 0.0
  %244 = vmatprep.subr.mxu0 0.0
  %245 = vmatpush1.msra.mxu0 0.0
  %246 = vmatprep.subr.mxu0 0.0
  %247 = vmatpush1.msra.mxu0 0.0
  %248 = vmatprep.subr.mxu0 0.0
  %249 = vmatpush1.msra.mxu0 0.0
  %250 = vmatprep.subr.mxu0 0.0
  %251 = vmatpush1.msra.mxu0 0.0
  %252 = vmatprep.subr.mxu0 0.0
  %253 = vmatpush1.msra.mxu0 0.0
  %254 = vmatprep.subr.mxu0 0.0
  %255 = vmatpush1.msra.mxu0 0.0
  %256 = vmatprep.subr.mxu0 0.0
  %257 = vmatpush1.msra.mxu0 0.0
  %258 = vmatprep.subr.mxu0 0.0
  %259 = vmatpush1.msra.mxu0 0.0
  %260 = vmatprep.subr.mxu0 0.0
  %261 = vmatpush1.msra.mxu0 0.0
  %262 = vmatprep.subr.mxu0 0.0
  %263 = vmatpush1.msra.mxu0 0.0
  %264 = vmatprep.subr.mxu0 0.0
  %265 = vmatpush1.msra.mxu0 0.0
  %266 = vmatprep.subr.mxu0 0.0
  %267 = vmatpush1.msra.mxu0 0.0
  %268 = vmatprep.subr.mxu0 0.0
  %269 = vmatpush1.msra.mxu0 0.0
  %270 = vmatprep.subr.mxu0 0.0
  %271 = vmatpush1.msra.mxu0 0.0
  %272 = vmatprep.subr.mxu0 0.0
  %273 = vmatpush1.msra.mxu0 0.0
  %274 = vmatprep.subr.mxu0 0.0
  %275 = vmatpush1.msra.mxu0 0.0
  %276 = vmatprep.subr.mxu0 0.0
  %277 = vmatpush1.msra.mxu0 0.0
  %278 = vmatprep.subr.mxu0 0.0
  %279 = vmatpush1.msra.mxu0 0.0
  %280 = vmatprep.subr.mxu0 0.0
  %281 = vmatpush1.msra.mxu0 0.0
  %282 = vmatprep.subr.mxu0 0.0
  %283 = vmatpush1.msra.mxu0 0.0
  %284 = vmatprep.subr.mxu0 0.0
  %285 = vmatpush1.msra.mxu0 0.0
  %286 = vmatprep.subr.mxu0 0.0
  %287 = vmatpush1.msra.mxu0 0.0
  %288 = vmatprep.subr.mxu0 0.0
  %289 = vmatpush1.msra.mxu0 0.0
  %290 = vmatprep.subr.mxu0 0.0
  %291 = vmatpush1.msra.mxu0 0.0
  %292 = vmatprep.subr.mxu0 0.0
  %293 = vmatpush1.msra.mxu0 0.0
  %294 = vmatprep.subr.mxu0 0.0
  %295 = vmatpush1.msra.mxu0 0.0
  %296 = vmatprep.mubr.f32.mxu0 0.0
  %297 = vmatmul.mubr.f32.gmra.mrb[0].mxu0 %v214
  %v298 = vpop.f32.mrb[0].mxu0
  %v299 = vadd.f32 0.0, %v298
  %v300 = vpop.f32.mrb[0].mxu0
  %301 = vmatprep.mubr.f32.mxu0 0.0
  %302 = vmatmul.mubr.f32.gmra.mrb[0].mxu0 %v217
  %v303 = vpop.f32.mrb[0].mxu0
  %v304 = vadd.f32 0.0, %v303
  %v305 = vpop.f32.mrb[0].mxu0
  %306 = vmatprep.mubr.f32.mxu0 0.0
  %307 = vmatmul.mubr.f32.gmra.mrb[0].mxu0 %v220
  %v308 = vpop.f32.mrb[0].mxu0
  %v309 = vadd.f32 0.0, %v308
  %v310 = vpop.f32.mrb[0].mxu0
  %311 = vmatprep.mubr.f32.mxu0 0.0
  %312 = vmatmul.mubr.f32.gmra.mrb[0].mxu0 %v223
  %v313 = vpop.f32.mrb[0].mxu0
  %v314 = vadd.f32 0.0, %v313
  %v315 = vpop.f32.mrb[0].mxu0
  %316 = vmatprep.mubr.f32.mxu0 0.0
  %317 = vmatmul.mubr.f32.gmra.mrb[0].mxu0 %v226
  %v318 = vpop.f32.mrb[0].mxu0
  %v319 = vadd.f32 0.0, %v318
  %v320 = vpop.f32.mrb[0].mxu0
  %321 = vdwg.mxu0
  %327 = vrot.lane.b32.xlu0 %v299, 16
  %v328 = vpop.permute.xlu0 %327
  %329 = vrot.lane.b32.xlu0 %v304, 16
  %v330 = vpop.permute.xlu0 %329
  %331 = vrot.lane.b32.xlu0 %v309, 16
  %v332 = vpop.permute.xlu0 %331
  %333 = vrot.lane.b32.xlu0 %v314, 16
  %v334 = vpop.permute.xlu0 %333
  %335 = vrot.lane.b32.xlu0 %v319, 16
  %v336 = vpop.permute.xlu0 %335
  %v342 = vsel %vm106, %v189, %v328
  %v343 = vsel %vm106, %v194, %v330
  %v344 = vsel %vm106, %v199, %v332
  %v345 = vsel %vm106, %v204, %v334
  %v346 = vsel %vm106, %v209, %v336
  %v347 = vld [vmem:[%s3 + $0x210] sm:$0xff]
  %v348 = vld [vmem:[%s3 + $0x218] sm:$0xff]
  %v349 = vld [vmem:[%s3 + $0x220] sm:$0xff]
  %v350 = vld [vmem:[%s3 + $0x228] sm:$0xff]
  %v351 = vld [vmem:[%s3 + $0x208] sm:$0x1]
  %v352 = vlaneseq
  %v353 = vshrl.u32 %v352, 7
  %v354 = vsub.s32 0, %v353
  %v355 = vrot.slane %v351, %v354
  %vm356 = vcmask 261120
  %v358 = vsel %vm356, %v342, 0
  %v361 = vsel %vm356, %v343, 0
  %v364 = vsel %vm356, %v344, 0
  %v367 = vsel %vm356, %v345, 0
  %v370 = vsel %vm356, %v346, 0
  %372 = vmatprep.subr.mxu0 0.0
  %373 = vmatpush1.msra.mxu0 %v347
  %374 = vmatprep.subr.mxu0 0.0
  %375 = vmatpush1.msra.mxu0 %v348
  %376 = vmatprep.subr.mxu0 0.0
  %377 = vmatpush1.msra.mxu0 %v349
  %378 = vmatprep.subr.mxu0 0.0
  %379 = vmatpush1.msra.mxu0 %v350
  %380 = vmatprep.subr.mxu0 0.0
  %381 = vmatpush1.msra.mxu0 0.0
  %382 = vmatprep.subr.mxu0 0.0
  %383 = vmatpush1.msra.mxu0 0.0
  %384 = vmatprep.subr.mxu0 0.0
  %385 = vmatpush1.msra.mxu0 0.0
  %386 = vmatprep.subr.mxu0 0.0
  %387 = vmatpush1.msra.mxu0 0.0
  %388 = vmatprep.subr.mxu0 0.0
  %389 = vmatpush1.msra.mxu0 0.0
  %390 = vmatprep.subr.mxu0 0.0
  %391 = vmatpush1.msra.mxu0 0.0
  %392 = vmatprep.subr.mxu0 0.0
  %393 = vmatpush1.msra.mxu0 0.0
  %394 = vmatprep.subr.mxu0 0.0
  %395 = vmatpush1.msra.mxu0 0.0
  %396 = vmatprep.subr.mxu0 0.0
  %397 = vmatpush1.msra.mxu0 0.0
  %398 = vmatprep.subr.mxu0 0.0
  %399 = vmatpush1.msra.mxu0 0.0
  %400 = vmatprep.subr.mxu0 0.0
  %401 = vmatpush1.msra.mxu0 0.0
  %402 = vmatprep.subr.mxu0 0.0
  %403 = vmatpush1.msra.mxu0 0.0
  %404 = vmatprep.subr.mxu0 0.0
  %405 = vmatpush1.msra.mxu0 0.0
  %406 = vmatprep.subr.mxu0 0.0
  %407 = vmatpush1.msra.mxu0 0.0
  %408 = vmatprep.subr.mxu0 0.0
  %409 = vmatpush1.msra.mxu0 0.0
  %410 = vmatprep.subr.mxu0 0.0
  %411 = vmatpush1.msra.mxu0 0.0
  %412 = vmatprep.subr.mxu0 0.0
  %413 = vmatpush1.msra.mxu0 0.0
  %414 = vmatprep.subr.mxu0 0.0
  %415 = vmatpush1.msra.mxu0 0.0
  %416 = vmatprep.subr.mxu0 0.0
  %417 = vmatpush1.msra.mxu0 0.0
  %418 = vmatprep.subr.mxu0 0.0
  %419 = vmatpush1.msra.mxu0 0.0
  %420 = vmatprep.subr.mxu0 0.0
  %421 = vmatpush1.msra.mxu0 0.0
  %422 = vmatprep.subr.mxu0 0.0
  %423 = vmatpush1.msra.mxu0 0.0
  %424 = vmatprep.subr.mxu0 0.0
  %425 = vmatpush1.msra.mxu0 0.0
  %426 = vmatprep.subr.mxu0 0.0
  %427 = vmatpush1.msra.mxu0 0.0
  %428 = vmatprep.subr.mxu0 0.0
  %429 = vmatpush1.msra.mxu0 0.0
  %430 = vmatprep.subr.mxu0 0.0
  %431 = vmatpush1.msra.mxu0 0.0
  %432 = vmatprep.subr.mxu0 0.0
  %433 = vmatpush1.msra.mxu0 0.0
  %434 = vmatprep.subr.mxu0 0.0
  %435 = vmatpush1.msra.mxu0 0.0
  %436 = vmatprep.mubr.f32.mxu0 0.0
  %437 = vmatmul.mubr.f32.gmra.mrb[0].mxu0 %v358
  %v438 = vpop.f32.mrb[0].mxu0
  %v439 = vadd.f32 %v355, %v438
  %v440 = vpop.f32.mrb[0].mxu0
  %441 = vmatprep.mubr.f32.mxu0 0.0
  %442 = vmatmul.mubr.f32.gmra.mrb[0].mxu0 %v361
  %v443 = vpop.f32.mrb[0].mxu0
  %v444 = vadd.f32 %v355, %v443
  %v445 = vpop.f32.mrb[0].mxu0
  %446 = vmatprep.mubr.f32.mxu0 0.0
  %447 = vmatmul.mubr.f32.gmra.mrb[0].mxu0 %v364
  %v448 = vpop.f32.mrb[0].mxu0
  %v449 = vadd.f32 %v355, %v448
  %v450 = vpop.f32.mrb[0].mxu0
  %451 = vmatprep.mubr.f32.mxu0 0.0
  %452 = vmatmul.mubr.f32.gmra.mrb[0].mxu0 %v367
  %v453 = vpop.f32.mrb[0].mxu0
  %v454 = vadd.f32 %v355, %v453
  %v455 = vpop.f32.mrb[0].mxu0
  %456 = vmatprep.mubr.f32.mxu0 0.0
  %457 = vmatmul.mubr.f32.gmra.mrb[0].mxu0 %v370
  %v458 = vpop.f32.mrb[0].mxu0
  %v459 = vadd.f32 %v355, %v458
  %v460 = vpop.f32.mrb[0].mxu0
  %461 = vdwg.mxu0
  %v462 = vmax.f32 %v439, 0.0
  %v463 = vmax.f32 %v444, 0.0
  %v464 = vmax.f32 %v449, 0.0
  %v465 = vmax.f32 %v454, 0.0
  %v466 = vmax.f32 %v459, 0.0
  %v467 = vld [vmem:[%s1 + $0x180] sm:$0xff]
  %v468 = vld [vmem:[%s1 + $0x188] sm:$0xff]
  %v469 = vld [vmem:[%s1 + $0x190] sm:$0xff]
  %v470 = vld [vmem:[%s1 + $0x198] sm:$0xff]
  %v471 = vld [vmem:[%s1 + $0x178] sm:$0x1]
  %v472 = vlaneseq
  %v473 = vshrl.u32 %v472, 7
  %v474 = vsub.s32 0, %v473
  %v475 = vrot.slane %v471, %v474
  %v477 = vsel %vm356, %v462, 0
  %v480 = vsel %vm356, %v463, 0
  %v483 = vsel %vm356, %v464, 0
  %v486 = vsel %vm356, %v465, 0
  %v489 = vsel %vm356, %v466, 0
  %491 = vmatprep.subr.mxu0 0.0
  %492 = vmatpush1.msra.mxu0 %v467
  %493 = vmatprep.subr.mxu0 0.0
  %494 = vmatpush1.msra.mxu0 %v468
  %495 = vmatprep.subr.mxu0 0.0
  %496 = vmatpush1.msra.mxu0 %v469
  %497 = vmatprep.subr.mxu0 0.0
  %498 = vmatpush1.msra.mxu0 %v470
  %499 = vmatprep.subr.mxu0 0.0
  %500 = vmatpush1.msra.mxu0 0.0
  %501 = vmatprep.subr.mxu0 0.0
  %502 = vmatpush1.msra.mxu0 0.0
  %503 = vmatprep.subr.mxu0 0.0
  %504 = vmatpush1.msra.mxu0 0.0
  %505 = vmatprep.subr.mxu0 0.0
  %506 = vmatpush1.msra.mxu0 0.0
  %507 = vmatprep.subr.mxu0 0.0
  %508 = vmatpush1.msra.mxu0 0.0
  %509 = vmatprep.subr.mxu0 0.0
  %510 = vmatpush1.msra.mxu0 0.0
  %511 = vmatprep.subr.mxu0 0.0
  %512 = vmatpush1.msra.mxu0 0.0
  %513 = vmatprep.subr.mxu0 0.0
  %514 = vmatpush1.msra.mxu0 0.0
  %515 = vmatprep.subr.mxu0 0.0
  %516 = vmatpush1.msra.mxu0 0.0
  %517 = vmatprep.subr.mxu0 0.0
  %518 = vmatpush1.msra.mxu0 0.0
  %519 = vmatprep.subr.mxu0 0.0
  %520 = vmatpush1.msra.mxu0 0.0
  %521 = vmatprep.subr.mxu0 0.0
  %522 = vmatpush1.msra.mxu0 0.0
  %523 = vmatprep.subr.mxu0 0.0
  %524 = vmatpush1.msra.mxu0 0.0
  %525 = vmatprep.subr.mxu0 0.0
  %526 = vmatpush1.msra.mxu0 0.0
  %527 = vmatprep.subr.mxu0 0.0
  %528 = vmatpush1.msra.mxu0 0.0
  %529 = vmatprep.subr.mxu0 0.0
  %530 = vmatpush1.msra.mxu0 0.0
  %531 = vmatprep.subr.mxu0 0.0
  %532 = vmatpush1.msra.mxu0 0.0
  %533 = vmatprep.subr.mxu0 0.0
  %534 = vmatpush1.msra.mxu0 0.0
  %535 = vmatprep.subr.mxu0 0.0
  %536 = vmatpush1.msra.mxu0 0.0
  %537 = vmatprep.subr.mxu0 0.0
  %538 = vmatpush1.msra.mxu0 0.0
  %539 = vmatprep.subr.mxu0 0.0
  %540 = vmatpush1.msra.mxu0 0.0
  %541 = vmatprep.subr.mxu0 0.0
  %542 = vmatpush1.msra.mxu0 0.0
  %543 = vmatprep.subr.mxu0 0.0
  %544 = vmatpush1.msra.mxu0 0.0
  %545 = vmatprep.subr.mxu0 0.0
  %546 = vmatpush1.msra.mxu0 0.0
  %547 = vmatprep.subr.mxu0 0.0
  %548 = vmatpush1.msra.mxu0 0.0
  %549 = vmatprep.subr.mxu0 0.0
  %550 = vmatpush1.msra.mxu0 0.0
  %551 = vmatprep.subr.mxu0 0.0
  %552 = vmatpush1.msra.mxu0 0.0
  %553 = vmatprep.subr.mxu0 0.0
  %554 = vmatpush1.msra.mxu0 0.0
  %555 = vmatprep.mubr.f32.mxu0 0.0
  %556 = vmatmul.mubr.f32.gmra.mrb[0].mxu0 %v477
  %v557 = vpop.f32.mrb[0].mxu0
  %v558 = vadd.f32 %v475, %v557
  %v559 = vpop.f32.mrb[0].mxu0
  %560 = vmatprep.mubr.f32.mxu0 0.0
  %561 = vmatmul.mubr.f32.gmra.mrb[0].mxu0 %v480
  %v562 = vpop.f32.mrb[0].mxu0
  %v563 = vadd.f32 %v475, %v562
  %v564 = vpop.f32.mrb[0].mxu0
  %565 = vmatprep.mubr.f32.mxu0 0.0
  %566 = vmatmul.mubr.f32.gmra.mrb[0].mxu0 %v483
  %v567 = vpop.f32.mrb[0].mxu0
  %v568 = vadd.f32 %v475, %v567
  %v569 = vpop.f32.mrb[0].mxu0
  %570 = vmatprep.mubr.f32.mxu0 0.0
  %571 = vmatmul.mubr.f32.gmra.mrb[0].mxu0 %v486
  %v572 = vpop.f32.mrb[0].mxu0
  %v573 = vadd.f32 %v475, %v572
  %v574 = vpop.f32.mrb[0].mxu0
  %575 = vmatprep.mubr.f32.mxu0 0.0
  %576 = vmatmul.mubr.f32.gmra.mrb[0].mxu0 %v489
  %v577 = vpop.f32.mrb[0].mxu0
  %v578 = vadd.f32 %v475, %v577
  %v579 = vpop.f32.mrb[0].mxu0
  %580 = vdwg.mxu0
  %v581 = vmax.f32 %v558, 0.0
  %v582 = vmax.f32 %v563, 0.0
  %v583 = vmax.f32 %v568, 0.0
  %v584 = vmax.f32 %v573, 0.0
  %v585 = vmax.f32 %v578, 0.0
  %v587 = vsel %vm106, %v73, 0
  %v590 = vsel %vm106, %v74, 0
  %v593 = vsel %vm106, %v75, 0
  %595 = vmatprep.subr.mxu0 0.0
  %596 = vmatpush1.msra.mxu0 %v26
  %597 = vmatprep.subr.mxu0 0.0
  %598 = vmatpush1.msra.mxu0 %v27
  %599 = vmatprep.subr.mxu0 0.0
  %600 = vmatpush1.msra.mxu0 0.0
  %601 = vmatprep.subr.mxu0 0.0
  %602 = vmatpush1.msra.mxu0 0.0
  %603 = vmatprep.subr.mxu0 0.0
  %604 = vmatpush1.msra.mxu0 0.0
  %605 = vmatprep.subr.mxu0 0.0
  %606 = vmatpush1.msra.mxu0 0.0
  %607 = vmatprep.subr.mxu0 0.0
  %608 = vmatpush1.msra.mxu0 0.0
  %609 = vmatprep.subr.mxu0 0.0
  %610 = vmatpush1.msra.mxu0 0.0
  %611 = vmatprep.subr.mxu0 0.0
  %612 = vmatpush1.msra.mxu0 0.0
  %613 = vmatprep.subr.mxu0 0.0
  %614 = vmatpush1.msra.mxu0 0.0
  %615 = vmatprep.subr.mxu0 0.0
  %616 = vmatpush1.msra.mxu0 0.0
  %617 = vmatprep.subr.mxu0 0.0
  %618 = vmatpush1.msra.mxu0 0.0
  %619 = vmatprep.subr.mxu0 0.0
  %620 = vmatpush1.msra.mxu0 0.0
  %621 = vmatprep.subr.mxu0 0.0
  %622 = vmatpush1.msra.mxu0 0.0
  %623 = vmatprep.subr.mxu0 0.0
  %624 = vmatpush1.msra.mxu0 0.0
  %625 = vmatprep.subr.mxu0 0.0
  %626 = vmatpush1.msra.mxu0 0.0
  %627 = vmatprep.subr.mxu0 0.0
  %628 = vmatpush1.msra.mxu0 0.0
  %629 = vmatprep.subr.mxu0 0.0
  %630 = vmatpush1.msra.mxu0 0.0
  %631 = vmatprep.subr.mxu0 0.0
  %632 = vmatpush1.msra.mxu0 0.0
  %633 = vmatprep.subr.mxu0 0.0
  %634 = vmatpush1.msra.mxu0 0.0
  %635 = vmatprep.subr.mxu0 0.0
  %636 = vmatpush1.msra.mxu0 0.0
  %637 = vmatprep.subr.mxu0 0.0
  %638 = vmatpush1.msra.mxu0 0.0
  %639 = vmatprep.subr.mxu0 0.0
  %640 = vmatpush1.msra.mxu0 0.0
  %641 = vmatprep.subr.mxu0 0.0
  %642 = vmatpush1.msra.mxu0 0.0
  %643 = vmatprep.subr.mxu0 0.0
  %644 = vmatpush1.msra.mxu0 0.0
  %645 = vmatprep.subr.mxu0 0.0
  %646 = vmatpush1.msra.mxu0 0.0
  %647 = vmatprep.subr.mxu0 0.0
  %648 = vmatpush1.msra.mxu0 0.0
  %649 = vmatprep.subr.mxu0 0.0
  %650 = vmatpush1.msra.mxu0 0.0
  %651 = vmatprep.subr.mxu0 0.0
  %652 = vmatpush1.msra.mxu0 0.0
  %653 = vmatprep.subr.mxu0 0.0
  %654 = vmatpush1.msra.mxu0 0.0
  %655 = vmatprep.subr.mxu0 0.0
  %656 = vmatpush1.msra.mxu0 0.0
  %657 = vmatprep.subr.mxu0 0.0
  %658 = vmatpush1.msra.mxu0 0.0
  %659 = vmatprep.mubr.f32.mxu0 0.0
  %660 = vmatmul.mubr.f32.gmra.mrb[0].mxu0 %v587
  %v661 = vpop.f32.mrb[0].mxu0
  %v662 = vadd.f32 0.0, %v661
  %v663 = vpop.f32.mrb[0].mxu0
  %664 = vmatprep.mubr.f32.mxu0 0.0
  %665 = vmatmul.mubr.f32.gmra.mrb[0].mxu0 %v590
  %v666 = vpop.f32.mrb[0].mxu0
  %v667 = vadd.f32 0.0, %v666
  %v668 = vpop.f32.mrb[0].mxu0
  %669 = vmatprep.mubr.f32.mxu0 0.0
  %670 = vmatmul.mubr.f32.gmra.mrb[0].mxu0 %v593
  %v671 = vpop.f32.mrb[0].mxu0
  %v672 = vadd.f32 0.0, %v671
  %v673 = vpop.f32.mrb[0].mxu0
  %674 = vdwg.mxu0
  %v676 = vsel %vm106, %v76, 0
  %v679 = vsel %vm106, %v77, 0
  %v682 = vsel %vm106, %v78, 0
  %684 = vmatprep.subr.mxu0 0.0
  %685 = vmatpush1.msra.mxu0 %v26
  %686 = vmatprep.subr.mxu0 0.0
  %687 = vmatpush1.msra.mxu0 %v27
  %688 = vmatprep.subr.mxu0 0.0
  %689 = vmatpush1.msra.mxu0 0.0
  %690 = vmatprep.subr.mxu0 0.0
  %691 = vmatpush1.msra.mxu0 0.0
  %692 = vmatprep.subr.mxu0 0.0
  %693 = vmatpush1.msra.mxu0 0.0
  %694 = vmatprep.subr.mxu0 0.0
  %695 = vmatpush1.msra.mxu0 0.0
  %696 = vmatprep.subr.mxu0 0.0
  %697 = vmatpush1.msra.mxu0 0.0
  %698 = vmatprep.subr.mxu0 0.0
  %699 = vmatpush1.msra.mxu0 0.0
  %700 = vmatprep.subr.mxu0 0.0
  %701 = vmatpush1.msra.mxu0 0.0
  %702 = vmatprep.subr.mxu0 0.0
  %703 = vmatpush1.msra.mxu0 0.0
  %704 = vmatprep.subr.mxu0 0.0
  %705 = vmatpush1.msra.mxu0 0.0
  %706 = vmatprep.subr.mxu0 0.0
  %707 = vmatpush1.msra.mxu0 0.0
  %708 = vmatprep.subr.mxu0 0.0
  %709 = vmatpush1.msra.mxu0 0.0
  %710 = vmatprep.subr.mxu0 0.0
  %711 = vmatpush1.msra.mxu0 0.0
  %712 = vmatprep.subr.mxu0 0.0
  %713 = vmatpush1.msra.mxu0 0.0
  %714 = vmatprep.subr.mxu0 0.0
  %715 = vmatpush1.msra.mxu0 0.0
  %716 = vmatprep.subr.mxu0 0.0
  %717 = vmatpush1.msra.mxu0 0.0
  %718 = vmatprep.subr.mxu0 0.0
  %719 = vmatpush1.msra.mxu0 0.0
  %720 = vmatprep.subr.mxu0 0.0
  %721 = vmatpush1.msra.mxu0 0.0
  %722 = vmatprep.subr.mxu0 0.0
  %723 = vmatpush1.msra.mxu0 0.0
  %724 = vmatprep.subr.mxu0 0.0
  %725 = vmatpush1.msra.mxu0 0.0
  %726 = vmatprep.subr.mxu0 0.0
  %727 = vmatpush1.msra.mxu0 0.0
  %728 = vmatprep.subr.mxu0 0.0
  %729 = vmatpush1.msra.mxu0 0.0
  %730 = vmatprep.subr.mxu0 0.0
  %731 = vmatpush1.msra.mxu0 0.0
  %732 = vmatprep.subr.mxu0 0.0
  %733 = vmatpush1.msra.mxu0 0.0
  %734 = vmatprep.subr.mxu0 0.0
  %735 = vmatpush1.msra.mxu0 0.0
  %736 = vmatprep.subr.mxu0 0.0
  %737 = vmatpush1.msra.mxu0 0.0
  %738 = vmatprep.subr.mxu0 0.0
  %739 = vmatpush1.msra.mxu0 0.0
  %740 = vmatprep.subr.mxu0 0.0
  %741 = vmatpush1.msra.mxu0 0.0
  %742 = vmatprep.subr.mxu0 0.0
  %743 = vmatpush1.msra.mxu0 0.0
  %744 = vmatprep.subr.mxu0 0.0
  %745 = vmatpush1.msra.mxu0 0.0
  %746 = vmatprep.subr.mxu0 0.0
  %747 = vmatpush1.msra.mxu0 0.0
  %748 = vmatprep.mubr.f32.mxu0 0.0
  %749 = vmatmul.mubr.f32.gmra.mrb[0].mxu0 %v676
  %v750 = vpop.f32.mrb[0].mxu0
  %v751 = vadd.f32 0.0, %v750
  %v752 = vpop.f32.mrb[0].mxu0
  %753 = vmatprep.mubr.f32.mxu0 0.0
  %754 = vmatmul.mubr.f32.gmra.mrb[0].mxu0 %v679
  %v755 = vpop.f32.mrb[0].mxu0
  %v756 = vadd.f32 0.0, %v755
  %v757 = vpop.f32.mrb[0].mxu0
  %758 = vmatprep.mubr.f32.mxu0 0.0
  %759 = vmatmul.mubr.f32.gmra.mrb[0].mxu0 %v682
  %v760 = vpop.f32.mrb[0].mxu0
  %v761 = vadd.f32 0.0, %v760
  %v762 = vpop.f32.mrb[0].mxu0
  %763 = vdwg.mxu0
  %767 = vrot.lane.b32.xlu0 %v751, 16
  %v768 = vpop.permute.xlu0 %767
  %769 = vrot.lane.b32.xlu0 %v756, 16
  %v770 = vpop.permute.xlu0 %769
  %771 = vrot.lane.b32.xlu0 %v761, 16
  %v772 = vpop.permute.xlu0 %771
  %v776 = vsel %vm106, %v662, %v768
  %v777 = vsel %vm106, %v667, %v770
  %v778 = vsel %vm106, %v672, %v772
  %v779 = vld [vmem:[%s3 + $0x1e8] sm:$0xff]
  %v780 = vld [vmem:[%s3 + $0x1f0] sm:$0xff]
  %v781 = vld [vmem:[%s3 + $0x1f8] sm:$0xff]
  %v782 = vld [vmem:[%s3 + $0x200] sm:$0xff]
  %v783 = vld [vmem:[%s3 + $0x1e0] sm:$0x1]
  %v784 = vlaneseq
  %v785 = vshrl.u32 %v784, 7
  %v786 = vsub.s32 0, %v785
  %v787 = vrot.slane %v783, %v786
  %v789 = vsel %vm356, %v776, 0
  %v792 = vsel %vm356, %v777, 0
  %v795 = vsel %vm356, %v778, 0
  %797 = vmatprep.subr.mxu0 0.0
  %798 = vmatpush1.msra.mxu0 %v779
  %799 = vmatprep.subr.mxu0 0.0
  %800 = vmatpush1.msra.mxu0 %v780
  %801 = vmatprep.subr.mxu0 0.0
  %802 = vmatpush1.msra.mxu0 %v781
  %803 = vmatprep.subr.mxu0 0.0
  %804 = vmatpush1.msra.mxu0 %v782
  %805 = vmatprep.subr.mxu0 0.0
  %806 = vmatpush1.msra.mxu0 0.0
  %807 = vmatprep.subr.mxu0 0.0
  %808 = vmatpush1.msra.mxu0 0.0
  %809 = vmatprep.subr.mxu0 0.0
  %810 = vmatpush1.msra.mxu0 0.0
  %811 = vmatprep.subr.mxu0 0.0
  %812 = vmatpush1.msra.mxu0 0.0
  %813 = vmatprep.subr.mxu0 0.0
  %814 = vmatpush1.msra.mxu0 0.0
  %815 = vmatprep.subr.mxu0 0.0
  %816 = vmatpush1.msra.mxu0 0.0
  %817 = vmatprep.subr.mxu0 0.0
  %818 = vmatpush1.msra.mxu0 0.0
  %819 = vmatprep.subr.mxu0 0.0
  %820 = vmatpush1.msra.mxu0 0.0
  %821 = vmatprep.subr.mxu0 0.0
  %822 = vmatpush1.msra.mxu0 0.0
  %823 = vmatprep.subr.mxu0 0.0
  %824 = vmatpush1.msra.mxu0 0.0
  %825 = vmatprep.subr.mxu0 0.0
  %826 = vmatpush1.msra.mxu0 0.0
  %827 = vmatprep.subr.mxu0 0.0
  %828 = vmatpush1.msra.mxu0 0.0
  %829 = vmatprep.subr.mxu0 0.0
  %830 = vmatpush1.msra.mxu0 0.0
  %831 = vmatprep.subr.mxu0 0.0
  %832 = vmatpush1.msra.mxu0 0.0
  %833 = vmatprep.subr.mxu0 0.0
  %834 = vmatpush1.msra.mxu0 0.0
  %835 = vmatprep.subr.mxu0 0.0
  %836 = vmatpush1.msra.mxu0 0.0
  %837 = vmatprep.subr.mxu0 0.0
  %838 = vmatpush1.msra.mxu0 0.0
  %839 = vmatprep.subr.mxu0 0.0
  %840 = vmatpush1.msra.mxu0 0.0
  %841 = vmatprep.subr.mxu0 0.0
  %842 = vmatpush1.msra.mxu0 0.0
  %843 = vmatprep.subr.mxu0 0.0
  %844 = vmatpush1.msra.mxu0 0.0
  %845 = vmatprep.subr.mxu0 0.0
  %846 = vmatpush1.msra.mxu0 0.0
  %847 = vmatprep.subr.mxu0 0.0
  %848 = vmatpush1.msra.mxu0 0.0
  %849 = vmatprep.subr.mxu0 0.0
  %850 = vmatpush1.msra.mxu0 0.0
  %851 = vmatprep.subr.mxu0 0.0
  %852 = vmatpush1.msra.mxu0 0.0
  %853 = vmatprep.subr.mxu0 0.0
  %854 = vmatpush1.msra.mxu0 0.0
  %855 = vmatprep.subr.mxu0 0.0
  %856 = vmatpush1.msra.mxu0 0.0
  %857 = vmatprep.subr.mxu0 0.0
  %858 = vmatpush1.msra.mxu0 0.0
  %859 = vmatprep.subr.mxu0 0.0
  %860 = vmatpush1.msra.mxu0 0.0
  %861 = vmatprep.mubr.f32.mxu0 0.0
  %862 = vmatmul.mubr.f32.gmra.mrb[0].mxu0 %v789
  %v863 = vpop.f32.mrb[0].mxu0
  %v864 = vadd.f32 %v787, %v863
  %v865 = vpop.f32.mrb[0].mxu0
  %866 = vmatprep.mubr.f32.mxu0 0.0
  %867 = vmatmul.mubr.f32.gmra.mrb[0].mxu0 %v792
  %v868 = vpop.f32.mrb[0].mxu0
  %v869 = vadd.f32 %v787, %v868
  %v870 = vpop.f32.mrb[0].mxu0
  %871 = vmatprep.mubr.f32.mxu0 0.0
  %872 = vmatmul.mubr.f32.gmra.mrb[0].mxu0 %v795
  %v873 = vpop.f32.mrb[0].mxu0
  %v874 = vadd.f32 %v787, %v873
  %v875 = vpop.f32.mrb[0].mxu0
  %876 = vdwg.mxu0
  %v877 = vmax.f32 %v864, 0.0
  %v878 = vmax.f32 %v869, 0.0
  %v879 = vmax.f32 %v874, 0.0
  %v880 = vld [vmem:[%s1 + $0x158] sm:$0xff]
  %v881 = vld [vmem:[%s1 + $0x160] sm:$0xff]
  %v882 = vld [vmem:[%s1 + $0x168] sm:$0xff]
  %v883 = vld [vmem:[%s1 + $0x170] sm:$0xff]
  %v884 = vld [vmem:[%s1 + $0x150] sm:$0x1]
  %v885 = vlaneseq
  %v886 = vshrl.u32 %v885, 7
  %v887 = vsub.s32 0, %v886
  %v888 = vrot.slane %v884, %v887
  %v890 = vsel %vm356, %v877, 0
  %v893 = vsel %vm356, %v878, 0
  %v896 = vsel %vm356, %v879, 0
  %898 = vmatprep.subr.mxu0 0.0
  %899 = vmatpush1.msra.mxu0 %v880
  %900 = vmatprep.subr.mxu0 0.0
  %901 = vmatpush1.msra.mxu0 %v881
  %902 = vmatprep.subr.mxu0 0.0
  %903 = vmatpush1.msra.mxu0 %v882
  %904 = vmatprep.subr.mxu0 0.0
  %905 = vmatpush1.msra.mxu0 %v883
  %906 = vmatprep.subr.mxu0 0.0
  %907 = vmatpush1.msra.mxu0 0.0
  %908 = vmatprep.subr.mxu0 0.0
  %909 = vmatpush1.msra.mxu0 0.0
  %910 = vmatprep.subr.mxu0 0.0
  %911 = vmatpush1.msra.mxu0 0.0
  %912 = vmatprep.subr.mxu0 0.0
  %913 = vmatpush1.msra.mxu0 0.0
  %914 = vmatprep.subr.mxu0 0.0
  %915 = vmatpush1.msra.mxu0 0.0
  %916 = vmatprep.subr.mxu0 0.0
  %917 = vmatpush1.msra.mxu0 0.0
  %918 = vmatprep.subr.mxu0 0.0
  %919 = vmatpush1.msra.mxu0 0.0
  %920 = vmatprep.subr.mxu0 0.0
  %921 = vmatpush1.msra.mxu0 0.0
  %922 = vmatprep.subr.mxu0 0.0
  %923 = vmatpush1.msra.mxu0 0.0
  %924 = vmatprep.subr.mxu0 0.0
  %925 = vmatpush1.msra.mxu0 0.0
  %926 = vmatprep.subr.mxu0 0.0
  %927 = vmatpush1.msra.mxu0 0.0
  %928 = vmatprep.subr.mxu0 0.0
  %929 = vmatpush1.msra.mxu0 0.0
  %930 = vmatprep.subr.mxu0 0.0
  %931 = vmatpush1.msra.mxu0 0.0
  %932 = vmatprep.subr.mxu0 0.0
  %933 = vmatpush1.msra.mxu0 0.0
  %934 = vmatprep.subr.mxu0 0.0
  %935 = vmatpush1.msra.mxu0 0.0
  %936 = vmatprep.subr.mxu0 0.0
  %937 = vmatpush1.msra.mxu0 0.0
  %938 = vmatprep.subr.mxu0 0.0
  %939 = vmatpush1.msra.mxu0 0.0
  %940 = vmatprep.subr.mxu0 0.0
  %941 = vmatpush1.msra.mxu0 0.0
  %942 = vmatprep.subr.mxu0 0.0
  %943 = vmatpush1.msra.mxu0 0.0
  %944 = vmatprep.subr.mxu0 0.0
  %945 = vmatpush1.msra.mxu0 0.0
  %946 = vmatprep.subr.mxu0 0.0
  %947 = vmatpush1.msra.mxu0 0.0
  %948 = vmatprep.subr.mxu0 0.0
  %949 = vmatpush1.msra.mxu0 0.0
  %950 = vmatprep.subr.mxu0 0.0
  %951 = vmatpush1.msra.mxu0 0.0
  %952 = vmatprep.subr.mxu0 0.0
  %953 = vmatpush1.msra.mxu0 0.0
  %954 = vmatprep.subr.mxu0 0.0
  %955 = vmatpush1.msra.mxu0 0.0
  %956 = vmatprep.subr.mxu0 0.0
  %957 = vmatpush1.msra.mxu0 0.0
  %958 = vmatprep.subr.mxu0 0.0
  %959 = vmatpush1.msra.mxu0 0.0
  %960 = vmatprep.subr.mxu0 0.0
  %961 = vmatpush1.msra.mxu0 0.0
  %962 = vmatprep.mubr.f32.mxu0 0.0
  %963 = vmatmul.mubr.f32.gmra.mrb[0].mxu0 %v890
  %v964 = vpop.f32.mrb[0].mxu0
  %v965 = vadd.f32 %v888, %v964
  %v966 = vpop.f32.mrb[0].mxu0
  %967 = vmatprep.mubr.f32.mxu0 0.0
  %968 = vmatmul.mubr.f32.gmra.mrb[0].mxu0 %v893
  %v969 = vpop.f32.mrb[0].mxu0
  %v970 = vadd.f32 %v888, %v969
  %v971 = vpop.f32.mrb[0].mxu0
  %972 = vmatprep.mubr.f32.mxu0 0.0
  %973 = vmatmul.mubr.f32.gmra.mrb[0].mxu0 %v896
  %v974 = vpop.f32.mrb[0].mxu0
  %v975 = vadd.f32 %v888, %v974
  %v976 = vpop.f32.mrb[0].mxu0
  %977 = vdwg.mxu0
  %v978 = vmax.f32 %v965, 0.0
  %v979 = vmax.f32 %v970, 0.0
  %v980 = vmax.f32 %v975, 0.0
  %v981 = vld [vmem:[%s3 + $0x298] sm:$0xff]
  %v982 = vld [vmem:[%s3 + $0x2a0] sm:$0xff]
  %v983 = vld [vmem:[%s3 + $0x290] sm:$0x1]
  %v984 = vlaneseq
  %v985 = vshrl.u32 %v984, 7
  %v986 = vsub.s32 0, %v985
  %v987 = vrot.slane %v983, %v986
  %v989 = vsel %vm106, %v26, 0
  %v992 = vsel %vm106, %v27, 0
  %994 = vmatprep.subr.mxu0 0.0
  %995 = vmatpush1.msra.mxu0 %v981
  %996 = vmatprep.subr.mxu0 0.0
  %997 = vmatpush1.msra.mxu0 %v982
  %998 = vmatprep.subr.mxu0 0.0
  %999 = vmatpush1.msra.mxu0 0.0
  %1000 = vmatprep.subr.mxu0 0.0
  %1001 = vmatpush1.msra.mxu0 0.0
  %1002 = vmatprep.subr.mxu0 0.0
  %1003 = vmatpush1.msra.mxu0 0.0
  %1004 = vmatprep.subr.mxu0 0.0
  %1005 = vmatpush1.msra.mxu0 0.0
  %1006 = vmatprep.subr.mxu0 0.0
  %1007 = vmatpush1.msra.mxu0 0.0
  %1008 = vmatprep.subr.mxu0 0.0
  %1009 = vmatpush1.msra.mxu0 0.0
  %1010 = vmatprep.subr.mxu0 0.0
  %1011 = vmatpush1.msra.mxu0 0.0
  %1012 = vmatprep.subr.mxu0 0.0
  %1013 = vmatpush1.msra.mxu0 0.0
  %1014 = vmatprep.subr.mxu0 0.0
  %1015 = vmatpush1.msra.mxu0 0.0
  %1016 = vmatprep.subr.mxu0 0.0
  %1017 = vmatpush1.msra.mxu0 0.0
  %1018 = vmatprep.subr.mxu0 0.0
  %1019 = vmatpush1.msra.mxu0 0.0
  %1020 = vmatprep.subr.mxu0 0.0
  %1021 = vmatpush1.msra.mxu0 0.0
  %1022 = vmatprep.subr.mxu0 0.0
  %1023 = vmatpush1.msra.mxu0 0.0
  %1024 = vmatprep.subr.mxu0 0.0
  %1025 = vmatpush1.msra.mxu0 0.0
  %1026 = vmatprep.subr.mxu0 0.0
  %1027 = vmatpush1.msra.mxu0 0.0
  %1028 = vmatprep.subr.mxu0 0.0
  %1029 = vmatpush1.msra.mxu0 0.0
  %1030 = vmatprep.subr.mxu0 0.0
  %1031 = vmatpush1.msra.mxu0 0.0
  %1032 = vmatprep.subr.mxu0 0.0
  %1033 = vmatpush1.msra.mxu0 0.0
  %1034 = vmatprep.subr.mxu0 0.0
  %1035 = vmatpush1.msra.mxu0 0.0
  %1036 = vmatprep.subr.mxu0 0.0
  %1037 = vmatpush1.msra.mxu0 0.0
  %1038 = vmatprep.subr.mxu0 0.0
  %1039 = vmatpush1.msra.mxu0 0.0
  %1040 = vmatprep.subr.mxu0 0.0
  %1041 = vmatpush1.msra.mxu0 0.0
  %1042 = vmatprep.subr.mxu0 0.0
  %1043 = vmatpush1.msra.mxu0 0.0
  %1044 = vmatprep.subr.mxu0 0.0
  %1045 = vmatpush1.msra.mxu0 0.0
  %1046 = vmatprep.subr.mxu0 0.0
  %1047 = vmatpush1.msra.mxu0 0.0
  %1048 = vmatprep.subr.mxu0 0.0
  %1049 = vmatpush1.msra.mxu0 0.0
  %1050 = vmatprep.subr.mxu0 0.0
  %1051 = vmatpush1.msra.mxu0 0.0
  %1052 = vmatprep.subr.mxu0 0.0
  %1053 = vmatpush1.msra.mxu0 0.0
  %1054 = vmatprep.subr.mxu0 0.0
  %1055 = vmatpush1.msra.mxu0 0.0
  %1056 = vmatprep.subr.mxu0 0.0
  %1057 = vmatpush1.msra.mxu0 0.0
  %1058 = vmatprep.mubr.f32.mxu0 0.0
  %1059 = vmatmul.mubr.f32.gmra.mrb[0].mxu0 %v989
  %v1060 = vpop.f32.mrb[0].mxu0
  %v1061 = vadd.f32 %v987, %v1060
  %v1062 = vpop.f32.mrb[0].mxu0
  %1063 = vmatprep.mubr.f32.mxu0 0.0
  %1064 = vmatmul.mubr.f32.gmra.mrb[0].mxu0 %v992
  %v1065 = vpop.f32.mrb[0].mxu0
  %v1066 = vadd.f32 %v987, %v1065
  %v1067 = vpop.f32.mrb[0].mxu0
  %1068 = vdwg.mxu0
  %v1069 = vmax.f32 %v1061, 0.0
  %v1070 = vmax.f32 %v1066, 0.0
  %v1071 = vld [vmem:[%s1 + $0x1a8] sm:$0xff]
  %v1072 = vld [vmem:[%s1 + $0x1b0] sm:$0xff]
  %v1073 = vld [vmem:[%s1 + $0x1b8] sm:$0xff]
  %v1074 = vld [vmem:[%s1 + $0x1c0] sm:$0xff]
  %v1075 = vld [vmem:[%s1 + $0x1a0] sm:$0x1]
  %v1076 = vlaneseq
  %v1077 = vshrl.u32 %v1076, 7
  %v1078 = vsub.s32 0, %v1077
  %v1079 = vrot.slane %v1075, %v1078
  %v1081 = vsel %vm356, %v1069, 0
  %v1084 = vsel %vm356, %v1070, 0
  %1086 = vmatprep.subr.mxu0 0.0
  %1087 = vmatpush1.msra.mxu0 %v1071
  %1088 = vmatprep.subr.mxu0 0.0
  %1089 = vmatpush1.msra.mxu0 %v1072
  %1090 = vmatprep.subr.mxu0 0.0
  %1091 = vmatpush1.msra.mxu0 %v1073
  %1092 = vmatprep.subr.mxu0 0.0
  %1093 = vmatpush1.msra.mxu0 %v1074
  %1094 = vmatprep.subr.mxu0 0.0
  %1095 = vmatpush1.msra.mxu0 0.0
  %1096 = vmatprep.subr.mxu0 0.0
  %1097 = vmatpush1.msra.mxu0 0.0
  %1098 = vmatprep.subr.mxu0 0.0
  %1099 = vmatpush1.msra.mxu0 0.0
  %1100 = vmatprep.subr.mxu0 0.0
  %1101 = vmatpush1.msra.mxu0 0.0
  %1102 = vmatprep.subr.mxu0 0.0
  %1103 = vmatpush1.msra.mxu0 0.0
  %1104 = vmatprep.subr.mxu0 0.0
  %1105 = vmatpush1.msra.mxu0 0.0
  %1106 = vmatprep.subr.mxu0 0.0
  %1107 = vmatpush1.msra.mxu0 0.0
  %1108 = vmatprep.subr.mxu0 0.0
  %1109 = vmatpush1.msra.mxu0 0.0
  %1110 = vmatprep.subr.mxu0 0.0
  %1111 = vmatpush1.msra.mxu0 0.0
  %1112 = vmatprep.subr.mxu0 0.0
  %1113 = vmatpush1.msra.mxu0 0.0
  %1114 = vmatprep.subr.mxu0 0.0
  %1115 = vmatpush1.msra.mxu0 0.0
  %1116 = vmatprep.subr.mxu0 0.0
  %1117 = vmatpush1.msra.mxu0 0.0
  %1118 = vmatprep.subr.mxu0 0.0
  %1119 = vmatpush1.msra.mxu0 0.0
  %1120 = vmatprep.subr.mxu0 0.0
  %1121 = vmatpush1.msra.mxu0 0.0
  %1122 = vmatprep.subr.mxu0 0.0
  %1123 = vmatpush1.msra.mxu0 0.0
  %1124 = vmatprep.subr.mxu0 0.0
  %1125 = vmatpush1.msra.mxu0 0.0
  %1126 = vmatprep.subr.mxu0 0.0
  %1127 = vmatpush1.msra.mxu0 0.0
  %1128 = vmatprep.subr.mxu0 0.0
  %1129 = vmatpush1.msra.mxu0 0.0
  %1130 = vmatprep.subr.mxu0 0.0
  %1131 = vmatpush1.msra.mxu0 0.0
  %1132 = vmatprep.subr.mxu0 0.0
  %1133 = vmatpush1.msra.mxu0 0.0
  %1134 = vmatprep.subr.mxu0 0.0
  %1135 = vmatpush1.msra.mxu0 0.0
  %1136 = vmatprep.subr.mxu0 0.0
  %1137 = vmatpush1.msra.mxu0 0.0
  %1138 = vmatprep.subr.mxu0 0.0
  %1139 = vmatpush1.msra.mxu0 0.0
  %1140 = vmatprep.subr.mxu0 0.0
  %1141 = vmatpush1.msra.mxu0 0.0
  %1142 = vmatprep.subr.mxu0 0.0
  %1143 = vmatpush1.msra.mxu0 0.0
  %1144 = vmatprep.subr.mxu0 0.0
  %1145 = vmatpush1.msra.mxu0 0.0
  %1146 = vmatprep.subr.mxu0 0.0
  %1147 = vmatpush1.msra.mxu0 0.0
  %1148 = vmatprep.subr.mxu0 0.0
  %1149 = vmatpush1.msra.mxu0 0.0
  %1150 = vmatprep.mubr.f32.mxu0 0.0
  %1151 = vmatmul.mubr.f32.gmra.mrb[0].mxu0 %v1081
  %v1152 = vpop.f32.mrb[0].mxu0
  %v1153 = vadd.f32 %v1079, %v1152
  %v1154 = vpop.f32.mrb[0].mxu0
  %1155 = vmatprep.mubr.f32.mxu0 0.0
  %1156 = vmatmul.mubr.f32.gmra.mrb[0].mxu0 %v1084
  %v1157 = vpop.f32.mrb[0].mxu0
  %v1158 = vadd.f32 %v1079, %v1157
  %v1159 = vpop.f32.mrb[0].mxu0
  %1160 = vdwg.mxu0
  %v1161 = vmax.f32 %v1153, 0.0
  %v1162 = vmax.f32 %v1158, 0.0
  %v1164 = vsel %vm212, %v43, 0
  %v1167 = vsel %vm212, %v44, 0
  %v1170 = vsel %vm212, %v45, 0
  %v1173 = vsel %vm212, %v46, 0
  %v1176 = vsel %vm212, %v47, 0
  %v1179 = vsel %vm228, %v585, 0
  %1181 = vmatprep.subr.mxu0 0.0
  %1182 = vmatpush1.msra.mxu0 %v581
  %1183 = vmatprep.subr.mxu0 0.0
  %1184 = vmatpush1.msra.mxu0 %v582
  %1185 = vmatprep.subr.mxu0 0.0
  %1186 = vmatpush1.msra.mxu0 %v583
  %1187 = vmatprep.subr.mxu0 0.0
  %1188 = vmatpush1.msra.mxu0 %v584
  %1189 = vmatprep.subr.mxu0 0.0
  %1190 = vmatpush1.msra.mxu0 %v1179
  %1191 = vmatprep.subr.mxu0 0.0
  %1192 = vmatpush1.msra.mxu0 0.0
  %1193 = vmatprep.subr.mxu0 0.0
  %1194 = vmatpush1.msra.mxu0 0.0
  %1195 = vmatprep.subr.mxu0 0.0
  %1196 = vmatpush1.msra.mxu0 0.0
  %1197 = vmatprep.subr.mxu0 0.0
  %1198 = vmatpush1.msra.mxu0 0.0
  %1199 = vmatprep.subr.mxu0 0.0
  %1200 = vmatpush1.msra.mxu0 0.0
  %1201 = vmatprep.subr.mxu0 0.0
  %1202 = vmatpush1.msra.mxu0 0.0
  %1203 = vmatprep.subr.mxu0 0.0
  %1204 = vmatpush1.msra.mxu0 0.0
  %1205 = vmatprep.subr.mxu0 0.0
  %1206 = vmatpush1.msra.mxu0 0.0
  %1207 = vmatprep.subr.mxu0 0.0
  %1208 = vmatpush1.msra.mxu0 0.0
  %1209 = vmatprep.subr.mxu0 0.0
  %1210 = vmatpush1.msra.mxu0 0.0
  %1211 = vmatprep.subr.mxu0 0.0
  %1212 = vmatpush1.msra.mxu0 0.0
  %1213 = vmatprep.subr.mxu0 0.0
  %1214 = vmatpush1.msra.mxu0 0.0
  %1215 = vmatprep.subr.mxu0 0.0
  %1216 = vmatpush1.msra.mxu0 0.0
  %1217 = vmatprep.subr.mxu0 0.0
  %1218 = vmatpush1.msra.mxu0 0.0
  %1219 = vmatprep.subr.mxu0 0.0
  %1220 = vmatpush1.msra.mxu0 0.0
  %1221 = vmatprep.subr.mxu0 0.0
  %1222 = vmatpush1.msra.mxu0 0.0
  %1223 = vmatprep.subr.mxu0 0.0
  %1224 = vmatpush1.msra.mxu0 0.0
  %1225 = vmatprep.subr.mxu0 0.0
  %1226 = vmatpush1.msra.mxu0 0.0
  %1227 = vmatprep.subr.mxu0 0.0
  %1228 = vmatpush1.msra.mxu0 0.0
  %1229 = vmatprep.subr.mxu0 0.0
  %1230 = vmatpush1.msra.mxu0 0.0
  %1231 = vmatprep.subr.mxu0 0.0
  %1232 = vmatpush1.msra.mxu0 0.0
  %1233 = vmatprep.subr.mxu0 0.0
  %1234 = vmatpush1.msra.mxu0 0.0
  %1235 = vmatprep.subr.mxu0 0.0
  %1236 = vmatpush1.msra.mxu0 0.0
  %1237 = vmatprep.subr.mxu0 0.0
  %1238 = vmatpush1.msra.mxu0 0.0
  %1239 = vmatprep.subr.mxu0 0.0
  %1240 = vmatpush1.msra.mxu0 0.0
  %1241 = vmatprep.subr.mxu0 0.0
  %1242 = vmatpush1.msra.mxu0 0.0
  %1243 = vmatprep.subr.mxu0 0.0
  %1244 = vmatpush1.msra.mxu0 0.0
  %1245 = vmatprep.mubr.f32.mxu0 0.0
  %1246 = vmatmul.mubr.f32.gmra.mrb[0].mxu0 %v1164
  %v1247 = vpop.f32.mrb[0].mxu0
  %v1248 = vadd.f32 0.0, %v1247
  %v1249 = vpop.f32.mrb[0].mxu0
  %1250 = vmatprep.mubr.f32.mxu0 0.0
  %1251 = vmatmul.mubr.f32.gmra.mrb[0].mxu0 %v1167
  %v1252 = vpop.f32.mrb[0].mxu0
  %v1253 = vadd.f32 0.0, %v1252
  %v1254 = vpop.f32.mrb[0].mxu0
  %1255 = vmatprep.mubr.f32.mxu0 0.0
  %1256 = vmatmul.mubr.f32.gmra.mrb[0].mxu0 %v1170
  %v1257 = vpop.f32.mrb[0].mxu0
  %v1258 = vadd.f32 0.0, %v1257
  %v1259 = vpop.f32.mrb[0].mxu0
  %1260 = vmatprep.mubr.f32.mxu0 0.0
  %1261 = vmatmul.mubr.f32.gmra.mrb[0].mxu0 %v1173
  %v1262 = vpop.f32.mrb[0].mxu0
  %v1263 = vadd.f32 0.0, %v1262
  %v1264 = vpop.f32.mrb[0].mxu0
  %1265 = vmatprep.mubr.f32.mxu0 0.0
  %1266 = vmatmul.mubr.f32.gmra.mrb[0].mxu0 %v1176
  %v1267 = vpop.f32.mrb[0].mxu0
  %v1268 = vadd.f32 0.0, %v1267
  %v1269 = vpop.f32.mrb[0].mxu0
  %1270 = vdwg.mxu0
  %v1272 = vsel %vm212, %v48, 0
  %v1275 = vsel %vm212, %v49, 0
  %v1278 = vsel %vm212, %v50, 0
  %v1281 = vsel %vm212, %v51, 0
  %v1284 = vsel %vm212, %v52, 0
  %1286 = vmatprep.subr.mxu0 0.0
  %1287 = vmatpush1.msra.mxu0 %v581
  %1288 = vmatprep.subr.mxu0 0.0
  %1289 = vmatpush1.msra.mxu0 %v582
  %1290 = vmatprep.subr.mxu0 0.0
  %1291 = vmatpush1.msra.mxu0 %v583
  %1292 = vmatprep.subr.mxu0 0.0
  %1293 = vmatpush1.msra.mxu0 %v584
  %1294 = vmatprep.subr.mxu0 0.0
  %1295 = vmatpush1.msra.mxu0 %v1179
  %1296 = vmatprep.subr.mxu0 0.0
  %1297 = vmatpush1.msra.mxu0 0.0
  %1298 = vmatprep.subr.mxu0 0.0
  %1299 = vmatpush1.msra.mxu0 0.0
  %1300 = vmatprep.subr.mxu0 0.0
  %1301 = vmatpush1.msra.mxu0 0.0
  %1302 = vmatprep.subr.mxu0 0.0
  %1303 = vmatpush1.msra.mxu0 0.0
  %1304 = vmatprep.subr.mxu0 0.0
  %1305 = vmatpush1.msra.mxu0 0.0
  %1306 = vmatprep.subr.mxu0 0.0
  %1307 = vmatpush1.msra.mxu0 0.0
  %1308 = vmatprep.subr.mxu0 0.0
  %1309 = vmatpush1.msra.mxu0 0.0
  %1310 = vmatprep.subr.mxu0 0.0
  %1311 = vmatpush1.msra.mxu0 0.0
  %1312 = vmatprep.subr.mxu0 0.0
  %1313 = vmatpush1.msra.mxu0 0.0
  %1314 = vmatprep.subr.mxu0 0.0
  %1315 = vmatpush1.msra.mxu0 0.0
  %1316 = vmatprep.subr.mxu0 0.0
  %1317 = vmatpush1.msra.mxu0 0.0
  %1318 = vmatprep.subr.mxu0 0.0
  %1319 = vmatpush1.msra.mxu0 0.0
  %1320 = vmatprep.subr.mxu0 0.0
  %1321 = vmatpush1.msra.mxu0 0.0
  %1322 = vmatprep.subr.mxu0 0.0
  %1323 = vmatpush1.msra.mxu0 0.0
  %1324 = vmatprep.subr.mxu0 0.0
  %1325 = vmatpush1.msra.mxu0 0.0
  %1326 = vmatprep.subr.mxu0 0.0
  %1327 = vmatpush1.msra.mxu0 0.0
  %1328 = vmatprep.subr.mxu0 0.0
  %1329 = vmatpush1.msra.mxu0 0.0
  %1330 = vmatprep.subr.mxu0 0.0
  %1331 = vmatpush1.msra.mxu0 0.0
  %1332 = vmatprep.subr.mxu0 0.0
  %1333 = vmatpush1.msra.mxu0 0.0
  %1334 = vmatprep.subr.mxu0 0.0
  %1335 = vmatpush1.msra.mxu0 0.0
  %1336 = vmatprep.subr.mxu0 0.0
  %1337 = vmatpush1.msra.mxu0 0.0
  %1338 = vmatprep.subr.mxu0 0.0
  %1339 = vmatpush1.msra.mxu0 0.0
  %1340 = vmatprep.subr.mxu0 0.0
  %1341 = vmatpush1.msra.mxu0 0.0
  %1342 = vmatprep.subr.mxu0 0.0
  %1343 = vmatpush1.msra.mxu0 0.0
  %1344 = vmatprep.subr.mxu0 0.0
  %1345 = vmatpush1.msra.mxu0 0.0
  %1346 = vmatprep.subr.mxu0 0.0
  %1347 = vmatpush1.msra.mxu0 0.0
  %1348 = vmatprep.subr.mxu0 0.0
  %1349 = vmatpush1.msra.mxu0 0.0
  %1350 = vmatprep.mubr.f32.mxu0 0.0
  %1351 = vmatmul.mubr.f32.gmra.mrb[0].mxu0 %v1272
  %v1352 = vpop.f32.mrb[0].mxu0
  %v1353 = vadd.f32 0.0, %v1352
  %v1354 = vpop.f32.mrb[0].mxu0
  %1355 = vmatprep.mubr.f32.mxu0 0.0
  %1356 = vmatmul.mubr.f32.gmra.mrb[0].mxu0 %v1275
  %v1357 = vpop.f32.mrb[0].mxu0
  %v1358 = vadd.f32 0.0, %v1357
  %v1359 = vpop.f32.mrb[0].mxu0
  %1360 = vmatprep.mubr.f32.mxu0 0.0
  %1361 = vmatmul.mubr.f32.gmra.mrb[0].mxu0 %v1278
  %v1362 = vpop.f32.mrb[0].mxu0
  %v1363 = vadd.f32 0.0, %v1362
  %v1364 = vpop.f32.mrb[0].mxu0
  %1365 = vmatprep.mubr.f32.mxu0 0.0
  %1366 = vmatmul.mubr.f32.gmra.mrb[0].mxu0 %v1281
  %v1367 = vpop.f32.mrb[0].mxu0
  %v1368 = vadd.f32 0.0, %v1367
  %v1369 = vpop.f32.mrb[0].mxu0
  %1370 = vmatprep.mubr.f32.mxu0 0.0
  %1371 = vmatmul.mubr.f32.gmra.mrb[0].mxu0 %v1284
  %v1372 = vpop.f32.mrb[0].mxu0
  %v1373 = vadd.f32 0.0, %v1372
  %v1374 = vpop.f32.mrb[0].mxu0
  %1375 = vdwg.mxu0
  %v1377 = vsel %vm212, %v53, 0
  %v1380 = vsel %vm212, %v54, 0
  %v1383 = vsel %vm212, %v55, 0
  %v1386 = vsel %vm212, %v56, 0
  %v1389 = vsel %vm212, %v57, 0
  %1391 = vmatprep.subr.mxu0 0.0
  %1392 = vmatpush1.msra.mxu0 %v581
  %1393 = vmatprep.subr.mxu0 0.0
  %1394 = vmatpush1.msra.mxu0 %v582
  %1395 = vmatprep.subr.mxu0 0.0
  %1396 = vmatpush1.msra.mxu0 %v583
  %1397 = vmatprep.subr.mxu0 0.0
  %1398 = vmatpush1.msra.mxu0 %v584
  %1399 = vmatprep.subr.mxu0 0.0
  %1400 = vmatpush1.msra.mxu0 %v1179
  %1401 = vmatprep.subr.mxu0 0.0
  %1402 = vmatpush1.msra.mxu0 0.0
  %1403 = vmatprep.subr.mxu0 0.0
  %1404 = vmatpush1.msra.mxu0 0.0
  %1405 = vmatprep.subr.mxu0 0.0
  %1406 = vmatpush1.msra.mxu0 0.0
  %1407 = vmatprep.subr.mxu0 0.0
  %1408 = vmatpush1.msra.mxu0 0.0
  %1409 = vmatprep.subr.mxu0 0.0
  %1410 = vmatpush1.msra.mxu0 0.0
  %1411 = vmatprep.subr.mxu0 0.0
  %1412 = vmatpush1.msra.mxu0 0.0
  %1413 = vmatprep.subr.mxu0 0.0
  %1414 = vmatpush1.msra.mxu0 0.0
  %1415 = vmatprep.subr.mxu0 0.0
  %1416 = vmatpush1.msra.mxu0 0.0
  %1417 = vmatprep.subr.mxu0 0.0
  %1418 = vmatpush1.msra.mxu0 0.0
  %1419 = vmatprep.subr.mxu0 0.0
  %1420 = vmatpush1.msra.mxu0 0.0
  %1421 = vmatprep.subr.mxu0 0.0
  %1422 = vmatpush1.msra.mxu0 0.0
  %1423 = vmatprep.subr.mxu0 0.0
  %1424 = vmatpush1.msra.mxu0 0.0
  %1425 = vmatprep.subr.mxu0 0.0
  %1426 = vmatpush1.msra.mxu0 0.0
  %1427 = vmatprep.subr.mxu0 0.0
  %1428 = vmatpush1.msra.mxu0 0.0
  %1429 = vmatprep.subr.mxu0 0.0
  %1430 = vmatpush1.msra.mxu0 0.0
  %1431 = vmatprep.subr.mxu0 0.0
  %1432 = vmatpush1.msra.mxu0 0.0
  %1433 = vmatprep.subr.mxu0 0.0
  %1434 = vmatpush1.msra.mxu0 0.0
  %1435 = vmatprep.subr.mxu0 0.0
  %1436 = vmatpush1.msra.mxu0 0.0
  %1437 = vmatprep.subr.mxu0 0.0
  %1438 = vmatpush1.msra.mxu0 0.0
  %1439 = vmatprep.subr.mxu0 0.0
  %1440 = vmatpush1.msra.mxu0 0.0
  %1441 = vmatprep.subr.mxu0 0.0
  %1442 = vmatpush1.msra.mxu0 0.0
  %1443 = vmatprep.subr.mxu0 0.0
  %1444 = vmatpush1.msra.mxu0 0.0
  %1445 = vmatprep.subr.mxu0 0.0
  %1446 = vmatpush1.msra.mxu0 0.0
  %1447 = vmatprep.subr.mxu0 0.0
  %1448 = vmatpush1.msra.mxu0 0.0
  %1449 = vmatprep.subr.mxu0 0.0
  %1450 = vmatpush1.msra.mxu0 0.0
  %1451 = vmatprep.subr.mxu0 0.0
  %1452 = vmatpush1.msra.mxu0 0.0
  %1453 = vmatprep.subr.mxu0 0.0
  %1454 = vmatpush1.msra.mxu0 0.0
  %1455 = vmatprep.mubr.f32.mxu0 0.0
  %1456 = vmatmul.mubr.f32.gmra.mrb[0].mxu0 %v1377
  %v1457 = vpop.f32.mrb[0].mxu0
  %v1458 = vadd.f32 0.0, %v1457
  %v1459 = vpop.f32.mrb[0].mxu0
  %1460 = vmatprep.mubr.f32.mxu0 0.0
  %1461 = vmatmul.mubr.f32.gmra.mrb[0].mxu0 %v1380
  %v1462 = vpop.f32.mrb[0].mxu0
  %v1463 = vadd.f32 0.0, %v1462
  %v1464 = vpop.f32.mrb[0].mxu0
  %1465 = vmatprep.mubr.f32.mxu0 0.0
  %1466 = vmatmul.mubr.f32.gmra.mrb[0].mxu0 %v1383
  %v1467 = vpop.f32.mrb[0].mxu0
  %v1468 = vadd.f32 0.0, %v1467
  %v1469 = vpop.f32.mrb[0].mxu0
  %1470 = vmatprep.mubr.f32.mxu0 0.0
  %1471 = vmatmul.mubr.f32.gmra.mrb[0].mxu0 %v1386
  %v1472 = vpop.f32.mrb[0].mxu0
  %v1473 = vadd.f32 0.0, %v1472
  %v1474 = vpop.f32.mrb[0].mxu0
  %1475 = vmatprep.mubr.f32.mxu0 0.0
  %1476 = vmatmul.mubr.f32.gmra.mrb[0].mxu0 %v1389
  %v1477 = vpop.f32.mrb[0].mxu0
  %v1478 = vadd.f32 0.0, %v1477
  %v1479 = vpop.f32.mrb[0].mxu0
  %1480 = vdwg.mxu0
  %v1482 = vsel %vm212, %v58, 0
  %v1485 = vsel %vm212, %v59, 0
  %v1488 = vsel %vm212, %v60, 0
  %v1491 = vsel %vm212, %v61, 0
  %v1494 = vsel %vm212, %v62, 0
  %1496 = vmatprep.subr.mxu0 0.0
  %1497 = vmatpush1.msra.mxu0 %v581
  %1498 = vmatprep.subr.mxu0 0.0
  %1499 = vmatpush1.msra.mxu0 %v582
  %1500 = vmatprep.subr.mxu0 0.0
  %1501 = vmatpush1.msra.mxu0 %v583
  %1502 = vmatprep.subr.mxu0 0.0
  %1503 = vmatpush1.msra.mxu0 %v584
  %1504 = vmatprep.subr.mxu0 0.0
  %1505 = vmatpush1.msra.mxu0 %v1179
  %1506 = vmatprep.subr.mxu0 0.0
  %1507 = vmatpush1.msra.mxu0 0.0
  %1508 = vmatprep.subr.mxu0 0.0
  %1509 = vmatpush1.msra.mxu0 0.0
  %1510 = vmatprep.subr.mxu0 0.0
  %1511 = vmatpush1.msra.mxu0 0.0
  %1512 = vmatprep.subr.mxu0 0.0
  %1513 = vmatpush1.msra.mxu0 0.0
  %1514 = vmatprep.subr.mxu0 0.0
  %1515 = vmatpush1.msra.mxu0 0.0
  %1516 = vmatprep.subr.mxu0 0.0
  %1517 = vmatpush1.msra.mxu0 0.0
  %1518 = vmatprep.subr.mxu0 0.0
  %1519 = vmatpush1.msra.mxu0 0.0
  %1520 = vmatprep.subr.mxu0 0.0
  %1521 = vmatpush1.msra.mxu0 0.0
  %1522 = vmatprep.subr.mxu0 0.0
  %1523 = vmatpush1.msra.mxu0 0.0
  %1524 = vmatprep.subr.mxu0 0.0
  %1525 = vmatpush1.msra.mxu0 0.0
  %1526 = vmatprep.subr.mxu0 0.0
  %1527 = vmatpush1.msra.mxu0 0.0
  %1528 = vmatprep.subr.mxu0 0.0
  %1529 = vmatpush1.msra.mxu0 0.0
  %1530 = vmatprep.subr.mxu0 0.0
  %1531 = vmatpush1.msra.mxu0 0.0
  %1532 = vmatprep.subr.mxu0 0.0
  %1533 = vmatpush1.msra.mxu0 0.0
  %1534 = vmatprep.subr.mxu0 0.0
  %1535 = vmatpush1.msra.mxu0 0.0
  %1536 = vmatprep.subr.mxu0 0.0
  %1537 = vmatpush1.msra.mxu0 0.0
  %1538 = vmatprep.subr.mxu0 0.0
  %1539 = vmatpush1.msra.mxu0 0.0
  %1540 = vmatprep.subr.mxu0 0.0
  %1541 = vmatpush1.msra.mxu0 0.0
  %1542 = vmatprep.subr.mxu0 0.0
  %1543 = vmatpush1.msra.mxu0 0.0
  %1544 = vmatprep.subr.mxu0 0.0
  %1545 = vmatpush1.msra.mxu0 0.0
  %1546 = vmatprep.subr.mxu0 0.0
  %1547 = vmatpush1.msra.mxu0 0.0
  %1548 = vmatprep.subr.mxu0 0.0
  %1549 = vmatpush1.msra.mxu0 0.0
  %1550 = vmatprep.subr.mxu0 0.0
  %1551 = vmatpush1.msra.mxu0 0.0
  %1552 = vmatprep.subr.mxu0 0.0
  %1553 = vmatpush1.msra.mxu0 0.0
  %1554 = vmatprep.subr.mxu0 0.0
  %1555 = vmatpush1.msra.mxu0 0.0
  %1556 = vmatprep.subr.mxu0 0.0
  %1557 = vmatpush1.msra.mxu0 0.0
  %1558 = vmatprep.subr.mxu0 0.0
  %1559 = vmatpush1.msra.mxu0 0.0
  %1560 = vmatprep.mubr.f32.mxu0 0.0
  %1561 = vmatmul.mubr.f32.gmra.mrb[0].mxu0 %v1482
  %v1562 = vpop.f32.mrb[0].mxu0
  %v1563 = vadd.f32 0.0, %v1562
  %v1564 = vpop.f32.mrb[0].mxu0
  %1565 = vmatprep.mubr.f32.mxu0 0.0
  %1566 = vmatmul.mubr.f32.gmra.mrb[0].mxu0 %v1485
  %v1567 = vpop.f32.mrb[0].mxu0
  %v1568 = vadd.f32 0.0, %v1567
  %v1569 = vpop.f32.mrb[0].mxu0
  %1570 = vmatprep.mubr.f32.mxu0 0.0
  %1571 = vmatmul.mubr.f32.gmra.mrb[0].mxu0 %v1488
  %v1572 = vpop.f32.mrb[0].mxu0
  %v1573 = vadd.f32 0.0, %v1572
  %v1574 = vpop.f32.mrb[0].mxu0
  %1575 = vmatprep.mubr.f32.mxu0 0.0
  %1576 = vmatmul.mubr.f32.gmra.mrb[0].mxu0 %v1491
  %v1577 = vpop.f32.mrb[0].mxu0
  %v1578 = vadd.f32 0.0, %v1577
  %v1579 = vpop.f32.mrb[0].mxu0
  %1580 = vmatprep.mubr.f32.mxu0 0.0
  %1581 = vmatmul.mubr.f32.gmra.mrb[0].mxu0 %v1494
  %v1582 = vpop.f32.mrb[0].mxu0
  %v1583 = vadd.f32 0.0, %v1582
  %v1584 = vpop.f32.mrb[0].mxu0
  %1585 = vdwg.mxu0
  %v1587 = vsel %vm106, %v63, 0
  %v1590 = vsel %vm106, %v64, 0
  %v1593 = vsel %vm106, %v65, 0
  %v1596 = vsel %vm106, %v66, 0
  %v1599 = vsel %vm106, %v67, 0
  %1601 = vmatprep.subr.mxu0 0.0
  %1602 = vmatpush1.msra.mxu0 %v1161
  %1603 = vmatprep.subr.mxu0 0.0
  %1604 = vmatpush1.msra.mxu0 %v1162
  %1605 = vmatprep.subr.mxu0 0.0
  %1606 = vmatpush1.msra.mxu0 0.0
  %1607 = vmatprep.subr.mxu0 0.0
  %1608 = vmatpush1.msra.mxu0 0.0
  %1609 = vmatprep.subr.mxu0 0.0
  %1610 = vmatpush1.msra.mxu0 0.0
  %1611 = vmatprep.subr.mxu0 0.0
  %1612 = vmatpush1.msra.mxu0 0.0
  %1613 = vmatprep.subr.mxu0 0.0
  %1614 = vmatpush1.msra.mxu0 0.0
  %1615 = vmatprep.subr.mxu0 0.0
  %1616 = vmatpush1.msra.mxu0 0.0
  %1617 = vmatprep.subr.mxu0 0.0
  %1618 = vmatpush1.msra.mxu0 0.0
  %1619 = vmatprep.subr.mxu0 0.0
  %1620 = vmatpush1.msra.mxu0 0.0
  %1621 = vmatprep.subr.mxu0 0.0
  %1622 = vmatpush1.msra.mxu0 0.0
  %1623 = vmatprep.subr.mxu0 0.0
  %1624 = vmatpush1.msra.mxu0 0.0
  %1625 = vmatprep.subr.mxu0 0.0
  %1626 = vmatpush1.msra.mxu0 0.0
  %1627 = vmatprep.subr.mxu0 0.0
  %1628 = vmatpush1.msra.mxu0 0.0
  %1629 = vmatprep.subr.mxu0 0.0
  %1630 = vmatpush1.msra.mxu0 0.0
  %1631 = vmatprep.subr.mxu0 0.0
  %1632 = vmatpush1.msra.mxu0 0.0
  %1633 = vmatprep.subr.mxu0 0.0
  %1634 = vmatpush1.msra.mxu0 0.0
  %1635 = vmatprep.subr.mxu0 0.0
  %1636 = vmatpush1.msra.mxu0 0.0
  %1637 = vmatprep.subr.mxu0 0.0
  %1638 = vmatpush1.msra.mxu0 0.0
  %1639 = vmatprep.subr.mxu0 0.0
  %1640 = vmatpush1.msra.mxu0 0.0
  %1641 = vmatprep.subr.mxu0 0.0
  %1642 = vmatpush1.msra.mxu0 0.0
  %1643 = vmatprep.subr.mxu0 0.0
  %1644 = vmatpush1.msra.mxu0 0.0
  %1645 = vmatprep.subr.mxu0 0.0
  %1646 = vmatpush1.msra.mxu0 0.0
  %1647 = vmatprep.subr.mxu0 0.0
  %1648 = vmatpush1.msra.mxu0 0.0
  %1649 = vmatprep.subr.mxu0 0.0
  %1650 = vmatpush1.msra.mxu0 0.0
  %1651 = vmatprep.subr.mxu0 0.0
  %1652 = vmatpush1.msra.mxu0 0.0
  %1653 = vmatprep.subr.mxu0 0.0
  %1654 = vmatpush1.msra.mxu0 0.0
  %1655 = vmatprep.subr.mxu0 0.0
  %1656 = vmatpush1.msra.mxu0 0.0
  %1657 = vmatprep.subr.mxu0 0.0
  %1658 = vmatpush1.msra.mxu0 0.0
  %1659 = vmatprep.subr.mxu0 0.0
  %1660 = vmatpush1.msra.mxu0 0.0
  %1661 = vmatprep.subr.mxu0 0.0
  %1662 = vmatpush1.msra.mxu0 0.0
  %1663 = vmatprep.subr.mxu0 0.0
  %1664 = vmatpush1.msra.mxu0 0.0
  %1665 = vmatprep.mubr.f32.mxu0 0.0
  %1666 = vmatmul.mubr.f32.gmra.mrb[0].mxu0 %v1587
  %v1667 = vpop.f32.mrb[0].mxu0
  %v1668 = vadd.f32 0.0, %v1667
  %v1669 = vpop.f32.mrb[0].mxu0
  %1670 = vmatprep.mubr.f32.mxu0 0.0
  %1671 = vmatmul.mubr.f32.gmra.mrb[0].mxu0 %v1590
  %v1672 = vpop.f32.mrb[0].mxu0
  %v1673 = vadd.f32 0.0, %v1672
  %v1674 = vpop.f32.mrb[0].mxu0
  %1675 = vmatprep.mubr.f32.mxu0 0.0
  %1676 = vmatmul.mubr.f32.gmra.mrb[0].mxu0 %v1593
  %v1677 = vpop.f32.mrb[0].mxu0
  %v1678 = vadd.f32 0.0, %v1677
  %v1679 = vpop.f32.mrb[0].mxu0
  %1680 = vmatprep.mubr.f32.mxu0 0.0
  %1681 = vmatmul.mubr.f32.gmra.mrb[0].mxu0 %v1596
  %v1682 = vpop.f32.mrb[0].mxu0
  %v1683 = vadd.f32 0.0, %v1682
  %v1684 = vpop.f32.mrb[0].mxu0
  %1685 = vmatprep.mubr.f32.mxu0 0.0
  %1686 = vmatmul.mubr.f32.gmra.mrb[0].mxu0 %v1599
  %v1687 = vpop.f32.mrb[0].mxu0
  %v1688 = vadd.f32 0.0, %v1687
  %v1689 = vpop.f32.mrb[0].mxu0
  %1690 = vdwg.mxu0
  %v1692 = vsel %vm106, %v68, 0
  %v1695 = vsel %vm106, %v69, 0
  %v1698 = vsel %vm106, %v70, 0
  %v1701 = vsel %vm106, %v71, 0
  %v1704 = vsel %vm106, %v72, 0
  %1706 = vmatprep.subr.mxu0 0.0
  %1707 = vmatpush1.msra.mxu0 %v1161
  %1708 = vmatprep.subr.mxu0 0.0
  %1709 = vmatpush1.msra.mxu0 %v1162
  %1710 = vmatprep.subr.mxu0 0.0
  %1711 = vmatpush1.msra.mxu0 0.0
  %1712 = vmatprep.subr.mxu0 0.0
  %1713 = vmatpush1.msra.mxu0 0.0
  %1714 = vmatprep.subr.mxu0 0.0
  %1715 = vmatpush1.msra.mxu0 0.0
  %1716 = vmatprep.subr.mxu0 0.0
  %1717 = vmatpush1.msra.mxu0 0.0
  %1718 = vmatprep.subr.mxu0 0.0
  %1719 = vmatpush1.msra.mxu0 0.0
  %1720 = vmatprep.subr.mxu0 0.0
  %1721 = vmatpush1.msra.mxu0 0.0
  %1722 = vmatprep.subr.mxu0 0.0
  %1723 = vmatpush1.msra.mxu0 0.0
  %1724 = vmatprep.subr.mxu0 0.0
  %1725 = vmatpush1.msra.mxu0 0.0
  %1726 = vmatprep.subr.mxu0 0.0
  %1727 = vmatpush1.msra.mxu0 0.0
  %1728 = vmatprep.subr.mxu0 0.0
  %1729 = vmatpush1.msra.mxu0 0.0
  %1730 = vmatprep.subr.mxu0 0.0
  %1731 = vmatpush1.msra.mxu0 0.0
  %1732 = vmatprep.subr.mxu0 0.0
  %1733 = vmatpush1.msra.mxu0 0.0
  %1734 = vmatprep.subr.mxu0 0.0
  %1735 = vmatpush1.msra.mxu0 0.0
  %1736 = vmatprep.subr.mxu0 0.0
  %1737 = vmatpush1.msra.mxu0 0.0
  %1738 = vmatprep.subr.mxu0 0.0
  %1739 = vmatpush1.msra.mxu0 0.0
  %1740 = vmatprep.subr.mxu0 0.0
  %1741 = vmatpush1.msra.mxu0 0.0
  %1742 = vmatprep.subr.mxu0 0.0
  %1743 = vmatpush1.msra.mxu0 0.0
  %1744 = vmatprep.subr.mxu0 0.0
  %1745 = vmatpush1.msra.mxu0 0.0
  %1746 = vmatprep.subr.mxu0 0.0
  %1747 = vmatpush1.msra.mxu0 0.0
  %1748 = vmatprep.subr.mxu0 0.0
  %1749 = vmatpush1.msra.mxu0 0.0
  %1750 = vmatprep.subr.mxu0 0.0
  %1751 = vmatpush1.msra.mxu0 0.0
  %1752 = vmatprep.subr.mxu0 0.0
  %1753 = vmatpush1.msra.mxu0 0.0
  %1754 = vmatprep.subr.mxu0 0.0
  %1755 = vmatpush1.msra.mxu0 0.0
  %1756 = vmatprep.subr.mxu0 0.0
  %1757 = vmatpush1.msra.mxu0 0.0
  %1758 = vmatprep.subr.mxu0 0.0
  %1759 = vmatpush1.msra.mxu0 0.0
  %1760 = vmatprep.subr.mxu0 0.0
  %1761 = vmatpush1.msra.mxu0 0.0
  %1762 = vmatprep.subr.mxu0 0.0
  %1763 = vmatpush1.msra.mxu0 0.0
  %1764 = vmatprep.subr.mxu0 0.0
  %1765 = vmatpush1.msra.mxu0 0.0
  %1766 = vmatprep.subr.mxu0 0.0
  %1767 = vmatpush1.msra.mxu0 0.0
  %1768 = vmatprep.subr.mxu0 0.0
  %1769 = vmatpush1.msra.mxu0 0.0
  %1770 = vmatprep.mubr.f32.mxu0 0.0
  %1771 = vmatmul.mubr.f32.gmra.mrb[0].mxu0 %v1692
  %v1772 = vpop.f32.mrb[0].mxu0
  %v1773 = vadd.f32 0.0, %v1772
  %v1774 = vpop.f32.mrb[0].mxu0
  %1775 = vmatprep.mubr.f32.mxu0 0.0
  %1776 = vmatmul.mubr.f32.gmra.mrb[0].mxu0 %v1695
  %v1777 = vpop.f32.mrb[0].mxu0
  %v1778 = vadd.f32 0.0, %v1777
  %v1779 = vpop.f32.mrb[0].mxu0
  %1780 = vmatprep.mubr.f32.mxu0 0.0
  %1781 = vmatmul.mubr.f32.gmra.mrb[0].mxu0 %v1698
  %v1782 = vpop.f32.mrb[0].mxu0
  %v1783 = vadd.f32 0.0, %v1782
  %v1784 = vpop.f32.mrb[0].mxu0
  %1785 = vmatprep.mubr.f32.mxu0 0.0
  %1786 = vmatmul.mubr.f32.gmra.mrb[0].mxu0 %v1701
  %v1787 = vpop.f32.mrb[0].mxu0
  %v1788 = vadd.f32 0.0, %v1787
  %v1789 = vpop.f32.mrb[0].mxu0
  %1790 = vmatprep.mubr.f32.mxu0 0.0
  %1791 = vmatmul.mubr.f32.gmra.mrb[0].mxu0 %v1704
  %v1792 = vpop.f32.mrb[0].mxu0
  %v1793 = vadd.f32 0.0, %v1792
  %v1794 = vpop.f32.mrb[0].mxu0
  %1795 = vdwg.mxu0
  %1801 = vrot.lane.b32.xlu0 %v1353, 16
  %v1802 = vpop.permute.xlu0 %1801
  %1803 = vrot.lane.b32.xlu0 %v1358, 16
  %v1804 = vpop.permute.xlu0 %1803
  %1805 = vrot.lane.b32.xlu0 %v1363, 16
  %v1806 = vpop.permute.xlu0 %1805
  %1807 = vrot.lane.b32.xlu0 %v1368, 16
  %v1808 = vpop.permute.xlu0 %1807
  %1809 = vrot.lane.b32.xlu0 %v1373, 16
  %v1810 = vpop.permute.xlu0 %1809
  %1821 = vrot.lane.b32.xlu0 %v1458, 32
  %v1822 = vpop.permute.xlu0 %1821
  %1823 = vrot.lane.b32.xlu0 %v1463, 32
  %v1824 = vpop.permute.xlu0 %1823
  %1825 = vrot.lane.b32.xlu0 %v1468, 32
  %v1826 = vpop.permute.xlu0 %1825
  %1827 = vrot.lane.b32.xlu0 %v1473, 32
  %v1828 = vpop.permute.xlu0 %1827
  %1829 = vrot.lane.b32.xlu0 %v1478, 32
  %v1830 = vpop.permute.xlu0 %1829
  %1841 = vrot.lane.b32.xlu0 %v1563, 48
  %v1842 = vpop.permute.xlu0 %1841
  %1843 = vrot.lane.b32.xlu0 %v1568, 48
  %v1844 = vpop.permute.xlu0 %1843
  %1845 = vrot.lane.b32.xlu0 %v1573, 48
  %v1846 = vpop.permute.xlu0 %1845
  %1847 = vrot.lane.b32.xlu0 %v1578, 48
  %v1848 = vpop.permute.xlu0 %1847
  %1849 = vrot.lane.b32.xlu0 %v1583, 48
  %v1850 = vpop.permute.xlu0 %1849
  %1861 = vrot.lane.b32.xlu0 %v1668, 64
  %v1862 = vpop.permute.xlu0 %1861
  %1863 = vrot.lane.b32.xlu0 %v1673, 64
  %v1864 = vpop.permute.xlu0 %1863
  %1865 = vrot.lane.b32.xlu0 %v1678, 64
  %v1866 = vpop.permute.xlu0 %1865
  %1867 = vrot.lane.b32.xlu0 %v1683, 64
  %v1868 = vpop.permute.xlu0 %1867
  %1869 = vrot.lane.b32.xlu0 %v1688, 64
  %v1870 = vpop.permute.xlu0 %1869
  %1881 = vrot.lane.b32.xlu0 %v1773, 80
  %v1882 = vpop.permute.xlu0 %1881
  %1883 = vrot.lane.b32.xlu0 %v1778, 80
  %v1884 = vpop.permute.xlu0 %1883
  %1885 = vrot.lane.b32.xlu0 %v1783, 80
  %v1886 = vpop.permute.xlu0 %1885
  %1887 = vrot.lane.b32.xlu0 %v1788, 80
  %v1888 = vpop.permute.xlu0 %1887
  %1889 = vrot.lane.b32.xlu0 %v1793, 80
  %v1890 = vpop.permute.xlu0 %1889
  %v1896 = vsel %vm106, %v1248, %v1802
  %v1897 = vsel %vm106, %v1253, %v1804
  %v1898 = vsel %vm106, %v1258, %v1806
  %v1899 = vsel %vm106, %v1263, %v1808
  %v1900 = vsel %vm106, %v1268, %v1810
  %v1901 = vsel %vm356, %v1896, %v1822
  %v1902 = vsel %vm356, %v1897, %v1824
  %v1903 = vsel %vm356, %v1898, %v1826
  %v1904 = vsel %vm356, %v1899, %v1828
  %v1905 = vsel %vm356, %v1900, %v1830
  %vm1906 = vcmask 392192
  %v1907 = vsel %vm1906, %v1901, %v1842
  %v1908 = vsel %vm1906, %v1902, %v1844
  %v1909 = vsel %vm1906, %v1903, %v1846
  %v1910 = vsel %vm1906, %v1904, %v1848
  %v1911 = vsel %vm1906, %v1905, %v1850
  %vm1912 = vcmask 523264
  %v1913 = vsel %vm1912, %v1907, %v1862
  %v1914 = vsel %vm1912, %v1908, %v1864
  %v1915 = vsel %vm1912, %v1909, %v1866
  %v1916 = vsel %vm1912, %v1910, %v1868
  %v1917 = vsel %vm1912, %v1911, %v1870
  %vm1918 = vcmask 654336
  %v1919 = vsel %vm1918, %v1913, %v1882
  %v1920 = vsel %vm1918, %v1914, %v1884
  %v1921 = vsel %vm1918, %v1915, %v1886
  %v1922 = vsel %vm1918, %v1916, %v1888
  %v1923 = vsel %vm1918, %v1917, %v1890
  %1929 = vrot.lane.b32.xlu0 %v1919, 16
  %v1930 = vpop.permute.xlu0 %1929
  %1931 = vrot.lane.b32.xlu0 %v1920, 16
  %v1932 = vpop.permute.xlu0 %1931
  %1933 = vrot.lane.b32.xlu0 %v1921, 16
  %v1934 = vpop.permute.xlu0 %1933
  %1935 = vrot.lane.b32.xlu0 %v1922, 16
  %v1936 = vpop.permute.xlu0 %1935
  %1937 = vrot.lane.b32.xlu0 %v1923, 16
  %v1938 = vpop.permute.xlu0 %1937
  %v1944 = vsel %vm106, %v581, %v1930
  %v1945 = vsel %vm106, %v582, %v1932
  %v1946 = vsel %vm106, %v583, %v1934
  %v1947 = vsel %vm106, %v584, %v1936
  %v1948 = vsel %vm106, %v585, %v1938
  %v1949 = vld [vmem:[%s3 + $0x100] sm:$0xff]
  %v1950 = vld [vmem:[%s3 + $0x108] sm:$0xff]
  %v1951 = vld [vmem:[%s3 + $0x110] sm:$0xff]
  %v1952 = vld [vmem:[%s3 + $0x118] sm:$0xff]
  %v1953 = vld [vmem:[%s3 + $0x120] sm:$0xff]
  %v1954 = vld [vmem:[%s3 + $0x128] sm:$0xff]
  %v1955 = vld [vmem:[%s3 + $0x130] sm:$0xff]
  %v1956 = vld [vmem:[%s3 + $0x138] sm:$0xff]
  %v1957 = vld [vmem:[%s3 + $0x140] sm:$0xff]
  %v1958 = vld [vmem:[%s3 + $0x148] sm:$0xff]
  %v1959 = vld [vmem:[%s3 + $0x150] sm:$0xff]
  %v1960 = vld [vmem:[%s3 + $0x158] sm:$0xff]
  %v1961 = vld [vmem:[%s3 + $0x160] sm:$0xff]
  %v1962 = vld [vmem:[%s3 + $0x168] sm:$0xff]
  %vm1963 = vcmask 916480
  %v1965 = vsel %vm1963, %v1944, 0
  %v1968 = vsel %vm1963, %v1945, 0
  %v1971 = vsel %vm1963, %v1946, 0
  %v1974 = vsel %vm1963, %v1947, 0
  %v1977 = vsel %vm1963, %v1948, 0
  %1979 = vmatprep.subr.mxu0 0.0
  %1980 = vmatpush1.msra.mxu0 %v1949
  %1981 = vmatprep.subr.mxu0 0.0
  %1982 = vmatpush1.msra.mxu0 %v1950
  %1983 = vmatprep.subr.mxu0 0.0
  %1984 = vmatpush1.msra.mxu0 %v1951
  %1985 = vmatprep.subr.mxu0 0.0
  %1986 = vmatpush1.msra.mxu0 %v1952
  %1987 = vmatprep.subr.mxu0 0.0
  %1988 = vmatpush1.msra.mxu0 %v1953
  %1989 = vmatprep.subr.mxu0 0.0
  %1990 = vmatpush1.msra.mxu0 %v1954
  %1991 = vmatprep.subr.mxu0 0.0
  %1992 = vmatpush1.msra.mxu0 %v1955
  %1993 = vmatprep.subr.mxu0 0.0
  %1994 = vmatpush1.msra.mxu0 %v1956
  %1995 = vmatprep.subr.mxu0 0.0
  %1996 = vmatpush1.msra.mxu0 %v1957
  %1997 = vmatprep.subr.mxu0 0.0
  %1998 = vmatpush1.msra.mxu0 %v1958
  %1999 = vmatprep.subr.mxu0 0.0
  %2000 = vmatpush1.msra.mxu0 %v1959
  %2001 = vmatprep.subr.mxu0 0.0
  %2002 = vmatpush1.msra.mxu0 %v1960
  %2003 = vmatprep.subr.mxu0 0.0
  %2004 = vmatpush1.msra.mxu0 %v1961
  %2005 = vmatprep.subr.mxu0 0.0
  %2006 = vmatpush1.msra.mxu0 %v1962
  %2007 = vmatprep.subr.mxu0 0.0
  %2008 = vmatpush1.msra.mxu0 0.0
  %2009 = vmatprep.subr.mxu0 0.0
  %2010 = vmatpush1.msra.mxu0 0.0
  %2011 = vmatprep.subr.mxu0 0.0
  %2012 = vmatpush1.msra.mxu0 0.0
  %2013 = vmatprep.subr.mxu0 0.0
  %2014 = vmatpush1.msra.mxu0 0.0
  %2015 = vmatprep.subr.mxu0 0.0
  %2016 = vmatpush1.msra.mxu0 0.0
  %2017 = vmatprep.subr.mxu0 0.0
  %2018 = vmatpush1.msra.mxu0 0.0
  %2019 = vmatprep.subr.mxu0 0.0
  %2020 = vmatpush1.msra.mxu0 0.0
  %2021 = vmatprep.subr.mxu0 0.0
  %2022 = vmatpush1.msra.mxu0 0.0
  %2023 = vmatprep.subr.mxu0 0.0
  %2024 = vmatpush1.msra.mxu0 0.0
  %2025 = vmatprep.subr.mxu0 0.0
  %2026 = vmatpush1.msra.mxu0 0.0
  %2027 = vmatprep.subr.mxu0 0.0
  %2028 = vmatpush1.msra.mxu0 0.0
  %2029 = vmatprep.subr.mxu0 0.0
  %2030 = vmatpush1.msra.mxu0 0.0
  %2031 = vmatprep.subr.mxu0 0.0
  %2032 = vmatpush1.msra.mxu0 0.0
  %2033 = vmatprep.subr.mxu0 0.0
  %2034 = vmatpush1.msra.mxu0 0.0
  %2035 = vmatprep.subr.mxu0 0.0
  %2036 = vmatpush1.msra.mxu0 0.0
  %2037 = vmatprep.subr.mxu0 0.0
  %2038 = vmatpush1.msra.mxu0 0.0
  %2039 = vmatprep.subr.mxu0 0.0
  %2040 = vmatpush1.msra.mxu0 0.0
  %2041 = vmatprep.subr.mxu0 0.0
  %2042 = vmatpush1.msra.mxu0 0.0
  %2043 = vmatprep.mubr.f32.mxu0 0.0
  %2044 = vmatmul.mubr.f32.gmra.mrb[0].mxu0 %v1965
  %v2045 = vpop.f32.mrb[0].mxu0
  %v2046 = vadd.f32 0.0, %v2045
  %v2047 = vpop.f32.mrb[0].mxu0
  %2048 = vmatprep.mubr.f32.mxu0 0.0
  %2049 = vmatmul.mubr.f32.gmra.mrb[0].mxu0 %v1968
  %v2050 = vpop.f32.mrb[0].mxu0
  %v2051 = vadd.f32 0.0, %v2050
  %v2052 = vpop.f32.mrb[0].mxu0
  %2053 = vmatprep.mubr.f32.mxu0 0.0
  %2054 = vmatmul.mubr.f32.gmra.mrb[0].mxu0 %v1971
  %v2055 = vpop.f32.mrb[0].mxu0
  %v2056 = vadd.f32 0.0, %v2055
  %v2057 = vpop.f32.mrb[0].mxu0
  %2058 = vmatprep.mubr.f32.mxu0 0.0
  %2059 = vmatmul.mubr.f32.gmra.mrb[0].mxu0 %v1974
  %v2060 = vpop.f32.mrb[0].mxu0
  %v2061 = vadd.f32 0.0, %v2060
  %v2062 = vpop.f32.mrb[0].mxu0
  %2063 = vmatprep.mubr.f32.mxu0 0.0
  %2064 = vmatmul.mubr.f32.gmra.mrb[0].mxu0 %v1977
  %v2065 = vpop.f32.mrb[0].mxu0
  %v2066 = vadd.f32 0.0, %v2065
  %v2067 = vpop.f32.mrb[0].mxu0
  %2068 = vdwg.mxu0
  %v2069 = vsel %vm356, %v2046, 0.0
  %v2070 = vsel %vm356, %v2051, 0.0
  %v2071 = vadd.f32 %v2069, %v2070
  %v2072 = vsel %vm356, %v2056, 0.0
  %v2073 = vadd.f32 %v2071, %v2072
  %v2074 = vsel %vm356, %v2061, 0.0
  %v2075 = vadd.f32 %v2073, %v2074
  %vm2076 = vcmask 257024
  %v2077 = vsel %vm2076, %v2066, 0.0
  %v2078 = vadd.f32 %v2075, %v2077
  %v2079 = vrot.slane %v2078, 4
  %v2080 = vadd.f32 %v2078, %v2079
  %v2081 = vrot.slane %v2080, 2
  %v2082 = vadd.f32 %v2080, %v2081
  %v2083 = vrot.slane %v2082, 1
  %v2084 = vadd.f32 %v2082, %v2083
  %v2085 = vrcp.pop 36.0
  %v2086 = vmul.f32 %v2084, %v2085
  %v2087 = vsub.f32 %v2046, %v2086
  %v2088 = vsub.f32 %v2051, %v2086
  %v2089 = vsub.f32 %v2056, %v2086
  %v2090 = vsub.f32 %v2061, %v2086
  %v2091 = vsub.f32 %v2066, %v2086
  %v2092 = vmul.f32 %v2087, %v2087
  %v2093 = vmul.f32 %v2088, %v2088
  %v2094 = vmul.f32 %v2089, %v2089
  %v2095 = vmul.f32 %v2090, %v2090
  %v2096 = vmul.f32 %v2091, %v2091
  %v2097 = vsel %vm356, %v2092, 0.0
  %v2098 = vsel %vm356, %v2093, 0.0
  %v2099 = vadd.f32 %v2097, %v2098
  %v2100 = vsel %vm356, %v2094, 0.0
  %v2101 = vadd.f32 %v2099, %v2100
  %v2102 = vsel %vm356, %v2095, 0.0
  %v2103 = vadd.f32 %v2101, %v2102
  %v2104 = vsel %vm2076, %v2096, 0.0
  %v2105 = vadd.f32 %v2103, %v2104
  %v2106 = vrot.slane %v2105, 4
  %v2107 = vadd.f32 %v2105, %v2106
  %v2108 = vrot.slane %v2107, 2
  %v2109 = vadd.f32 %v2107, %v2108
  %v2110 = vrot.slane %v2109, 1
  %v2111 = vadd.f32 %v2109, %v2110
  %v2112 = vmul.f32 %v2111, %v2085
  %v2113 = vadd.f32 %v2112, 1e-05
  %v2114 = vrsqrt.pop %v2113
  %v2115 = vmul.f32 %v2087, %v2114
  %v2116 = vmul.f32 %v2088, %v2114
  %v2117 = vmul.f32 %v2089, %v2114
  %v2118 = vmul.f32 %v2090, %v2114
  %v2119 = vmul.f32 %v2091, %v2114
  %v2120 = vmax.f32 %v2115, 0.0
  %v2121 = vmax.f32 %v2116, 0.0
  %v2122 = vmax.f32 %v2117, 0.0
  %v2123 = vmax.f32 %v2118, 0.0
  %v2124 = vmax.f32 %v2119, 0.0
  %v2125 = vld [vmem:[%s1 + $0xf0] sm:$0xff]
  %v2126 = vld [vmem:[%s1 + $0xf8] sm:$0xff]
  %v2127 = vld [vmem:[%s1 + $0x100] sm:$0xff]
  %v2128 = vld [vmem:[%s1 + $0x108] sm:$0xff]
  %v2130 = vsel %vm356, %v2120, 0
  %v2133 = vsel %vm356, %v2121, 0
  %v2136 = vsel %vm356, %v2122, 0
  %v2139 = vsel %vm356, %v2123, 0
  %v2142 = vsel %vm356, %v2124, 0
  %2144 = vmatprep.subr.mxu0 0.0
  %2145 = vmatpush1.msra.mxu0 %v2125
  %2146 = vmatprep.subr.mxu0 0.0
  %2147 = vmatpush1.msra.mxu0 %v2126
  %2148 = vmatprep.subr.mxu0 0.0
  %2149 = vmatpush1.msra.mxu0 %v2127
  %2150 = vmatprep.subr.mxu0 0.0
  %2151 = vmatpush1.msra.mxu0 %v2128
  %2152 = vmatprep.subr.mxu0 0.0
  %2153 = vmatpush1.msra.mxu0 0.0
  %2154 = vmatprep.subr.mxu0 0.0
  %2155 = vmatpush1.msra.mxu0 0.0
  %2156 = vmatprep.subr.mxu0 0.0
  %2157 = vmatpush1.msra.mxu0 0.0
  %2158 = vmatprep.subr.mxu0 0.0
  %2159 = vmatpush1.msra.mxu0 0.0
  %2160 = vmatprep.subr.mxu0 0.0
  %2161 = vmatpush1.msra.mxu0 0.0
  %2162 = vmatprep.subr.mxu0 0.0
  %2163 = vmatpush1.msra.mxu0 0.0
  %2164 = vmatprep.subr.mxu0 0.0
  %2165 = vmatpush1.msra.mxu0 0.0
  %2166 = vmatprep.subr.mxu0 0.0
  %2167 = vmatpush1.msra.mxu0 0.0
  %2168 = vmatprep.subr.mxu0 0.0
  %2169 = vmatpush1.msra.mxu0 0.0
  %2170 = vmatprep.subr.mxu0 0.0
  %2171 = vmatpush1.msra.mxu0 0.0
  %2172 = vmatprep.subr.mxu0 0.0
  %2173 = vmatpush1.msra.mxu0 0.0
  %2174 = vmatprep.subr.mxu0 0.0
  %2175 = vmatpush1.msra.mxu0 0.0
  %2176 = vmatprep.subr.mxu0 0.0
  %2177 = vmatpush1.msra.mxu0 0.0
  %2178 = vmatprep.subr.mxu0 0.0
  %2179 = vmatpush1.msra.mxu0 0.0
  %2180 = vmatprep.subr.mxu0 0.0
  %2181 = vmatpush1.msra.mxu0 0.0
  %2182 = vmatprep.subr.mxu0 0.0
  %2183 = vmatpush1.msra.mxu0 0.0
  %2184 = vmatprep.subr.mxu0 0.0
  %2185 = vmatpush1.msra.mxu0 0.0
  %2186 = vmatprep.subr.mxu0 0.0
  %2187 = vmatpush1.msra.mxu0 0.0
  %2188 = vmatprep.subr.mxu0 0.0
  %2189 = vmatpush1.msra.mxu0 0.0
  %2190 = vmatprep.subr.mxu0 0.0
  %2191 = vmatpush1.msra.mxu0 0.0
  %2192 = vmatprep.subr.mxu0 0.0
  %2193 = vmatpush1.msra.mxu0 0.0
  %2194 = vmatprep.subr.mxu0 0.0
  %2195 = vmatpush1.msra.mxu0 0.0
  %2196 = vmatprep.subr.mxu0 0.0
  %2197 = vmatpush1.msra.mxu0 0.0
  %2198 = vmatprep.subr.mxu0 0.0
  %2199 = vmatpush1.msra.mxu0 0.0
  %2200 = vmatprep.subr.mxu0 0.0
  %2201 = vmatpush1.msra.mxu0 0.0
  %2202 = vmatprep.subr.mxu0 0.0
  %2203 = vmatpush1.msra.mxu0 0.0
  %2204 = vmatprep.subr.mxu0 0.0
  %2205 = vmatpush1.msra.mxu0 0.0
  %2206 = vmatprep.subr.mxu0 0.0
  %2207 = vmatpush1.msra.mxu0 0.0
  %2208 = vmatprep.mubr.f32.mxu0 0.0
  %2209 = vmatmul.mubr.f32.gmra.mrb[0].mxu0 %v2130
  %v2210 = vpop.f32.mrb[0].mxu0
  %v2211 = vadd.f32 0.0, %v2210
  %v2212 = vpop.f32.mrb[0].mxu0
  %2213 = vmatprep.mubr.f32.mxu0 0.0
  %2214 = vmatmul.mubr.f32.gmra.mrb[0].mxu0 %v2133
  %v2215 = vpop.f32.mrb[0].mxu0
  %v2216 = vadd.f32 0.0, %v2215
  %v2217 = vpop.f32.mrb[0].mxu0
  %2218 = vmatprep.mubr.f32.mxu0 0.0
  %2219 = vmatmul.mubr.f32.gmra.mrb[0].mxu0 %v2136
  %v2220 = vpop.f32.mrb[0].mxu0
  %v2221 = vadd.f32 0.0, %v2220
  %v2222 = vpop.f32.mrb[0].mxu0
  %2223 = vmatprep.mubr.f32.mxu0 0.0
  %2224 = vmatmul.mubr.f32.gmra.mrb[0].mxu0 %v2139
  %v2225 = vpop.f32.mrb[0].mxu0
  %v2226 = vadd.f32 0.0, %v2225
  %v2227 = vpop.f32.mrb[0].mxu0
  %2228 = vmatprep.mubr.f32.mxu0 0.0
  %2229 = vmatmul.mubr.f32.gmra.mrb[0].mxu0 %v2142
  %v2230 = vpop.f32.mrb[0].mxu0
  %v2231 = vadd.f32 0.0, %v2230
  %v2232 = vpop.f32.mrb[0].mxu0
  %2233 = vdwg.mxu0
  %v2234 = vsel %vm106, %v2211, 0.0
  %v2235 = vsel %vm106, %v2216, 0.0
  %v2236 = vadd.f32 %v2234, %v2235
  %v2237 = vsel %vm106, %v2221, 0.0
  %v2238 = vadd.f32 %v2236, %v2237
  %v2239 = vsel %vm106, %v2226, 0.0
  %v2240 = vadd.f32 %v2238, %v2239
  %vm2241 = vcmask 125952
  %v2242 = vsel %vm2241, %v2231, 0.0
  %v2243 = vadd.f32 %v2240, %v2242
  %v2244 = vrot.slane %v2243, 4
  %v2245 = vadd.f32 %v2243, %v2244
  %v2246 = vrot.slane %v2245, 2
  %v2247 = vadd.f32 %v2245, %v2246
  %v2248 = vrot.slane %v2247, 1
  %v2249 = vadd.f32 %v2247, %v2248
  %v2250 = vmul.f32 %v2249, %v2085
  %v2251 = vsub.f32 %v2211, %v2250
  %v2252 = vsub.f32 %v2216, %v2250
  %v2253 = vsub.f32 %v2221, %v2250
  %v2254 = vsub.f32 %v2226, %v2250
  %v2255 = vsub.f32 %v2231, %v2250
  %v2256 = vmul.f32 %v2251, %v2251
  %v2257 = vmul.f32 %v2252, %v2252
  %v2258 = vmul.f32 %v2253, %v2253
  %v2259 = vmul.f32 %v2254, %v2254
  %v2260 = vmul.f32 %v2255, %v2255
  %v2261 = vsel %vm106, %v2256, 0.0
  %v2262 = vsel %vm106, %v2257, 0.0
  %v2263 = vadd.f32 %v2261, %v2262
  %v2264 = vsel %vm106, %v2258, 0.0
  %v2265 = vadd.f32 %v2263, %v2264
  %v2266 = vsel %vm106, %v2259, 0.0
  %v2267 = vadd.f32 %v2265, %v2266
  %v2268 = vsel %vm2241, %v2260, 0.0
  %v2269 = vadd.f32 %v2267, %v2268
  %v2270 = vrot.slane %v2269, 4
  %v2271 = vadd.f32 %v2269, %v2270
  %v2272 = vrot.slane %v2271, 2
  %v2273 = vadd.f32 %v2271, %v2272
  %v2274 = vrot.slane %v2273, 1
  %v2275 = vadd.f32 %v2273, %v2274
  %v2276 = vmul.f32 %v2275, %v2085
  %v2277 = vadd.f32 %v2276, 1e-05
  %v2278 = vrsqrt.pop %v2277
  %v2279 = vmul.f32 %v2251, %v2278
  %v2280 = vmul.f32 %v2252, %v2278
  %v2281 = vmul.f32 %v2253, %v2278
  %v2282 = vmul.f32 %v2254, %v2278
  %v2283 = vmul.f32 %v2255, %v2278
  %v2284 = vmax.f32 %v2279, 0.0
  %v2285 = vmax.f32 %v2280, 0.0
  %v2286 = vmax.f32 %v2281, 0.0
  %v2287 = vmax.f32 %v2282, 0.0
  %v2288 = vmax.f32 %v2283, 0.0
  %v2290 = vsel %vm212, %v101, 0
  %v2293 = vsel %vm212, %v102, 0
  %v2295 = vsel %vm228, %v1923, 0
  %2297 = vmatprep.subr.mxu0 0.0
  %2298 = vmatpush1.msra.mxu0 %v1919
  %2299 = vmatprep.subr.mxu0 0.0
  %2300 = vmatpush1.msra.mxu0 %v1920
  %2301 = vmatprep.subr.mxu0 0.0
  %2302 = vmatpush1.msra.mxu0 %v1921
  %2303 = vmatprep.subr.mxu0 0.0
  %2304 = vmatpush1.msra.mxu0 %v1922
  %2305 = vmatprep.subr.mxu0 0.0
  %2306 = vmatpush1.msra.mxu0 %v2295
  %2307 = vmatprep.subr.mxu0 0.0
  %2308 = vmatpush1.msra.mxu0 0.0
  %2309 = vmatprep.subr.mxu0 0.0
  %2310 = vmatpush1.msra.mxu0 0.0
  %2311 = vmatprep.subr.mxu0 0.0
  %2312 = vmatpush1.msra.mxu0 0.0
  %2313 = vmatprep.subr.mxu0 0.0
  %2314 = vmatpush1.msra.mxu0 0.0
  %2315 = vmatprep.subr.mxu0 0.0
  %2316 = vmatpush1.msra.mxu0 0.0
  %2317 = vmatprep.subr.mxu0 0.0
  %2318 = vmatpush1.msra.mxu0 0.0
  %2319 = vmatprep.subr.mxu0 0.0
  %2320 = vmatpush1.msra.mxu0 0.0
  %2321 = vmatprep.subr.mxu0 0.0
  %2322 = vmatpush1.msra.mxu0 0.0
  %2323 = vmatprep.subr.mxu0 0.0
  %2324 = vmatpush1.msra.mxu0 0.0
  %2325 = vmatprep.subr.mxu0 0.0
  %2326 = vmatpush1.msra.mxu0 0.0
  %2327 = vmatprep.subr.mxu0 0.0
  %2328 = vmatpush1.msra.mxu0 0.0
  %2329 = vmatprep.subr.mxu0 0.0
  %2330 = vmatpush1.msra.mxu0 0.0
  %2331 = vmatprep.subr.mxu0 0.0
  %2332 = vmatpush1.msra.mxu0 0.0
  %2333 = vmatprep.subr.mxu0 0.0
  %2334 = vmatpush1.msra.mxu0 0.0
  %2335 = vmatprep.subr.mxu0 0.0
  %2336 = vmatpush1.msra.mxu0 0.0
  %2337 = vmatprep.subr.mxu0 0.0
  %2338 = vmatpush1.msra.mxu0 0.0
  %2339 = vmatprep.subr.mxu0 0.0
  %2340 = vmatpush1.msra.mxu0 0.0
  %2341 = vmatprep.subr.mxu0 0.0
  %2342 = vmatpush1.msra.mxu0 0.0
  %2343 = vmatprep.subr.mxu0 0.0
  %2344 = vmatpush1.msra.mxu0 0.0
  %2345 = vmatprep.subr.mxu0 0.0
  %2346 = vmatpush1.msra.mxu0 0.0
  %2347 = vmatprep.subr.mxu0 0.0
  %2348 = vmatpush1.msra.mxu0 0.0
  %2349 = vmatprep.subr.mxu0 0.0
  %2350 = vmatpush1.msra.mxu0 0.0
  %2351 = vmatprep.subr.mxu0 0.0
  %2352 = vmatpush1.msra.mxu0 0.0
  %2353 = vmatprep.subr.mxu0 0.0
  %2354 = vmatpush1.msra.mxu0 0.0
  %2355 = vmatprep.subr.mxu0 0.0
  %2356 = vmatpush1.msra.mxu0 0.0
  %2357 = vmatprep.subr.mxu0 0.0
  %2358 = vmatpush1.msra.mxu0 0.0
  %2359 = vmatprep.subr.mxu0 0.0
  %2360 = vmatpush1.msra.mxu0 0.0
  %2361 = vmatprep.mubr.f32.mxu0 0.0
  %2362 = vmatmul.mubr.f32.gmra.mrb[0].mxu0 %v2290
  %v2363 = vpop.f32.mrb[0].mxu0
  %v2364 = vadd.f32 0.0, %v2363
  %v2365 = vpop.f32.mrb[0].mxu0
  %2366 = vmatprep.mubr.f32.mxu0 0.0
  %2367 = vmatmul.mubr.f32.gmra.mrb[0].mxu0 %v2293
  %v2368 = vpop.f32.mrb[0].mxu0
  %v2369 = vadd.f32 0.0, %v2368
  %v2370 = vpop.f32.mrb[0].mxu0
  %2371 = vdwg.mxu0
  %2374 = vrot.lane.b32.xlu0 %v2364, 16
  %v2375 = vpop.permute.xlu0 %2374
  %2376 = vrot.lane.b32.xlu0 %v2369, 16
  %v2377 = vpop.permute.xlu0 %2376
  %v2380 = vsel %vm106, %v1161, %v2375
  %v2381 = vsel %vm106, %v1162, %v2377
  %v2382 = vld [vmem:[%s3 + $0x170] sm:$0xff]
  %v2383 = vld [vmem:[%s3 + $0x178] sm:$0xff]
  %v2384 = vld [vmem:[%s3 + $0x180] sm:$0xff]
  %v2385 = vld [vmem:[%s3 + $0x188] sm:$0xff]
  %v2386 = vld [vmem:[%s3 + $0x190] sm:$0xff]
  %v2387 = vld [vmem:[%s3 + $0x198] sm:$0xff]
  %v2388 = vld [vmem:[%s3 + $0x1a0] sm:$0xff]
  %v2389 = vld [vmem:[%s3 + $0x1a8] sm:$0xff]
  %v2390 = vld [vmem:[%s3 + $0x1b0] sm:$0xff]
  %v2391 = vld [vmem:[%s3 + $0x1b8] sm:$0xff]
  %v2392 = vld [vmem:[%s3 + $0x1c0] sm:$0xff]
  %v2393 = vld [vmem:[%s3 + $0x1c8] sm:$0xff]
  %v2394 = vld [vmem:[%s3 + $0x1d0] sm:$0xff]
  %v2395 = vld [vmem:[%s3 + $0x1d8] sm:$0xff]
  %v2397 = vsel %vm1963, %v2380, 0
  %v2400 = vsel %vm1963, %v2381, 0
  %2402 = vmatprep.subr.mxu0 0.0
  %2403 = vmatpush1.msra.mxu0 %v2382
  %2404 = vmatprep.subr.mxu0 0.0
  %2405 = vmatpush1.msra.mxu0 %v2383
  %2406 = vmatprep.subr.mxu0 0.0
  %2407 = vmatpush1.msra.mxu0 %v2384
  %2408 = vmatprep.subr.mxu0 0.0
  %2409 = vmatpush1.msra.mxu0 %v2385
  %2410 = vmatprep.subr.mxu0 0.0
  %2411 = vmatpush1.msra.mxu0 %v2386
  %2412 = vmatprep.subr.mxu0 0.0
  %2413 = vmatpush1.msra.mxu0 %v2387
  %2414 = vmatprep.subr.mxu0 0.0
  %2415 = vmatpush1.msra.mxu0 %v2388
  %2416 = vmatprep.subr.mxu0 0.0
  %2417 = vmatpush1.msra.mxu0 %v2389
  %2418 = vmatprep.subr.mxu0 0.0
  %2419 = vmatpush1.msra.mxu0 %v2390
  %2420 = vmatprep.subr.mxu0 0.0
  %2421 = vmatpush1.msra.mxu0 %v2391
  %2422 = vmatprep.subr.mxu0 0.0
  %2423 = vmatpush1.msra.mxu0 %v2392
  %2424 = vmatprep.subr.mxu0 0.0
  %2425 = vmatpush1.msra.mxu0 %v2393
  %2426 = vmatprep.subr.mxu0 0.0
  %2427 = vmatpush1.msra.mxu0 %v2394
  %2428 = vmatprep.subr.mxu0 0.0
  %2429 = vmatpush1.msra.mxu0 %v2395
  %2430 = vmatprep.subr.mxu0 0.0
  %2431 = vmatpush1.msra.mxu0 0.0
  %2432 = vmatprep.subr.mxu0 0.0
  %2433 = vmatpush1.msra.mxu0 0.0
  %2434 = vmatprep.subr.mxu0 0.0
  %2435 = vmatpush1.msra.mxu0 0.0
  %2436 = vmatprep.subr.mxu0 0.0
  %2437 = vmatpush1.msra.mxu0 0.0
  %2438 = vmatprep.subr.mxu0 0.0
  %2439 = vmatpush1.msra.mxu0 0.0
  %2440 = vmatprep.subr.mxu0 0.0
  %2441 = vmatpush1.msra.mxu0 0.0
  %2442 = vmatprep.subr.mxu0 0.0
  %2443 = vmatpush1.msra.mxu0 0.0
  %2444 = vmatprep.subr.mxu0 0.0
  %2445 = vmatpush1.msra.mxu0 0.0
  %2446 = vmatprep.subr.mxu0 0.0
  %2447 = vmatpush1.msra.mxu0 0.0
  %2448 = vmatprep.subr.mxu0 0.0
  %2449 = vmatpush1.msra.mxu0 0.0
  %2450 = vmatprep.subr.mxu0 0.0
  %2451 = vmatpush1.msra.mxu0 0.0
  %2452 = vmatprep.subr.mxu0 0.0
  %2453 = vmatpush1.msra.mxu0 0.0
  %2454 = vmatprep.subr.mxu0 0.0
  %2455 = vmatpush1.msra.mxu0 0.0
  %2456 = vmatprep.subr.mxu0 0.0
  %2457 = vmatpush1.msra.mxu0 0.0
  %2458 = vmatprep.subr.mxu0 0.0
  %2459 = vmatpush1.msra.mxu0 0.0
  %2460 = vmatprep.subr.mxu0 0.0
  %2461 = vmatpush1.msra.mxu0 0.0
  %2462 = vmatprep.subr.mxu0 0.0
  %2463 = vmatpush1.msra.mxu0 0.0
  %2464 = vmatprep.subr.mxu0 0.0
  %2465 = vmatpush1.msra.mxu0 0.0
  %2466 = vmatprep.mubr.f32.mxu0 0.0
  %2467 = vmatmul.mubr.f32.gmra.mrb[0].mxu0 %v2397
  %v2468 = vpop.f32.mrb[0].mxu0
  %v2469 = vadd.f32 0.0, %v2468
  %v2470 = vpop.f32.mrb[0].mxu0
  %2471 = vmatprep.mubr.f32.mxu0 0.0
  %2472 = vmatmul.mubr.f32.gmra.mrb[0].mxu0 %v2400
  %v2473 = vpop.f32.mrb[0].mxu0
  %v2474 = vadd.f32 0.0, %v2473
  %v2475 = vpop.f32.mrb[0].mxu0
  %2476 = vdwg.mxu0
  %v2477 = vsel %vm356, %v2469, 0.0
  %v2478 = vsel %vm356, %v2474, 0.0
  %v2479 = vadd.f32 %v2477, %v2478
  %v2480 = vrot.slane %v2479, 4
  %v2481 = vadd.f32 %v2479, %v2480
  %v2482 = vrot.slane %v2481, 2
  %v2483 = vadd.f32 %v2481, %v2482
  %v2484 = vrot.slane %v2483, 1
  %v2485 = vadd.f32 %v2483, %v2484
  %v2486 = vrcp.pop 16.0
  %v2487 = vmul.f32 %v2485, %v2486
  %v2488 = vsub.f32 %v2469, %v2487
  %v2489 = vsub.f32 %v2474, %v2487
  %v2490 = vmul.f32 %v2488, %v2488
  %v2491 = vmul.f32 %v2489, %v2489
  %v2492 = vsel %vm356, %v2490, 0.0
  %v2493 = vsel %vm356, %v2491, 0.0
  %v2494 = vadd.f32 %v2492, %v2493
  %v2495 = vrot.slane %v2494, 4
  %v2496 = vadd.f32 %v2494, %v2495
  %v2497 = vrot.slane %v2496, 2
  %v2498 = vadd.f32 %v2496, %v2497
  %v2499 = vrot.slane %v2498, 1
  %v2500 = vadd.f32 %v2498, %v2499
  %v2501 = vmul.f32 %v2500, %v2486
  %v2502 = vadd.f32 %v2501, 1e-05
  %v2503 = vrsqrt.pop %v2502
  %v2504 = vmul.f32 %v2488, %v2503
  %v2505 = vmul.f32 %v2489, %v2503
  %v2506 = vmax.f32 %v2504, 0.0
  %v2507 = vmax.f32 %v2505, 0.0
  %v2508 = vld [vmem:[%s1 + $0x110] sm:$0xff]
  %v2509 = vld [vmem:[%s1 + $0x118] sm:$0xff]
  %v2510 = vld [vmem:[%s1 + $0x120] sm:$0xff]
  %v2511 = vld [vmem:[%s1 + $0x128] sm:$0xff]
  %v2513 = vsel %vm356, %v2506, 0
  %v2516 = vsel %vm356, %v2507, 0
  %2518 = vmatprep.subr.mxu0 0.0
  %2519 = vmatpush1.msra.mxu0 %v2508
  %2520 = vmatprep.subr.mxu0 0.0
  %2521 = vmatpush1.msra.mxu0 %v2509
  %2522 = vmatprep.subr.mxu0 0.0
  %2523 = vmatpush1.msra.mxu0 %v2510
  %2524 = vmatprep.subr.mxu0 0.0
  %2525 = vmatpush1.msra.mxu0 %v2511
  %2526 = vmatprep.subr.mxu0 0.0
  %2527 = vmatpush1.msra.mxu0 0.0
  %2528 = vmatprep.subr.mxu0 0.0
  %2529 = vmatpush1.msra.mxu0 0.0
  %2530 = vmatprep.subr.mxu0 0.0
  %2531 = vmatpush1.msra.mxu0 0.0
  %2532 = vmatprep.subr.mxu0 0.0
  %2533 = vmatpush1.msra.mxu0 0.0
  %2534 = vmatprep.subr.mxu0 0.0
  %2535 = vmatpush1.msra.mxu0 0.0
  %2536 = vmatprep.subr.mxu0 0.0
  %2537 = vmatpush1.msra.mxu0 0.0
  %2538 = vmatprep.subr.mxu0 0.0
  %2539 = vmatpush1.msra.mxu0 0.0
  %2540 = vmatprep.subr.mxu0 0.0
  %2541 = vmatpush1.msra.mxu0 0.0
  %2542 = vmatprep.subr.mxu0 0.0
  %2543 = vmatpush1.msra.mxu0 0.0
  %2544 = vmatprep.subr.mxu0 0.0
  %2545 = vmatpush1.msra.mxu0 0.0
  %2546 = vmatprep.subr.mxu0 0.0
  %2547 = vmatpush1.msra.mxu0 0.0
  %2548 = vmatprep.subr.mxu0 0.0
  %2549 = vmatpush1.msra.mxu0 0.0
  %2550 = vmatprep.subr.mxu0 0.0
  %2551 = vmatpush1.msra.mxu0 0.0
  %2552 = vmatprep.subr.mxu0 0.0
  %2553 = vmatpush1.msra.mxu0 0.0
  %2554 = vmatprep.subr.mxu0 0.0
  %2555 = vmatpush1.msra.mxu0 0.0
  %2556 = vmatprep.subr.mxu0 0.0
  %2557 = vmatpush1.msra.mxu0 0.0
  %2558 = vmatprep.subr.mxu0 0.0
  %2559 = vmatpush1.msra.mxu0 0.0
  %2560 = vmatprep.subr.mxu0 0.0
  %2561 = vmatpush1.msra.mxu0 0.0
  %2562 = vmatprep.subr.mxu0 0.0
  %2563 = vmatpush1.msra.mxu0 0.0
  %2564 = vmatprep.subr.mxu0 0.0
  %2565 = vmatpush1.msra.mxu0 0.0
  %2566 = vmatprep.subr.mxu0 0.0
  %2567 = vmatpush1.msra.mxu0 0.0
  %2568 = vmatprep.subr.mxu0 0.0
  %2569 = vmatpush1.msra.mxu0 0.0
  %2570 = vmatprep.subr.mxu0 0.0
  %2571 = vmatpush1.msra.mxu0 0.0
  %2572 = vmatprep.subr.mxu0 0.0
  %2573 = vmatpush1.msra.mxu0 0.0
  %2574 = vmatprep.subr.mxu0 0.0
  %2575 = vmatpush1.msra.mxu0 0.0
  %2576 = vmatprep.subr.mxu0 0.0
  %2577 = vmatpush1.msra.mxu0 0.0
  %2578 = vmatprep.subr.mxu0 0.0
  %2579 = vmatpush1.msra.mxu0 0.0
  %2580 = vmatprep.subr.mxu0 0.0
  %2581 = vmatpush1.msra.mxu0 0.0
  %2582 = vmatprep.mubr.f32.mxu0 0.0
  %2583 = vmatmul.mubr.f32.gmra.mrb[0].mxu0 %v2513
  %v2584 = vpop.f32.mrb[0].mxu0
  %v2585 = vadd.f32 0.0, %v2584
  %v2586 = vpop.f32.mrb[0].mxu0
  %2587 = vmatprep.mubr.f32.mxu0 0.0
  %2588 = vmatmul.mubr.f32.gmra.mrb[0].mxu0 %v2516
  %v2589 = vpop.f32.mrb[0].mxu0
  %v2590 = vadd.f32 0.0, %v2589
  %v2591 = vpop.f32.mrb[0].mxu0
  %2592 = vdwg.mxu0
  %v2593 = vsel %vm106, %v2585, 0.0
  %v2594 = vsel %vm106, %v2590, 0.0
  %v2595 = vadd.f32 %v2593, %v2594
  %v2596 = vrot.slane %v2595, 4
  %v2597 = vadd.f32 %v2595, %v2596
  %v2598 = vrot.slane %v2597, 2
  %v2599 = vadd.f32 %v2597, %v2598
  %v2600 = vrot.slane %v2599, 1
  %v2601 = vadd.f32 %v2599, %v2600
  %v2602 = vmul.f32 %v2601, %v2486
  %v2603 = vsub.f32 %v2585, %v2602
  %v2604 = vsub.f32 %v2590, %v2602
  %v2605 = vmul.f32 %v2603, %v2603
  %v2606 = vmul.f32 %v2604, %v2604
  %v2607 = vsel %vm106, %v2605, 0.0
  %v2608 = vsel %vm106, %v2606, 0.0
  %v2609 = vadd.f32 %v2607, %v2608
  %v2610 = vrot.slane %v2609, 4
  %v2611 = vadd.f32 %v2609, %v2610
  %v2612 = vrot.slane %v2611, 2
  %v2613 = vadd.f32 %v2611, %v2612
  %v2614 = vrot.slane %v2613, 1
  %v2615 = vadd.f32 %v2613, %v2614
  %v2616 = vmul.f32 %v2615, %v2486
  %v2617 = vadd.f32 %v2616, 1e-05
  %v2618 = vrsqrt.pop %v2617
  %v2619 = vmul.f32 %v2603, %v2618
  %v2620 = vmul.f32 %v2604, %v2618
  %v2621 = vmax.f32 %v2619, 0.0
  %v2622 = vmax.f32 %v2620, 0.0
  %v2624 = vsel %vm212, %v79, 0
  %v2627 = vsel %vm212, %v80, 0
  %v2630 = vsel %vm212, %v81, 0
  %2632 = vmatprep.subr.mxu0 0.0
  %2633 = vmatpush1.msra.mxu0 %v581
  %2634 = vmatprep.subr.mxu0 0.0
  %2635 = vmatpush1.msra.mxu0 %v582
  %2636 = vmatprep.subr.mxu0 0.0
  %2637 = vmatpush1.msra.mxu0 %v583
  %2638 = vmatprep.subr.mxu0 0.0
  %2639 = vmatpush1.msra.mxu0 %v584
  %2640 = vmatprep.subr.mxu0 0.0
  %2641 = vmatpush1.msra.mxu0 %v1179
  %2642 = vmatprep.subr.mxu0 0.0
  %2643 = vmatpush1.msra.mxu0 0.0
  %2644 = vmatprep.subr.mxu0 0.0
  %2645 = vmatpush1.msra.mxu0 0.0
  %2646 = vmatprep.subr.mxu0 0.0
  %2647 = vmatpush1.msra.mxu0 0.0
  %2648 = vmatprep.subr.mxu0 0.0
  %2649 = vmatpush1.msra.mxu0 0.0
  %2650 = vmatprep.subr.mxu0 0.0
  %2651 = vmatpush1.msra.mxu0 0.0
  %2652 = vmatprep.subr.mxu0 0.0
  %2653 = vmatpush1.msra.mxu0 0.0
  %2654 = vmatprep.subr.mxu0 0.0
  %2655 = vmatpush1.msra.mxu0 0.0
  %2656 = vmatprep.subr.mxu0 0.0
  %2657 = vmatpush1.msra.mxu0 0.0
  %2658 = vmatprep.subr.mxu0 0.0
  %2659 = vmatpush1.msra.mxu0 0.0
  %2660 = vmatprep.subr.mxu0 0.0
  %2661 = vmatpush1.msra.mxu0 0.0
  %2662 = vmatprep.subr.mxu0 0.0
  %2663 = vmatpush1.msra.mxu0 0.0
  %2664 = vmatprep.subr.mxu0 0.0
  %2665 = vmatpush1.msra.mxu0 0.0
  %2666 = vmatprep.subr.mxu0 0.0
  %2667 = vmatpush1.msra.mxu0 0.0
  %2668 = vmatprep.subr.mxu0 0.0
  %2669 = vmatpush1.msra.mxu0 0.0
  %2670 = vmatprep.subr.mxu0 0.0
  %2671 = vmatpush1.msra.mxu0 0.0
  %2672 = vmatprep.subr.mxu0 0.0
  %2673 = vmatpush1.msra.mxu0 0.0
  %2674 = vmatprep.subr.mxu0 0.0
  %2675 = vmatpush1.msra.mxu0 0.0
  %2676 = vmatprep.subr.mxu0 0.0
  %2677 = vmatpush1.msra.mxu0 0.0
  %2678 = vmatprep.subr.mxu0 0.0
  %2679 = vmatpush1.msra.mxu0 0.0
  %2680 = vmatprep.subr.mxu0 0.0
  %2681 = vmatpush1.msra.mxu0 0.0
  %2682 = vmatprep.subr.mxu0 0.0
  %2683 = vmatpush1.msra.mxu0 0.0
  %2684 = vmatprep.subr.mxu0 0.0
  %2685 = vmatpush1.msra.mxu0 0.0
  %2686 = vmatprep.subr.mxu0 0.0
  %2687 = vmatpush1.msra.mxu0 0.0
  %2688 = vmatprep.subr.mxu0 0.0
  %2689 = vmatpush1.msra.mxu0 0.0
  %2690 = vmatprep.subr.mxu0 0.0
  %2691 = vmatpush1.msra.mxu0 0.0
  %2692 = vmatprep.subr.mxu0 0.0
  %2693 = vmatpush1.msra.mxu0 0.0
  %2694 = vmatprep.subr.mxu0 0.0
  %2695 = vmatpush1.msra.mxu0 0.0
  %2696 = vmatprep.mubr.f32.mxu0 0.0
  %2697 = vmatmul.mubr.f32.gmra.mrb[0].mxu0 %v2624
  %v2698 = vpop.f32.mrb[0].mxu0
  %v2699 = vadd.f32 0.0, %v2698
  %v2700 = vpop.f32.mrb[0].mxu0
  %2701 = vmatprep.mubr.f32.mxu0 0.0
  %2702 = vmatmul.mubr.f32.gmra.mrb[0].mxu0 %v2627
  %v2703 = vpop.f32.mrb[0].mxu0
  %v2704 = vadd.f32 0.0, %v2703
  %v2705 = vpop.f32.mrb[0].mxu0
  %2706 = vmatprep.mubr.f32.mxu0 0.0
  %2707 = vmatmul.mubr.f32.gmra.mrb[0].mxu0 %v2630
  %v2708 = vpop.f32.mrb[0].mxu0
  %v2709 = vadd.f32 0.0, %v2708
  %v2710 = vpop.f32.mrb[0].mxu0
  %2711 = vdwg.mxu0
  %v2713 = vsel %vm212, %v82, 0
  %v2716 = vsel %vm212, %v83, 0
  %v2719 = vsel %vm212, %v84, 0
  %2721 = vmatprep.subr.mxu0 0.0
  %2722 = vmatpush1.msra.mxu0 %v581
  %2723 = vmatprep.subr.mxu0 0.0
  %2724 = vmatpush1.msra.mxu0 %v582
  %2725 = vmatprep.subr.mxu0 0.0
  %2726 = vmatpush1.msra.mxu0 %v583
  %2727 = vmatprep.subr.mxu0 0.0
  %2728 = vmatpush1.msra.mxu0 %v584
  %2729 = vmatprep.subr.mxu0 0.0
  %2730 = vmatpush1.msra.mxu0 %v1179
  %2731 = vmatprep.subr.mxu0 0.0
  %2732 = vmatpush1.msra.mxu0 0.0
  %2733 = vmatprep.subr.mxu0 0.0
  %2734 = vmatpush1.msra.mxu0 0.0
  %2735 = vmatprep.subr.mxu0 0.0
  %2736 = vmatpush1.msra.mxu0 0.0
  %2737 = vmatprep.subr.mxu0 0.0
  %2738 = vmatpush1.msra.mxu0 0.0
  %2739 = vmatprep.subr.mxu0 0.0
  %2740 = vmatpush1.msra.mxu0 0.0
  %2741 = vmatprep.subr.mxu0 0.0
  %2742 = vmatpush1.msra.mxu0 0.0
  %2743 = vmatprep.subr.mxu0 0.0
  %2744 = vmatpush1.msra.mxu0 0.0
  %2745 = vmatprep.subr.mxu0 0.0
  %2746 = vmatpush1.msra.mxu0 0.0
  %2747 = vmatprep.subr.mxu0 0.0
  %2748 = vmatpush1.msra.mxu0 0.0
  %2749 = vmatprep.subr.mxu0 0.0
  %2750 = vmatpush1.msra.mxu0 0.0
  %2751 = vmatprep.subr.mxu0 0.0
  %2752 = vmatpush1.msra.mxu0 0.0
  %2753 = vmatprep.subr.mxu0 0.0
  %2754 = vmatpush1.msra.mxu0 0.0
  %2755 = vmatprep.subr.mxu0 0.0
  %2756 = vmatpush1.msra.mxu0 0.0
  %2757 = vmatprep.subr.mxu0 0.0
  %2758 = vmatpush1.msra.mxu0 0.0
  %2759 = vmatprep.subr.mxu0 0.0
  %2760 = vmatpush1.msra.mxu0 0.0
  %2761 = vmatprep.subr.mxu0 0.0
  %2762 = vmatpush1.msra.mxu0 0.0
  %2763 = vmatprep.subr.mxu0 0.0
  %2764 = vmatpush1.msra.mxu0 0.0
  %2765 = vmatprep.subr.mxu0 0.0
  %2766 = vmatpush1.msra.mxu0 0.0
  %2767 = vmatprep.subr.mxu0 0.0
  %2768 = vmatpush1.msra.mxu0 0.0
  %2769 = vmatprep.subr.mxu0 0.0
  %2770 = vmatpush1.msra.mxu0 0.0
  %2771 = vmatprep.subr.mxu0 0.0
  %2772 = vmatpush1.msra.mxu0 0.0
  %2773 = vmatprep.subr.mxu0 0.0
  %2774 = vmatpush1.msra.mxu0 0.0
  %2775 = vmatprep.subr.mxu0 0.0
  %2776 = vmatpush1.msra.mxu0 0.0
  %2777 = vmatprep.subr.mxu0 0.0
  %2778 = vmatpush1.msra.mxu0 0.0
  %2779 = vmatprep.subr.mxu0 0.0
  %2780 = vmatpush1.msra.mxu0 0.0
  %2781 = vmatprep.subr.mxu0 0.0
  %2782 = vmatpush1.msra.mxu0 0.0
  %2783 = vmatprep.subr.mxu0 0.0
  %2784 = vmatpush1.msra.mxu0 0.0
  %2785 = vmatprep.mubr.f32.mxu0 0.0
  %2786 = vmatmul.mubr.f32.gmra.mrb[0].mxu0 %v2713
  %v2787 = vpop.f32.mrb[0].mxu0
  %v2788 = vadd.f32 0.0, %v2787
  %v2789 = vpop.f32.mrb[0].mxu0
  %2790 = vmatprep.mubr.f32.mxu0 0.0
  %2791 = vmatmul.mubr.f32.gmra.mrb[0].mxu0 %v2716
  %v2792 = vpop.f32.mrb[0].mxu0
  %v2793 = vadd.f32 0.0, %v2792
  %v2794 = vpop.f32.mrb[0].mxu0
  %2795 = vmatprep.mubr.f32.mxu0 0.0
  %2796 = vmatmul.mubr.f32.gmra.mrb[0].mxu0 %v2719
  %v2797 = vpop.f32.mrb[0].mxu0
  %v2798 = vadd.f32 0.0, %v2797
  %v2799 = vpop.f32.mrb[0].mxu0
  %2800 = vdwg.mxu0
  %v2802 = vsel %vm212, %v85, 0
  %v2805 = vsel %vm212, %v86, 0
  %v2808 = vsel %vm212, %v87, 0
  %2810 = vmatprep.subr.mxu0 0.0
  %2811 = vmatpush1.msra.mxu0 %v581
  %2812 = vmatprep.subr.mxu0 0.0
  %2813 = vmatpush1.msra.mxu0 %v582
  %2814 = vmatprep.subr.mxu0 0.0
  %2815 = vmatpush1.msra.mxu0 %v583
  %2816 = vmatprep.subr.mxu0 0.0
  %2817 = vmatpush1.msra.mxu0 %v584
  %2818 = vmatprep.subr.mxu0 0.0
  %2819 = vmatpush1.msra.mxu0 %v1179
  %2820 = vmatprep.subr.mxu0 0.0
  %2821 = vmatpush1.msra.mxu0 0.0
  %2822 = vmatprep.subr.mxu0 0.0
  %2823 = vmatpush1.msra.mxu0 0.0
  %2824 = vmatprep.subr.mxu0 0.0
  %2825 = vmatpush1.msra.mxu0 0.0
  %2826 = vmatprep.subr.mxu0 0.0
  %2827 = vmatpush1.msra.mxu0 0.0
  %2828 = vmatprep.subr.mxu0 0.0
  %2829 = vmatpush1.msra.mxu0 0.0
  %2830 = vmatprep.subr.mxu0 0.0
  %2831 = vmatpush1.msra.mxu0 0.0
  %2832 = vmatprep.subr.mxu0 0.0
  %2833 = vmatpush1.msra.mxu0 0.0
  %2834 = vmatprep.subr.mxu0 0.0
  %2835 = vmatpush1.msra.mxu0 0.0
  %2836 = vmatprep.subr.mxu0 0.0
  %2837 = vmatpush1.msra.mxu0 0.0
  %2838 = vmatprep.subr.mxu0 0.0
  %2839 = vmatpush1.msra.mxu0 0.0
  %2840 = vmatprep.subr.mxu0 0.0
  %2841 = vmatpush1.msra.mxu0 0.0
  %2842 = vmatprep.subr.mxu0 0.0
  %2843 = vmatpush1.msra.mxu0 0.0
  %2844 = vmatprep.subr.mxu0 0.0
  %2845 = vmatpush1.msra.mxu0 0.0
  %2846 = vmatprep.subr.mxu0 0.0
  %2847 = vmatpush1.msra.mxu0 0.0
  %2848 = vmatprep.subr.mxu0 0.0
  %2849 = vmatpush1.msra.mxu0 0.0
  %2850 = vmatprep.subr.mxu0 0.0
  %2851 = vmatpush1.msra.mxu0 0.0
  %2852 = vmatprep.subr.mxu0 0.0
  %2853 = vmatpush1.msra.mxu0 0.0
  %2854 = vmatprep.subr.mxu0 0.0
  %2855 = vmatpush1.msra.mxu0 0.0
  %2856 = vmatprep.subr.mxu0 0.0
  %2857 = vmatpush1.msra.mxu0 0.0
  %2858 = vmatprep.subr.mxu0 0.0
  %2859 = vmatpush1.msra.mxu0 0.0
  %2860 = vmatprep.subr.mxu0 0.0
  %2861 = vmatpush1.msra.mxu0 0.0
  %2862 = vmatprep.subr.mxu0 0.0
  %2863 = vmatpush1.msra.mxu0 0.0
  %2864 = vmatprep.subr.mxu0 0.0
  %2865 = vmatpush1.msra.mxu0 0.0
  %2866 = vmatprep.subr.mxu0 0.0
  %2867 = vmatpush1.msra.mxu0 0.0
  %2868 = vmatprep.subr.mxu0 0.0
  %2869 = vmatpush1.msra.mxu0 0.0
  %2870 = vmatprep.subr.mxu0 0.0
  %2871 = vmatpush1.msra.mxu0 0.0
  %2872 = vmatprep.subr.mxu0 0.0
  %2873 = vmatpush1.msra.mxu0 0.0
  %2874 = vmatprep.mubr.f32.mxu0 0.0
  %2875 = vmatmul.mubr.f32.gmra.mrb[0].mxu0 %v2802
  %v2876 = vpop.f32.mrb[0].mxu0
  %v2877 = vadd.f32 0.0, %v2876
  %v2878 = vpop.f32.mrb[0].mxu0
  %2879 = vmatprep.mubr.f32.mxu0 0.0
  %2880 = vmatmul.mubr.f32.gmra.mrb[0].mxu0 %v2805
  %v2881 = vpop.f32.mrb[0].mxu0
  %v2882 = vadd.f32 0.0, %v2881
  %v2883 = vpop.f32.mrb[0].mxu0
  %2884 = vmatprep.mubr.f32.mxu0 0.0
  %2885 = vmatmul.mubr.f32.gmra.mrb[0].mxu0 %v2808
  %v2886 = vpop.f32.mrb[0].mxu0
  %v2887 = vadd.f32 0.0, %v2886
  %v2888 = vpop.f32.mrb[0].mxu0
  %2889 = vdwg.mxu0
  %v2891 = vsel %vm212, %v88, 0
  %v2894 = vsel %vm212, %v89, 0
  %v2897 = vsel %vm212, %v90, 0
  %2899 = vmatprep.subr.mxu0 0.0
  %2900 = vmatpush1.msra.mxu0 %v581
  %2901 = vmatprep.subr.mxu0 0.0
  %2902 = vmatpush1.msra.mxu0 %v582
  %2903 = vmatprep.subr.mxu0 0.0
  %2904 = vmatpush1.msra.mxu0 %v583
  %2905 = vmatprep.subr.mxu0 0.0
  %2906 = vmatpush1.msra.mxu0 %v584
  %2907 = vmatprep.subr.mxu0 0.0
  %2908 = vmatpush1.msra.mxu0 %v1179
  %2909 = vmatprep.subr.mxu0 0.0
  %2910 = vmatpush1.msra.mxu0 0.0
  %2911 = vmatprep.subr.mxu0 0.0
  %2912 = vmatpush1.msra.mxu0 0.0
  %2913 = vmatprep.subr.mxu0 0.0
  %2914 = vmatpush1.msra.mxu0 0.0
  %2915 = vmatprep.subr.mxu0 0.0
  %2916 = vmatpush1.msra.mxu0 0.0
  %2917 = vmatprep.subr.mxu0 0.0
  %2918 = vmatpush1.msra.mxu0 0.0
  %2919 = vmatprep.subr.mxu0 0.0
  %2920 = vmatpush1.msra.mxu0 0.0
  %2921 = vmatprep.subr.mxu0 0.0
  %2922 = vmatpush1.msra.mxu0 0.0
  %2923 = vmatprep.subr.mxu0 0.0
  %2924 = vmatpush1.msra.mxu0 0.0
  %2925 = vmatprep.subr.mxu0 0.0
  %2926 = vmatpush1.msra.mxu0 0.0
  %2927 = vmatprep.subr.mxu0 0.0
  %2928 = vmatpush1.msra.mxu0 0.0
  %2929 = vmatprep.subr.mxu0 0.0
  %2930 = vmatpush1.msra.mxu0 0.0
  %2931 = vmatprep.subr.mxu0 0.0
  %2932 = vmatpush1.msra.mxu0 0.0
  %2933 = vmatprep.subr.mxu0 0.0
  %2934 = vmatpush1.msra.mxu0 0.0
  %2935 = vmatprep.subr.mxu0 0.0
  %2936 = vmatpush1.msra.mxu0 0.0
  %2937 = vmatprep.subr.mxu0 0.0
  %2938 = vmatpush1.msra.mxu0 0.0
  %2939 = vmatprep.subr.mxu0 0.0
  %2940 = vmatpush1.msra.mxu0 0.0
  %2941 = vmatprep.subr.mxu0 0.0
  %2942 = vmatpush1.msra.mxu0 0.0
  %2943 = vmatprep.subr.mxu0 0.0
  %2944 = vmatpush1.msra.mxu0 0.0
  %2945 = vmatprep.subr.mxu0 0.0
  %2946 = vmatpush1.msra.mxu0 0.0
  %2947 = vmatprep.subr.mxu0 0.0
  %2948 = vmatpush1.msra.mxu0 0.0
  %2949 = vmatprep.subr.mxu0 0.0
  %2950 = vmatpush1.msra.mxu0 0.0
  %2951 = vmatprep.subr.mxu0 0.0
  %2952 = vmatpush1.msra.mxu0 0.0
  %2953 = vmatprep.subr.mxu0 0.0
  %2954 = vmatpush1.msra.mxu0 0.0
  %2955 = vmatprep.subr.mxu0 0.0
  %2956 = vmatpush1.msra.mxu0 0.0
  %2957 = vmatprep.subr.mxu0 0.0
  %2958 = vmatpush1.msra.mxu0 0.0
  %2959 = vmatprep.subr.mxu0 0.0
  %2960 = vmatpush1.msra.mxu0 0.0
  %2961 = vmatprep.subr.mxu0 0.0
  %2962 = vmatpush1.msra.mxu0 0.0
  %2963 = vmatprep.mubr.f32.mxu0 0.0
  %2964 = vmatmul.mubr.f32.gmra.mrb[0].mxu0 %v2891
  %v2965 = vpop.f32.mrb[0].mxu0
  %v2966 = vadd.f32 0.0, %v2965
  %v2967 = vpop.f32.mrb[0].mxu0
  %2968 = vmatprep.mubr.f32.mxu0 0.0
  %2969 = vmatmul.mubr.f32.gmra.mrb[0].mxu0 %v2894
  %v2970 = vpop.f32.mrb[0].mxu0
  %v2971 = vadd.f32 0.0, %v2970
  %v2972 = vpop.f32.mrb[0].mxu0
  %2973 = vmatprep.mubr.f32.mxu0 0.0
  %2974 = vmatmul.mubr.f32.gmra.mrb[0].mxu0 %v2897
  %v2975 = vpop.f32.mrb[0].mxu0
  %v2976 = vadd.f32 0.0, %v2975
  %v2977 = vpop.f32.mrb[0].mxu0
  %2978 = vdwg.mxu0
  %2982 = vrot.lane.b32.xlu0 %v2788, 16
  %v2983 = vpop.permute.xlu0 %2982
  %2984 = vrot.lane.b32.xlu0 %v2793, 16
  %v2985 = vpop.permute.xlu0 %2984
  %2986 = vrot.lane.b32.xlu0 %v2798, 16
  %v2987 = vpop.permute.xlu0 %2986
  %2994 = vrot.lane.b32.xlu0 %v2877, 32
  %v2995 = vpop.permute.xlu0 %2994
  %2996 = vrot.lane.b32.xlu0 %v2882, 32
  %v2997 = vpop.permute.xlu0 %2996
  %2998 = vrot.lane.b32.xlu0 %v2887, 32
  %v2999 = vpop.permute.xlu0 %2998
  %3006 = vrot.lane.b32.xlu0 %v2966, 48
  %v3007 = vpop.permute.xlu0 %3006
  %3008 = vrot.lane.b32.xlu0 %v2971, 48
  %v3009 = vpop.permute.xlu0 %3008
  %3010 = vrot.lane.b32.xlu0 %v2976, 48
  %v3011 = vpop.permute.xlu0 %3010
  %3018 = vrot.lane.b32.xlu0 %v978, 64
  %v3019 = vpop.permute.xlu0 %3018
  %3020 = vrot.lane.b32.xlu0 %v979, 64
  %v3021 = vpop.permute.xlu0 %3020
  %3022 = vrot.lane.b32.xlu0 %v980, 64
  %v3023 = vpop.permute.xlu0 %3022
  %v3027 = vsel %vm106, %v2699, %v2983
  %v3028 = vsel %vm106, %v2704, %v2985
  %v3029 = vsel %vm106, %v2709, %v2987
  %v3030 = vsel %vm356, %v3027, %v2995
  %v3031 = vsel %vm356, %v3028, %v2997
  %v3032 = vsel %vm356, %v3029, %v2999
  %v3033 = vsel %vm1906, %v3030, %v3007
  %v3034 = vsel %vm1906, %v3031, %v3009
  %v3035 = vsel %vm1906, %v3032, %v3011
  %v3036 = vsel %vm1912, %v3033, %v3019
  %v3037 = vsel %vm1912, %v3034, %v3021
  %v3038 = vsel %vm1912, %v3035, %v3023
  %vm3039 = vcmask 179200
  %v3041 = vsel %vm3039, %v91, 0
  %v3044 = vsel %vm3039, %v92, 0
  %v3047 = vsel %vm3039, %v93, 0
  %v3050 = vsel %vm3039, %v94, 0
  %v3053 = vsel %vm3039, %v95, 0
  %vm3055 = vcmask 1045504
  %v3057 = vsel %vm3055, %v3038, 0
  %3059 = vmatprep.subr.mxu0 0.0
  %3060 = vmatpush1.msra.mxu0 %v3036
  %3061 = vmatprep.subr.mxu0 0.0
  %3062 = vmatpush1.msra.mxu0 %v3037
  %3063 = vmatprep.subr.mxu0 0.0
  %3064 = vmatpush1.msra.mxu0 %v3057
  %3065 = vmatprep.subr.mxu0 0.0
  %3066 = vmatpush1.msra.mxu0 0.0
  %3067 = vmatprep.subr.mxu0 0.0
  %3068 = vmatpush1.msra.mxu0 0.0
  %3069 = vmatprep.subr.mxu0 0.0
  %3070 = vmatpush1.msra.mxu0 0.0
  %3071 = vmatprep.subr.mxu0 0.0
  %3072 = vmatpush1.msra.mxu0 0.0
  %3073 = vmatprep.subr.mxu0 0.0
  %3074 = vmatpush1.msra.mxu0 0.0
  %3075 = vmatprep.subr.mxu0 0.0
  %3076 = vmatpush1.msra.mxu0 0.0
  %3077 = vmatprep.subr.mxu0 0.0
  %3078 = vmatpush1.msra.mxu0 0.0
  %3079 = vmatprep.subr.mxu0 0.0
  %3080 = vmatpush1.msra.mxu0 0.0
  %3081 = vmatprep.subr.mxu0 0.0
  %3082 = vmatpush1.msra.mxu0 0.0
  %3083 = vmatprep.subr.mxu0 0.0
  %3084 = vmatpush1.msra.mxu0 0.0
  %3085 = vmatprep.subr.mxu0 0.0
  %3086 = vmatpush1.msra.mxu0 0.0
  %3087 = vmatprep.subr.mxu0 0.0
  %3088 = vmatpush1.msra.mxu0 0.0
  %3089 = vmatprep.subr.mxu0 0.0
  %3090 = vmatpush1.msra.mxu0 0.0
  %3091 = vmatprep.subr.mxu0 0.0
  %3092 = vmatpush1.msra.mxu0 0.0
  %3093 = vmatprep.subr.mxu0 0.0
  %3094 = vmatpush1.msra.mxu0 0.0
  %3095 = vmatprep.subr.mxu0 0.0
  %3096 = vmatpush1.msra.mxu0 0.0
  %3097 = vmatprep.subr.mxu0 0.0
  %3098 = vmatpush1.msra.mxu0 0.0
  %3099 = vmatprep.subr.mxu0 0.0
  %3100 = vmatpush1.msra.mxu0 0.0
  %3101 = vmatprep.subr.mxu0 0.0
  %3102 = vmatpush1.msra.mxu0 0.0
  %3103 = vmatprep.subr.mxu0 0.0
  %3104 = vmatpush1.msra.mxu0 0.0
  %3105 = vmatprep.subr.mxu0 0.0
  %3106 = vmatpush1.msra.mxu0 0.0
  %3107 = vmatprep.subr.mxu0 0.0
  %3108 = vmatpush1.msra.mxu0 0.0
  %3109 = vmatprep.subr.mxu0 0.0
  %3110 = vmatpush1.msra.mxu0 0.0
  %3111 = vmatprep.subr.mxu0 0.0
  %3112 = vmatpush1.msra.mxu0 0.0
  %3113 = vmatprep.subr.mxu0 0.0
  %3114 = vmatpush1.msra.mxu0 0.0
  %3115 = vmatprep.subr.mxu0 0.0
  %3116 = vmatpush1.msra.mxu0 0.0
  %3117 = vmatprep.subr.mxu0 0.0
  %3118 = vmatpush1.msra.mxu0 0.0
  %3119 = vmatprep.subr.mxu0 0.0
  %3120 = vmatpush1.msra.mxu0 0.0
  %3121 = vmatprep.subr.mxu0 0.0
  %3122 = vmatpush1.msra.mxu0 0.0
  %3123 = vmatprep.mubr.f32.mxu0 0.0
  %3124 = vmatmul.mubr.f32.gmra.mrb[0].mxu0 %v3041
  %v3125 = vpop.f32.mrb[0].mxu0
  %v3126 = vadd.f32 0.0, %v3125
  %v3127 = vpop.f32.mrb[0].mxu0
  %3128 = vmatprep.mubr.f32.mxu0 0.0
  %3129 = vmatmul.mubr.f32.gmra.mrb[0].mxu0 %v3044
  %v3130 = vpop.f32.mrb[0].mxu0
  %v3131 = vadd.f32 0.0, %v3130
  %v3132 = vpop.f32.mrb[0].mxu0
  %3133 = vmatprep.mubr.f32.mxu0 0.0
  %3134 = vmatmul.mubr.f32.gmra.mrb[0].mxu0 %v3047
  %v3135 = vpop.f32.mrb[0].mxu0
  %v3136 = vadd.f32 0.0, %v3135
  %v3137 = vpop.f32.mrb[0].mxu0
  %3138 = vmatprep.mubr.f32.mxu0 0.0
  %3139 = vmatmul.mubr.f32.gmra.mrb[0].mxu0 %v3050
  %v3140 = vpop.f32.mrb[0].mxu0
  %v3141 = vadd.f32 0.0, %v3140
  %v3142 = vpop.f32.mrb[0].mxu0
  %3143 = vmatprep.mubr.f32.mxu0 0.0
  %3144 = vmatmul.mubr.f32.gmra.mrb[0].mxu0 %v3053
  %v3145 = vpop.f32.mrb[0].mxu0
  %v3146 = vadd.f32 0.0, %v3145
  %v3147 = vpop.f32.mrb[0].mxu0
  %3148 = vdwg.mxu0
  %v3150 = vsel %vm3039, %v96, 0
  %v3153 = vsel %vm3039, %v97, 0
  %v3156 = vsel %vm3039, %v98, 0
  %v3159 = vsel %vm3039, %v99, 0
  %v3162 = vsel %vm3039, %v100, 0
  %3164 = vmatprep.subr.mxu0 0.0
  %3165 = vmatpush1.msra.mxu0 %v3036
  %3166 = vmatprep.subr.mxu0 0.0
  %3167 = vmatpush1.msra.mxu0 %v3037
  %3168 = vmatprep.subr.mxu0 0.0
  %3169 = vmatpush1.msra.mxu0 %v3057
  %3170 = vmatprep.subr.mxu0 0.0
  %3171 = vmatpush1.msra.mxu0 0.0
  %3172 = vmatprep.subr.mxu0 0.0
  %3173 = vmatpush1.msra.mxu0 0.0
  %3174 = vmatprep.subr.mxu0 0.0
  %3175 = vmatpush1.msra.mxu0 0.0
  %3176 = vmatprep.subr.mxu0 0.0
  %3177 = vmatpush1.msra.mxu0 0.0
  %3178 = vmatprep.subr.mxu0 0.0
  %3179 = vmatpush1.msra.mxu0 0.0
  %3180 = vmatprep.subr.mxu0 0.0
  %3181 = vmatpush1.msra.mxu0 0.0
  %3182 = vmatprep.subr.mxu0 0.0
  %3183 = vmatpush1.msra.mxu0 0.0
  %3184 = vmatprep.subr.mxu0 0.0
  %3185 = vmatpush1.msra.mxu0 0.0
  %3186 = vmatprep.subr.mxu0 0.0
  %3187 = vmatpush1.msra.mxu0 0.0
  %3188 = vmatprep.subr.mxu0 0.0
  %3189 = vmatpush1.msra.mxu0 0.0
  %3190 = vmatprep.subr.mxu0 0.0
  %3191 = vmatpush1.msra.mxu0 0.0
  %3192 = vmatprep.subr.mxu0 0.0
  %3193 = vmatpush1.msra.mxu0 0.0
  %3194 = vmatprep.subr.mxu0 0.0
  %3195 = vmatpush1.msra.mxu0 0.0
  %3196 = vmatprep.subr.mxu0 0.0
  %3197 = vmatpush1.msra.mxu0 0.0
  %3198 = vmatprep.subr.mxu0 0.0
  %3199 = vmatpush1.msra.mxu0 0.0
  %3200 = vmatprep.subr.mxu0 0.0
  %3201 = vmatpush1.msra.mxu0 0.0
  %3202 = vmatprep.subr.mxu0 0.0
  %3203 = vmatpush1.msra.mxu0 0.0
  %3204 = vmatprep.subr.mxu0 0.0
  %3205 = vmatpush1.msra.mxu0 0.0
  %3206 = vmatprep.subr.mxu0 0.0
  %3207 = vmatpush1.msra.mxu0 0.0
  %3208 = vmatprep.subr.mxu0 0.0
  %3209 = vmatpush1.msra.mxu0 0.0
  %3210 = vmatprep.subr.mxu0 0.0
  %3211 = vmatpush1.msra.mxu0 0.0
  %3212 = vmatprep.subr.mxu0 0.0
  %3213 = vmatpush1.msra.mxu0 0.0
  %3214 = vmatprep.subr.mxu0 0.0
  %3215 = vmatpush1.msra.mxu0 0.0
  %3216 = vmatprep.subr.mxu0 0.0
  %3217 = vmatpush1.msra.mxu0 0.0
  %3218 = vmatprep.subr.mxu0 0.0
  %3219 = vmatpush1.msra.mxu0 0.0
  %3220 = vmatprep.subr.mxu0 0.0
  %3221 = vmatpush1.msra.mxu0 0.0
  %3222 = vmatprep.subr.mxu0 0.0
  %3223 = vmatpush1.msra.mxu0 0.0
  %3224 = vmatprep.subr.mxu0 0.0
  %3225 = vmatpush1.msra.mxu0 0.0
  %3226 = vmatprep.subr.mxu0 0.0
  %3227 = vmatpush1.msra.mxu0 0.0
  %3228 = vmatprep.mubr.f32.mxu0 0.0
  %3229 = vmatmul.mubr.f32.gmra.mrb[0].mxu0 %v3150
  %v3230 = vpop.f32.mrb[0].mxu0
  %v3231 = vadd.f32 0.0, %v3230
  %v3232 = vpop.f32.mrb[0].mxu0
  %3233 = vmatprep.mubr.f32.mxu0 0.0
  %3234 = vmatmul.mubr.f32.gmra.mrb[0].mxu0 %v3153
  %v3235 = vpop.f32.mrb[0].mxu0
  %v3236 = vadd.f32 0.0, %v3235
  %v3237 = vpop.f32.mrb[0].mxu0
  %3238 = vmatprep.mubr.f32.mxu0 0.0
  %3239 = vmatmul.mubr.f32.gmra.mrb[0].mxu0 %v3156
  %v3240 = vpop.f32.mrb[0].mxu0
  %v3241 = vadd.f32 0.0, %v3240
  %v3242 = vpop.f32.mrb[0].mxu0
  %3243 = vmatprep.mubr.f32.mxu0 0.0
  %3244 = vmatmul.mubr.f32.gmra.mrb[0].mxu0 %v3159
  %v3245 = vpop.f32.mrb[0].mxu0
  %v3246 = vadd.f32 0.0, %v3245
  %v3247 = vpop.f32.mrb[0].mxu0
  %3248 = vmatprep.mubr.f32.mxu0 0.0
  %3249 = vmatmul.mubr.f32.gmra.mrb[0].mxu0 %v3162
  %v3250 = vpop.f32.mrb[0].mxu0
  %v3251 = vadd.f32 0.0, %v3250
  %v3252 = vpop.f32.mrb[0].mxu0
  %3253 = vdwg.mxu0
  %3259 = vrot.lane.b32.xlu0 %v3231, 80
  %v3260 = vpop.permute.xlu0 %3259
  %3261 = vrot.lane.b32.xlu0 %v3236, 80
  %v3262 = vpop.permute.xlu0 %3261
  %3263 = vrot.lane.b32.xlu0 %v3241, 80
  %v3264 = vpop.permute.xlu0 %3263
  %3265 = vrot.lane.b32.xlu0 %v3246, 80
  %v3266 = vpop.permute.xlu0 %3265
  %3267 = vrot.lane.b32.xlu0 %v3251, 80
  %v3268 = vpop.permute.xlu0 %3267
  %v3274 = vsel %vm1918, %v3126, %v3260
  %v3275 = vsel %vm1918, %v3131, %v3262
  %v3276 = vsel %vm1918, %v3136, %v3264
  %v3277 = vsel %vm1918, %v3141, %v3266
  %v3278 = vsel %vm1918, %v3146, %v3268
  %3284 = vrot.lane.b32.xlu0 %v3274, 16
  %v3285 = vpop.permute.xlu0 %3284
  %3286 = vrot.lane.b32.xlu0 %v3260, 16
  %v3287 = vpop.permute.xlu0 %3286
  %3288 = vrot.lane.b32.xlu0 %v3275, 16
  %v3289 = vpop.permute.xlu0 %3288
  %3290 = vrot.lane.b32.xlu0 %v3262, 16
  %v3291 = vpop.permute.xlu0 %3290
  %3292 = vrot.lane.b32.xlu0 %v3276, 16
  %v3293 = vpop.permute.xlu0 %3292
  %3294 = vrot.lane.b32.xlu0 %v3264, 16
  %v3295 = vpop.permute.xlu0 %3294
  %3296 = vrot.lane.b32.xlu0 %v3277, 16
  %v3297 = vpop.permute.xlu0 %3296
  %3298 = vrot.lane.b32.xlu0 %v3266, 16
  %v3299 = vpop.permute.xlu0 %3298
  %3300 = vrot.lane.b32.xlu0 %v3278, 16
  %v3301 = vpop.permute.xlu0 %3300
  %3302 = vrot.lane.b32.xlu0 %v3268, 16
  %v3303 = vpop.permute.xlu0 %3302
  %v3304 = vsel %vm106, %v3285, %v3287
  %v3305 = vsel %vm106, %v3289, %v3291
  %v3306 = vsel %vm106, %v3293, %v3295
  %v3307 = vsel %vm106, %v3297, %v3299
  %v3308 = vsel %vm106, %v3301, %v3303
  %v3314 = vsel %vm106, %v581, %v3285
  %v3315 = vsel %vm106, %v582, %v3289
  %v3316 = vsel %vm106, %v583, %v3293
  %v3317 = vsel %vm106, %v584, %v3297
  %v3318 = vsel %vm106, %v585, %v3301
  %v3319 = vld [vmem:[%s3 + $0x50] sm:$0xff]
  %v3320 = vld [vmem:[%s3 + $0x58] sm:$0xff]
  %v3321 = vld [vmem:[%s3 + $0x60] sm:$0xff]
  %v3322 = vld [vmem:[%s3 + $0x68] sm:$0xff]
  %v3323 = vld [vmem:[%s3 + $0x70] sm:$0xff]
  %v3324 = vld [vmem:[%s3 + $0x78] sm:$0xff]
  %v3325 = vld [vmem:[%s3 + $0x80] sm:$0xff]
  %v3326 = vld [vmem:[%s3 + $0x88] sm:$0xff]
  %v3327 = vld [vmem:[%s3 + $0x90] sm:$0xff]
  %v3328 = vld [vmem:[%s3 + $0x98] sm:$0xff]
  %v3329 = vld [vmem:[%s3 + $0xa0] sm:$0xff]
  %v3330 = vld [vmem:[%s3 + $0xa8] sm:$0xff]
  %v3331 = vld [vmem:[%s3 + $0xb0] sm:$0xff]
  %v3332 = vld [vmem:[%s3 + $0xb8] sm:$0xff]
  %v3333 = vld [vmem:[%s3 + $0xc0] sm:$0xff]
  %v3334 = vld [vmem:[%s3 + $0xc8] sm:$0xff]
  %v3335 = vld [vmem:[%s3 + $0xd0] sm:$0xff]
  %v3336 = vld [vmem:[%s3 + $0xd8] sm:$0xff]
  %v3337 = vld [vmem:[%s3 + $0xe0] sm:$0xff]
  %v3338 = vld [vmem:[%s3 + $0xe8] sm:$0xff]
  %v3339 = vld [vmem:[%s3 + $0xf0] sm:$0xff]
  %v3340 = vld [vmem:[%s3 + $0xf8] sm:$0xff]
  %v3341 = vsel %vm1906, %v3304, 0
  %v3343 = vsel %vm1906, %v3305, 0
  %v3345 = vsel %vm1906, %v3306, 0
  %v3347 = vsel %vm1906, %v3307, 0
  %v3349 = vsel %vm1906, %v3308, 0
  %3351 = vmatprep.subr.mxu0 0.0
  %3352 = vmatpush1.msra.mxu0 %v3319
  %3353 = vmatprep.subr.mxu0 0.0
  %3354 = vmatpush1.msra.mxu0 %v3320
  %3355 = vmatprep.subr.mxu0 0.0
  %3356 = vmatpush1.msra.mxu0 %v3321
  %3357 = vmatprep.subr.mxu0 0.0
  %3358 = vmatpush1.msra.mxu0 %v3322
  %3359 = vmatprep.subr.mxu0 0.0
  %3360 = vmatpush1.msra.mxu0 %v3323
  %3361 = vmatprep.subr.mxu0 0.0
  %3362 = vmatpush1.msra.mxu0 %v3324
  %3363 = vmatprep.subr.mxu0 0.0
  %3364 = vmatpush1.msra.mxu0 %v3325
  %3365 = vmatprep.subr.mxu0 0.0
  %3366 = vmatpush1.msra.mxu0 %v3326
  %3367 = vmatprep.subr.mxu0 0.0
  %3368 = vmatpush1.msra.mxu0 %v3327
  %3369 = vmatprep.subr.mxu0 0.0
  %3370 = vmatpush1.msra.mxu0 %v3328
  %3371 = vmatprep.subr.mxu0 0.0
  %3372 = vmatpush1.msra.mxu0 %v3329
  %3373 = vmatprep.subr.mxu0 0.0
  %3374 = vmatpush1.msra.mxu0 %v3330
  %3375 = vmatprep.subr.mxu0 0.0
  %3376 = vmatpush1.msra.mxu0 %v3331
  %3377 = vmatprep.subr.mxu0 0.0
  %3378 = vmatpush1.msra.mxu0 %v3332
  %3379 = vmatprep.subr.mxu0 0.0
  %3380 = vmatpush1.msra.mxu0 %v3333
  %3381 = vmatprep.subr.mxu0 0.0
  %3382 = vmatpush1.msra.mxu0 %v3334
  %3383 = vmatprep.subr.mxu0 0.0
  %3384 = vmatpush1.msra.mxu0 %v3335
  %3385 = vmatprep.subr.mxu0 0.0
  %3386 = vmatpush1.msra.mxu0 %v3336
  %3387 = vmatprep.subr.mxu0 0.0
  %3388 = vmatpush1.msra.mxu0 %v3337
  %3389 = vmatprep.subr.mxu0 0.0
  %3390 = vmatpush1.msra.mxu0 %v3338
  %3391 = vmatprep.subr.mxu0 0.0
  %3392 = vmatpush1.msra.mxu0 %v3339
  %3393 = vmatprep.subr.mxu0 0.0
  %3394 = vmatpush1.msra.mxu0 %v3340
  %3395 = vmatprep.subr.mxu0 0.0
  %3396 = vmatpush1.msra.mxu0 0.0
  %3397 = vmatprep.subr.mxu0 0.0
  %3398 = vmatpush1.msra.mxu0 0.0
  %3399 = vmatprep.subr.mxu0 0.0
  %3400 = vmatpush1.msra.mxu0 0.0
  %3401 = vmatprep.subr.mxu0 0.0
  %3402 = vmatpush1.msra.mxu0 0.0
  %3403 = vmatprep.subr.mxu0 0.0
  %3404 = vmatpush1.msra.mxu0 0.0
  %3405 = vmatprep.subr.mxu0 0.0
  %3406 = vmatpush1.msra.mxu0 0.0
  %3407 = vmatprep.subr.mxu0 0.0
  %3408 = vmatpush1.msra.mxu0 0.0
  %3409 = vmatprep.subr.mxu0 0.0
  %3410 = vmatpush1.msra.mxu0 0.0
  %3411 = vmatprep.subr.mxu0 0.0
  %3412 = vmatpush1.msra.mxu0 0.0
  %3413 = vmatprep.subr.mxu0 0.0
  %3414 = vmatpush1.msra.mxu0 0.0
  %3415 = vmatprep.mubr.f32.mxu0 %v3341
  %3416 = vmatmul.mubr.f32.gmra.mrb[0].mxu0 %v3314
  %v3417 = vpop.f32.mrb[0].mxu0
  %v3418 = vadd.f32 0.0, %v3417
  %v3419 = vpop.f32.mrb[0].mxu0
  %3420 = vmatprep.mubr.f32.mxu0 %v3343
  %3421 = vmatmul.mubr.f32.gmra.mrb[0].mxu0 %v3315
  %v3422 = vpop.f32.mrb[0].mxu0
  %v3423 = vadd.f32 0.0, %v3422
  %v3424 = vpop.f32.mrb[0].mxu0
  %3425 = vmatprep.mubr.f32.mxu0 %v3345
  %3426 = vmatmul.mubr.f32.gmra.mrb[0].mxu0 %v3316
  %v3427 = vpop.f32.mrb[0].mxu0
  %v3428 = vadd.f32 0.0, %v3427
  %v3429 = vpop.f32.mrb[0].mxu0
  %3430 = vmatprep.mubr.f32.mxu0 %v3347
  %3431 = vmatmul.mubr.f32.gmra.mrb[0].mxu0 %v3317
  %v3432 = vpop.f32.mrb[0].mxu0
  %v3433 = vadd.f32 0.0, %v3432
  %v3434 = vpop.f32.mrb[0].mxu0
  %3435 = vmatprep.mubr.f32.mxu0 %v3349
  %3436 = vmatmul.mubr.f32.gmra.mrb[0].mxu0 %v3318
  %v3437 = vpop.f32.mrb[0].mxu0
  %v3438 = vadd.f32 0.0, %v3437
  %v3439 = vpop.f32.mrb[0].mxu0
  %3440 = vdwg.mxu0
  %v3441 = vsel %vm356, %v3418, 0.0
  %v3442 = vsel %vm356, %v3423, 0.0
  %v3443 = vadd.f32 %v3441, %v3442
  %v3444 = vsel %vm356, %v3428, 0.0
  %v3445 = vadd.f32 %v3443, %v3444
  %v3446 = vsel %vm356, %v3433, 0.0
  %v3447 = vadd.f32 %v3445, %v3446
  %v3448 = vsel %vm2076, %v3438, 0.0
  %v3449 = vadd.f32 %v3447, %v3448
  %v3450 = vrot.slane %v3449, 4
  %v3451 = vadd.f32 %v3449, %v3450
  %v3452 = vrot.slane %v3451, 2
  %v3453 = vadd.f32 %v3451, %v3452
  %v3454 = vrot.slane %v3453, 1
  %v3455 = vadd.f32 %v3453, %v3454
  %v3456 = vmul.f32 %v3455, %v2085
  %v3457 = vsub.f32 %v3418, %v3456
  %v3458 = vsub.f32 %v3423, %v3456
  %v3459 = vsub.f32 %v3428, %v3456
  %v3460 = vsub.f32 %v3433, %v3456
  %v3461 = vsub.f32 %v3438, %v3456
  %v3462 = vmul.f32 %v3457, %v3457
  %v3463 = vmul.f32 %v3458, %v3458
  %v3464 = vmul.f32 %v3459, %v3459
  %v3465 = vmul.f32 %v3460, %v3460
  %v3466 = vmul.f32 %v3461, %v3461
  %v3467 = vsel %vm356, %v3462, 0.0
  %v3468 = vsel %vm356, %v3463, 0.0
  %v3469 = vadd.f32 %v3467, %v3468
  %v3470 = vsel %vm356, %v3464, 0.0
  %v3471 = vadd.f32 %v3469, %v3470
  %v3472 = vsel %vm356, %v3465, 0.0
  %v3473 = vadd.f32 %v3471, %v3472
  %v3474 = vsel %vm2076, %v3466, 0.0
  %v3475 = vadd.f32 %v3473, %v3474
  %v3476 = vrot.slane %v3475, 4
  %v3477 = vadd.f32 %v3475, %v3476
  %v3478 = vrot.slane %v3477, 2
  %v3479 = vadd.f32 %v3477, %v3478
  %v3480 = vrot.slane %v3479, 1
  %v3481 = vadd.f32 %v3479, %v3480
  %v3482 = vmul.f32 %v3481, %v2085
  %v3483 = vadd.f32 %v3482, 1e-05
  %v3484 = vrsqrt.pop %v3483
  %v3485 = vmul.f32 %v3457, %v3484
  %v3486 = vmul.f32 %v3458, %v3484
  %v3487 = vmul.f32 %v3459, %v3484
  %v3488 = vmul.f32 %v3460, %v3484
  %v3489 = vmul.f32 %v3461, %v3484
  %v3490 = vmax.f32 %v3485, 0.0
  %v3491 = vmax.f32 %v3486, 0.0
  %v3492 = vmax.f32 %v3487, 0.0
  %v3493 = vmax.f32 %v3488, 0.0
  %v3494 = vmax.f32 %v3489, 0.0
  %v3495 = vld [vmem:[%s1 + $0xd0] sm:$0xff]
  %v3496 = vld [vmem:[%s1 + $0xd8] sm:$0xff]
  %v3497 = vld [vmem:[%s1 + $0xe0] sm:$0xff]
  %v3498 = vld [vmem:[%s1 + $0xe8] sm:$0xff]
  %v3500 = vsel %vm356, %v3490, 0
  %v3503 = vsel %vm356, %v3491, 0
  %v3506 = vsel %vm356, %v3492, 0
  %v3509 = vsel %vm356, %v3493, 0
  %v3512 = vsel %vm356, %v3494, 0
  %3514 = vmatprep.subr.mxu0 0.0
  %3515 = vmatpush1.msra.mxu0 %v3495
  %3516 = vmatprep.subr.mxu0 0.0
  %3517 = vmatpush1.msra.mxu0 %v3496
  %3518 = vmatprep.subr.mxu0 0.0
  %3519 = vmatpush1.msra.mxu0 %v3497
  %3520 = vmatprep.subr.mxu0 0.0
  %3521 = vmatpush1.msra.mxu0 %v3498
  %3522 = vmatprep.subr.mxu0 0.0
  %3523 = vmatpush1.msra.mxu0 0.0
  %3524 = vmatprep.subr.mxu0 0.0
  %3525 = vmatpush1.msra.mxu0 0.0
  %3526 = vmatprep.subr.mxu0 0.0
  %3527 = vmatpush1.msra.mxu0 0.0
  %3528 = vmatprep.subr.mxu0 0.0
  %3529 = vmatpush1.msra.mxu0 0.0
  %3530 = vmatprep.subr.mxu0 0.0
  %3531 = vmatpush1.msra.mxu0 0.0
  %3532 = vmatprep.subr.mxu0 0.0
  %3533 = vmatpush1.msra.mxu0 0.0
  %3534 = vmatprep.subr.mxu0 0.0
  %3535 = vmatpush1.msra.mxu0 0.0
  %3536 = vmatprep.subr.mxu0 0.0
  %3537 = vmatpush1.msra.mxu0 0.0
  %3538 = vmatprep.subr.mxu0 0.0
  %3539 = vmatpush1.msra.mxu0 0.0
  %3540 = vmatprep.subr.mxu0 0.0
  %3541 = vmatpush1.msra.mxu0 0.0
  %3542 = vmatprep.subr.mxu0 0.0
  %3543 = vmatpush1.msra.mxu0 0.0
  %3544 = vmatprep.subr.mxu0 0.0
  %3545 = vmatpush1.msra.mxu0 0.0
  %3546 = vmatprep.subr.mxu0 0.0
  %3547 = vmatpush1.msra.mxu0 0.0
  %3548 = vmatprep.subr.mxu0 0.0
  %3549 = vmatpush1.msra.mxu0 0.0
  %3550 = vmatprep.subr.mxu0 0.0
  %3551 = vmatpush1.msra.mxu0 0.0
  %3552 = vmatprep.subr.mxu0 0.0
  %3553 = vmatpush1.msra.mxu0 0.0
  %3554 = vmatprep.subr.mxu0 0.0
  %3555 = vmatpush1.msra.mxu0 0.0
  %3556 = vmatprep.subr.mxu0 0.0
  %3557 = vmatpush1.msra.mxu0 0.0
  %3558 = vmatprep.subr.mxu0 0.0
  %3559 = vmatpush1.msra.mxu0 0.0
  %3560 = vmatprep.subr.mxu0 0.0
  %3561 = vmatpush1.msra.mxu0 0.0
  %3562 = vmatprep.subr.mxu0 0.0
  %3563 = vmatpush1.msra.mxu0 0.0
  %3564 = vmatprep.subr.mxu0 0.0
  %3565 = vmatpush1.msra.mxu0 0.0
  %3566 = vmatprep.subr.mxu0 0.0
  %3567 = vmatpush1.msra.mxu0 0.0
  %3568 = vmatprep.subr.mxu0 0.0
  %3569 = vmatpush1.msra.mxu0 0.0
  %3570 = vmatprep.subr.mxu0 0.0
  %3571 = vmatpush1.msra.mxu0 0.0
  %3572 = vmatprep.subr.mxu0 0.0
  %3573 = vmatpush1.msra.mxu0 0.0
  %3574 = vmatprep.subr.mxu0 0.0
  %3575 = vmatpush1.msra.mxu0 0.0
  %3576 = vmatprep.subr.mxu0 0.0
  %3577 = vmatpush1.msra.mxu0 0.0
  %3578 = vmatprep.mubr.f32.mxu0 0.0
  %3579 = vmatmul.mubr.f32.gmra.mrb[0].mxu0 %v3500
  %v3580 = vpop.f32.mrb[0].mxu0
  %v3581 = vadd.f32 0.0, %v3580
  %v3582 = vpop.f32.mrb[0].mxu0
  %3583 = vmatprep.mubr.f32.mxu0 0.0
  %3584 = vmatmul.mubr.f32.gmra.mrb[0].mxu0 %v3503
  %v3585 = vpop.f32.mrb[0].mxu0
  %v3586 = vadd.f32 0.0, %v3585
  %v3587 = vpop.f32.mrb[0].mxu0
  %3588 = vmatprep.mubr.f32.mxu0 0.0
  %3589 = vmatmul.mubr.f32.gmra.mrb[0].mxu0 %v3506
  %v3590 = vpop.f32.mrb[0].mxu0
  %v3591 = vadd.f32 0.0, %v3590
  %v3592 = vpop.f32.mrb[0].mxu0
  %3593 = vmatprep.mubr.f32.mxu0 0.0
  %3594 = vmatmul.mubr.f32.gmra.mrb[0].mxu0 %v3509
  %v3595 = vpop.f32.mrb[0].mxu0
  %v3596 = vadd.f32 0.0, %v3595
  %v3597 = vpop.f32.mrb[0].mxu0
  %3598 = vmatprep.mubr.f32.mxu0 0.0
  %3599 = vmatmul.mubr.f32.gmra.mrb[0].mxu0 %v3512
  %v3600 = vpop.f32.mrb[0].mxu0
  %v3601 = vadd.f32 0.0, %v3600
  %v3602 = vpop.f32.mrb[0].mxu0
  %3603 = vdwg.mxu0
  %v3604 = vsel %vm106, %v3581, 0.0
  %v3605 = vsel %vm106, %v3586, 0.0
  %v3606 = vadd.f32 %v3604, %v3605
  %v3607 = vsel %vm106, %v3591, 0.0
  %v3608 = vadd.f32 %v3606, %v3607
  %v3609 = vsel %vm106, %v3596, 0.0
  %v3610 = vadd.f32 %v3608, %v3609
  %v3611 = vsel %vm2241, %v3601, 0.0
  %v3612 = vadd.f32 %v3610, %v3611
  %v3613 = vrot.slane %v3612, 4
  %v3614 = vadd.f32 %v3612, %v3613
  %v3615 = vrot.slane %v3614, 2
  %v3616 = vadd.f32 %v3614, %v3615
  %v3617 = vrot.slane %v3616, 1
  %v3618 = vadd.f32 %v3616, %v3617
  %v3619 = vmul.f32 %v3618, %v2085
  %v3620 = vsub.f32 %v3581, %v3619
  %v3621 = vsub.f32 %v3586, %v3619
  %v3622 = vsub.f32 %v3591, %v3619
  %v3623 = vsub.f32 %v3596, %v3619
  %v3624 = vsub.f32 %v3601, %v3619
  %v3625 = vmul.f32 %v3620, %v3620
  %v3626 = vmul.f32 %v3621, %v3621
  %v3627 = vmul.f32 %v3622, %v3622
  %v3628 = vmul.f32 %v3623, %v3623
  %v3629 = vmul.f32 %v3624, %v3624
  %v3630 = vsel %vm106, %v3625, 0.0
  %v3631 = vsel %vm106, %v3626, 0.0
  %v3632 = vadd.f32 %v3630, %v3631
  %v3633 = vsel %vm106, %v3627, 0.0
  %v3634 = vadd.f32 %v3632, %v3633
  %v3635 = vsel %vm106, %v3628, 0.0
  %v3636 = vadd.f32 %v3634, %v3635
  %v3637 = vsel %vm2241, %v3629, 0.0
  %v3638 = vadd.f32 %v3636, %v3637
  %v3639 = vrot.slane %v3638, 4
  %v3640 = vadd.f32 %v3638, %v3639
  %v3641 = vrot.slane %v3640, 2
  %v3642 = vadd.f32 %v3640, %v3641
  %v3643 = vrot.slane %v3642, 1
  %v3644 = vadd.f32 %v3642, %v3643
  %v3645 = vmul.f32 %v3644, %v2085
  %v3646 = vadd.f32 %v3645, 1e-05
  %v3647 = vrsqrt.pop %v3646
  %v3648 = vmul.f32 %v3620, %v3647
  %v3649 = vmul.f32 %v3621, %v3647
  %v3650 = vmul.f32 %v3622, %v3647
  %v3651 = vmul.f32 %v3623, %v3647
  %v3652 = vmul.f32 %v3624, %v3647
  %v3653 = vmax.f32 %v3648, 0.0
  %v3654 = vmax.f32 %v3649, 0.0
  %v3655 = vmax.f32 %v3650, 0.0
  %v3656 = vmax.f32 %v3651, 0.0
  %v3657 = vmax.f32 %v3652, 0.0
  %v3658 = vld [vmem:[%s3] sm:$0xff]
  %v3659 = vld [vmem:[%s3 + $0x8] sm:$0xff]
  %v3660 = vld [vmem:[%s3 + $0x10] sm:$0xff]
  %v3661 = vld [vmem:[%s3 + $0x18] sm:$0xff]
  %v3662 = vld [vmem:[%s3 + $0x20] sm:$0xff]
  %v3663 = vld [vmem:[%s3 + $0x28] sm:$0xff]
  %v3664 = vld [vmem:[%s3 + $0x30] sm:$0xff]
  %v3665 = vld [vmem:[%s3 + $0x38] sm:$0xff]
  %v3666 = vld [vmem:[%s3 + $0x40] sm:$0xff]
  %v3667 = vld [vmem:[%s3 + $0x48] sm:$0xff]
  %v3669 = vsel %vm1918, %v3036, 0
  %v3672 = vsel %vm1918, %v3037, 0
  %v3674 = vsel %vm1918, %v3038, 0
  %3676 = vmatprep.subr.mxu0 0.0
  %3677 = vmatpush1.msra.mxu0 %v3658
  %3678 = vmatprep.subr.mxu0 0.0
  %3679 = vmatpush1.msra.mxu0 %v3659
  %3680 = vmatprep.subr.mxu0 0.0
  %3681 = vmatpush1.msra.mxu0 %v3660
  %3682 = vmatprep.subr.mxu0 0.0
  %3683 = vmatpush1.msra.mxu0 %v3661
  %3684 = vmatprep.subr.mxu0 0.0
  %3685 = vmatpush1.msra.mxu0 %v3662
  %3686 = vmatprep.subr.mxu0 0.0
  %3687 = vmatpush1.msra.mxu0 %v3663
  %3688 = vmatprep.subr.mxu0 0.0
  %3689 = vmatpush1.msra.mxu0 %v3664
  %3690 = vmatprep.subr.mxu0 0.0
  %3691 = vmatpush1.msra.mxu0 %v3665
  %3692 = vmatprep.subr.mxu0 0.0
  %3693 = vmatpush1.msra.mxu0 %v3666
  %3694 = vmatprep.subr.mxu0 0.0
  %3695 = vmatpush1.msra.mxu0 %v3667
  %3696 = vmatprep.subr.mxu0 0.0
  %3697 = vmatpush1.msra.mxu0 0.0
  %3698 = vmatprep.subr.mxu0 0.0
  %3699 = vmatpush1.msra.mxu0 0.0
  %3700 = vmatprep.subr.mxu0 0.0
  %3701 = vmatpush1.msra.mxu0 0.0
  %3702 = vmatprep.subr.mxu0 0.0
  %3703 = vmatpush1.msra.mxu0 0.0
  %3704 = vmatprep.subr.mxu0 0.0
  %3705 = vmatpush1.msra.mxu0 0.0
  %3706 = vmatprep.subr.mxu0 0.0
  %3707 = vmatpush1.msra.mxu0 0.0
  %3708 = vmatprep.subr.mxu0 0.0
  %3709 = vmatpush1.msra.mxu0 0.0
  %3710 = vmatprep.subr.mxu0 0.0
  %3711 = vmatpush1.msra.mxu0 0.0
  %3712 = vmatprep.subr.mxu0 0.0
  %3713 = vmatpush1.msra.mxu0 0.0
  %3714 = vmatprep.subr.mxu0 0.0
  %3715 = vmatpush1.msra.mxu0 0.0
  %3716 = vmatprep.subr.mxu0 0.0
  %3717 = vmatpush1.msra.mxu0 0.0
  %3718 = vmatprep.subr.mxu0 0.0
  %3719 = vmatpush1.msra.mxu0 0.0
  %3720 = vmatprep.subr.mxu0 0.0
  %3721 = vmatpush1.msra.mxu0 0.0
  %3722 = vmatprep.subr.mxu0 0.0
  %3723 = vmatpush1.msra.mxu0 0.0
  %3724 = vmatprep.subr.mxu0 0.0
  %3725 = vmatpush1.msra.mxu0 0.0
  %3726 = vmatprep.subr.mxu0 0.0
  %3727 = vmatpush1.msra.mxu0 0.0
  %3728 = vmatprep.subr.mxu0 0.0
  %3729 = vmatpush1.msra.mxu0 0.0
  %3730 = vmatprep.subr.mxu0 0.0
  %3731 = vmatpush1.msra.mxu0 0.0
  %3732 = vmatprep.subr.mxu0 0.0
  %3733 = vmatpush1.msra.mxu0 0.0
  %3734 = vmatprep.subr.mxu0 0.0
  %3735 = vmatpush1.msra.mxu0 0.0
  %3736 = vmatprep.subr.mxu0 0.0
  %3737 = vmatpush1.msra.mxu0 0.0
  %3738 = vmatprep.subr.mxu0 0.0
  %3739 = vmatpush1.msra.mxu0 0.0
  %3740 = vmatprep.mubr.f32.mxu0 0.0
  %3741 = vmatmul.mubr.f32.gmra.mrb[0].mxu0 %v3669
  %v3742 = vpop.f32.mrb[0].mxu0
  %v3743 = vadd.f32 0.0, %v3742
  %v3744 = vpop.f32.mrb[0].mxu0
  %3745 = vmatprep.mubr.f32.mxu0 0.0
  %3746 = vmatmul.mubr.f32.gmra.mrb[0].mxu0 %v3672
  %v3747 = vpop.f32.mrb[0].mxu0
  %v3748 = vadd.f32 0.0, %v3747
  %v3749 = vpop.f32.mrb[0].mxu0
  %3750 = vmatprep.mubr.f32.mxu0 0.0
  %3751 = vmatmul.mubr.f32.gmra.mrb[0].mxu0 %v3674
  %v3752 = vpop.f32.mrb[0].mxu0
  %v3753 = vadd.f32 0.0, %v3752
  %v3754 = vpop.f32.mrb[0].mxu0
  %3755 = vdwg.mxu0
  %v3756 = vsel %vm356, %v3743, 0.0
  %v3757 = vsel %vm356, %v3748, 0.0
  %v3758 = vadd.f32 %v3756, %v3757
  %vm3759 = vcmask 259072
  %v3760 = vsel %vm3759, %v3753, 0.0
  %v3761 = vadd.f32 %v3758, %v3760
  %v3762 = vrot.slane %v3761, 4
  %v3763 = vadd.f32 %v3761, %v3762
  %v3764 = vrot.slane %v3763, 2
  %v3765 = vadd.f32 %v3763, %v3764
  %v3766 = vrot.slane %v3765, 1
  %v3767 = vadd.f32 %v3765, %v3766
  %v3768 = vrcp.pop 22.0
  %v3769 = vmul.f32 %v3767, %v3768
  %v3770 = vsub.f32 %v3743, %v3769
  %v3771 = vsub.f32 %v3748, %v3769
  %v3772 = vsub.f32 %v3753, %v3769
  %v3773 = vmul.f32 %v3770, %v3770
  %v3774 = vmul.f32 %v3771, %v3771
  %v3775 = vmul.f32 %v3772, %v3772
  %v3776 = vsel %vm356, %v3773, 0.0
  %v3777 = vsel %vm356, %v3774, 0.0
  %v3778 = vadd.f32 %v3776, %v3777
  %v3779 = vsel %vm3759, %v3775, 0.0
  %v3780 = vadd.f32 %v3778, %v3779
  %v3781 = vrot.slane %v3780, 4
  %v3782 = vadd.f32 %v3780, %v3781
  %v3783 = vrot.slane %v3782, 2
  %v3784 = vadd.f32 %v3782, %v3783
  %v3785 = vrot.slane %v3784, 1
  %v3786 = vadd.f32 %v3784, %v3785
  %v3787 = vmul.f32 %v3786, %v3768
  %v3788 = vadd.f32 %v3787, 1e-05
  %v3789 = vrsqrt.pop %v3788
  %v3790 = vmul.f32 %v3770, %v3789
  %v3791 = vmul.f32 %v3771, %v3789
  %v3792 = vmul.f32 %v3772, %v3789
  %v3793 = vmax.f32 %v3790, 0.0
  %v3794 = vmax.f32 %v3791, 0.0
  %v3795 = vmax.f32 %v3792, 0.0
  %v3796 = vld [vmem:[%s1 + $0xb0] sm:$0xff]
  %v3797 = vld [vmem:[%s1 + $0xb8] sm:$0xff]
  %v3798 = vld [vmem:[%s1 + $0xc0] sm:$0xff]
  %v3799 = vld [vmem:[%s1 + $0xc8] sm:$0xff]
  %v3801 = vsel %vm356, %v3793, 0
  %v3804 = vsel %vm356, %v3794, 0
  %v3807 = vsel %vm356, %v3795, 0
  %3809 = vmatprep.subr.mxu0 0.0
  %3810 = vmatpush1.msra.mxu0 %v3796
  %3811 = vmatprep.subr.mxu0 0.0
  %3812 = vmatpush1.msra.mxu0 %v3797
  %3813 = vmatprep.subr.mxu0 0.0
  %3814 = vmatpush1.msra.mxu0 %v3798
  %3815 = vmatprep.subr.mxu0 0.0
  %3816 = vmatpush1.msra.mxu0 %v3799
  %3817 = vmatprep.subr.mxu0 0.0
  %3818 = vmatpush1.msra.mxu0 0.0
  %3819 = vmatprep.subr.mxu0 0.0
  %3820 = vmatpush1.msra.mxu0 0.0
  %3821 = vmatprep.subr.mxu0 0.0
  %3822 = vmatpush1.msra.mxu0 0.0
  %3823 = vmatprep.subr.mxu0 0.0
  %3824 = vmatpush1.msra.mxu0 0.0
  %3825 = vmatprep.subr.mxu0 0.0
  %3826 = vmatpush1.msra.mxu0 0.0
  %3827 = vmatprep.subr.mxu0 0.0
  %3828 = vmatpush1.msra.mxu0 0.0
  %3829 = vmatprep.subr.mxu0 0.0
  %3830 = vmatpush1.msra.mxu0 0.0
  %3831 = vmatprep.subr.mxu0 0.0
  %3832 = vmatpush1.msra.mxu0 0.0
  %3833 = vmatprep.subr.mxu0 0.0
  %3834 = vmatpush1.msra.mxu0 0.0
  %3835 = vmatprep.subr.mxu0 0.0
  %3836 = vmatpush1.msra.mxu0 0.0
  %3837 = vmatprep.subr.mxu0 0.0
  %3838 = vmatpush1.msra.mxu0 0.0
  %3839 = vmatprep.subr.mxu0 0.0
  %3840 = vmatpush1.msra.mxu0 0.0
  %3841 = vmatprep.subr.mxu0 0.0
  %3842 = vmatpush1.msra.mxu0 0.0
  %3843 = vmatprep.subr.mxu0 0.0
  %3844 = vmatpush1.msra.mxu0 0.0
  %3845 = vmatprep.subr.mxu0 0.0
  %3846 = vmatpush1.msra.mxu0 0.0
  %3847 = vmatprep.subr.mxu0 0.0
  %3848 = vmatpush1.msra.mxu0 0.0
  %3849 = vmatprep.subr.mxu0 0.0
  %3850 = vmatpush1.msra.mxu0 0.0
  %3851 = vmatprep.subr.mxu0 0.0
  %3852 = vmatpush1.msra.mxu0 0.0
  %3853 = vmatprep.subr.mxu0 0.0
  %3854 = vmatpush1.msra.mxu0 0.0
  %3855 = vmatprep.subr.mxu0 0.0
  %3856 = vmatpush1.msra.mxu0 0.0
  %3857 = vmatprep.subr.mxu0 0.0
  %3858 = vmatpush1.msra.mxu0 0.0
  %3859 = vmatprep.subr.mxu0 0.0
  %3860 = vmatpush1.msra.mxu0 0.0
  %3861 = vmatprep.subr.mxu0 0.0
  %3862 = vmatpush1.msra.mxu0 0.0
  %3863 = vmatprep.subr.mxu0 0.0
  %3864 = vmatpush1.msra.mxu0 0.0
  %3865 = vmatprep.subr.mxu0 0.0
  %3866 = vmatpush1.msra.mxu0 0.0
  %3867 = vmatprep.subr.mxu0 0.0
  %3868 = vmatpush1.msra.mxu0 0.0
  %3869 = vmatprep.subr.mxu0 0.0
  %3870 = vmatpush1.msra.mxu0 0.0
  %3871 = vmatprep.subr.mxu0 0.0
  %3872 = vmatpush1.msra.mxu0 0.0
  %3873 = vmatprep.mubr.f32.mxu0 0.0
  %3874 = vmatmul.mubr.f32.gmra.mrb[0].mxu0 %v3801
  %v3875 = vpop.f32.mrb[0].mxu0
  %v3876 = vadd.f32 0.0, %v3875
  %v3877 = vpop.f32.mrb[0].mxu0
  %3878 = vmatprep.mubr.f32.mxu0 0.0
  %3879 = vmatmul.mubr.f32.gmra.mrb[0].mxu0 %v3804
  %v3880 = vpop.f32.mrb[0].mxu0
  %v3881 = vadd.f32 0.0, %v3880
  %v3882 = vpop.f32.mrb[0].mxu0
  %3883 = vmatprep.mubr.f32.mxu0 0.0
  %3884 = vmatmul.mubr.f32.gmra.mrb[0].mxu0 %v3807
  %v3885 = vpop.f32.mrb[0].mxu0
  %v3886 = vadd.f32 0.0, %v3885
  %v3887 = vpop.f32.mrb[0].mxu0
  %3888 = vdwg.mxu0
  %v3889 = vsel %vm106, %v3876, 0.0
  %v3890 = vsel %vm106, %v3881, 0.0
  %v3891 = vadd.f32 %v3889, %v3890
  %vm3892 = vcmask 128000
  %v3893 = vsel %vm3892, %v3886, 0.0
  %v3894 = vadd.f32 %v3891, %v3893
  %v3895 = vrot.slane %v3894, 4
  %v3896 = vadd.f32 %v3894, %v3895
  %v3897 = vrot.slane %v3896, 2
  %v3898 = vadd.f32 %v3896, %v3897
  %v3899 = vrot.slane %v3898, 1
  %v3900 = vadd.f32 %v3898, %v3899
  %v3901 = vmul.f32 %v3900, %v3768
  %v3902 = vsub.f32 %v3876, %v3901
  %v3903 = vsub.f32 %v3881, %v3901
  %v3904 = vsub.f32 %v3886, %v3901
  %v3905 = vmul.f32 %v3902, %v3902
  %v3906 = vmul.f32 %v3903, %v3903
  %v3907 = vmul.f32 %v3904, %v3904
  %v3908 = vsel %vm106, %v3905, 0.0
  %v3909 = vsel %vm106, %v3906, 0.0
  %v3910 = vadd.f32 %v3908, %v3909
  %v3911 = vsel %vm3892, %v3907, 0.0
  %v3912 = vadd.f32 %v3910, %v3911
  %v3913 = vrot.slane %v3912, 4
  %v3914 = vadd.f32 %v3912, %v3913
  %v3915 = vrot.slane %v3914, 2
  %v3916 = vadd.f32 %v3914, %v3915
  %v3917 = vrot.slane %v3916, 1
  %v3918 = vadd.f32 %v3916, %v3917
  %v3919 = vmul.f32 %v3918, %v3768
  %v3920 = vadd.f32 %v3919, 1e-05
  %v3921 = vrsqrt.pop %v3920
  %v3922 = vmul.f32 %v3902, %v3921
  %v3923 = vmul.f32 %v3903, %v3921
  %v3924 = vmul.f32 %v3904, %v3921
  %v3925 = vmax.f32 %v3922, 0.0
  %v3926 = vmax.f32 %v3923, 0.0
  %v3927 = vmax.f32 %v3924, 0.0
  %3933 = vrot.lane.b32.xlu0 %v3653, 16
  %v3934 = vpop.permute.xlu0 %3933
  %3935 = vrot.lane.b32.xlu0 %v3654, 16
  %v3936 = vpop.permute.xlu0 %3935
  %3937 = vrot.lane.b32.xlu0 %v3655, 16
  %v3938 = vpop.permute.xlu0 %3937
  %3939 = vrot.lane.b32.xlu0 %v3656, 16
  %v3940 = vpop.permute.xlu0 %3939
  %3941 = vrot.lane.b32.xlu0 %v3657, 16
  %v3942 = vpop.permute.xlu0 %3941
  %v3948 = vsel %vm106, %v2284, %v3934
  %v3949 = vsel %vm106, %v2285, %v3936
  %v3950 = vsel %vm106, %v2286, %v3938
  %v3951 = vsel %vm106, %v2287, %v3940
  %v3952 = vsel %vm106, %v2288, %v3942
  %v3953 = vld [vmem:[%s1 + $0x130] sm:$0xff]
  %v3954 = vld [vmem:[%s1 + $0x138] sm:$0xff]
  %v3955 = vld [vmem:[%s1 + $0x140] sm:$0xff]
  %v3956 = vld [vmem:[%s1 + $0x148] sm:$0xff]
  %v3958 = vsel %vm356, %v3948, 0
  %v3961 = vsel %vm356, %v3949, 0
  %v3964 = vsel %vm356, %v3950, 0
  %v3967 = vsel %vm356, %v3951, 0
  %v3970 = vsel %vm356, %v3952, 0
  %3972 = vmatprep.subr.mxu0 0.0
  %3973 = vmatpush1.msra.mxu0 %v3953
  %3974 = vmatprep.subr.mxu0 0.0
  %3975 = vmatpush1.msra.mxu0 %v3954
  %3976 = vmatprep.subr.mxu0 0.0
  %3977 = vmatpush1.msra.mxu0 %v3955
  %3978 = vmatprep.subr.mxu0 0.0
  %3979 = vmatpush1.msra.mxu0 %v3956
  %3980 = vmatprep.subr.mxu0 0.0
  %3981 = vmatpush1.msra.mxu0 0.0
  %3982 = vmatprep.subr.mxu0 0.0
  %3983 = vmatpush1.msra.mxu0 0.0
  %3984 = vmatprep.subr.mxu0 0.0
  %3985 = vmatpush1.msra.mxu0 0.0
  %3986 = vmatprep.subr.mxu0 0.0
  %3987 = vmatpush1.msra.mxu0 0.0
  %3988 = vmatprep.subr.mxu0 0.0
  %3989 = vmatpush1.msra.mxu0 0.0
  %3990 = vmatprep.subr.mxu0 0.0
  %3991 = vmatpush1.msra.mxu0 0.0
  %3992 = vmatprep.subr.mxu0 0.0
  %3993 = vmatpush1.msra.mxu0 0.0
  %3994 = vmatprep.subr.mxu0 0.0
  %3995 = vmatpush1.msra.mxu0 0.0
  %3996 = vmatprep.subr.mxu0 0.0
  %3997 = vmatpush1.msra.mxu0 0.0
  %3998 = vmatprep.subr.mxu0 0.0
  %3999 = vmatpush1.msra.mxu0 0.0
  %4000 = vmatprep.subr.mxu0 0.0
  %4001 = vmatpush1.msra.mxu0 0.0
  %4002 = vmatprep.subr.mxu0 0.0
  %4003 = vmatpush1.msra.mxu0 0.0
  %4004 = vmatprep.subr.mxu0 0.0
  %4005 = vmatpush1.msra.mxu0 0.0
  %4006 = vmatprep.subr.mxu0 0.0
  %4007 = vmatpush1.msra.mxu0 0.0
  %4008 = vmatprep.subr.mxu0 0.0
  %4009 = vmatpush1.msra.mxu0 0.0
  %4010 = vmatprep.subr.mxu0 0.0
  %4011 = vmatpush1.msra.mxu0 0.0
  %4012 = vmatprep.subr.mxu0 0.0
  %4013 = vmatpush1.msra.mxu0 0.0
  %4014 = vmatprep.subr.mxu0 0.0
  %4015 = vmatpush1.msra.mxu0 0.0
  %4016 = vmatprep.subr.mxu0 0.0
  %4017 = vmatpush1.msra.mxu0 0.0
  %4018 = vmatprep.subr.mxu0 0.0
  %4019 = vmatpush1.msra.mxu0 0.0
  %4020 = vmatprep.subr.mxu0 0.0
  %4021 = vmatpush1.msra.mxu0 0.0
  %4022 = vmatprep.subr.mxu0 0.0
  %4023 = vmatpush1.msra.mxu0 0.0
  %4024 = vmatprep.subr.mxu0 0.0
  %4025 = vmatpush1.msra.mxu0 0.0
  %4026 = vmatprep.subr.mxu0 0.0
  %4027 = vmatpush1.msra.mxu0 0.0
  %4028 = vmatprep.subr.mxu0 0.0
  %4029 = vmatpush1.msra.mxu0 0.0
  %4030 = vmatprep.subr.mxu0 0.0
  %4031 = vmatpush1.msra.mxu0 0.0
  %4032 = vmatprep.subr.mxu0 0.0
  %4033 = vmatpush1.msra.mxu0 0.0
  %4034 = vmatprep.subr.mxu0 0.0
  %4035 = vmatpush1.msra.mxu0 0.0
  %4036 = vmatprep.mubr.f32.mxu0 0.0
  %4037 = vmatmul.mubr.f32.gmra.mrb[0].mxu0 %v3958
  %v4038 = vpop.f32.mrb[0].mxu0
  %v4039 = vadd.f32 0.0, %v4038
  %v4040 = vpop.f32.mrb[0].mxu0
  %4041 = vmatprep.mubr.f32.mxu0 0.0
  %4042 = vmatmul.mubr.f32.gmra.mrb[0].mxu0 %v3961
  %v4043 = vpop.f32.mrb[0].mxu0
  %v4044 = vadd.f32 0.0, %v4043
  %v4045 = vpop.f32.mrb[0].mxu0
  %4046 = vmatprep.mubr.f32.mxu0 0.0
  %4047 = vmatmul.mubr.f32.gmra.mrb[0].mxu0 %v3964
  %v4048 = vpop.f32.mrb[0].mxu0
  %v4049 = vadd.f32 0.0, %v4048
  %v4050 = vpop.f32.mrb[0].mxu0
  %4051 = vmatprep.mubr.f32.mxu0 0.0
  %4052 = vmatmul.mubr.f32.gmra.mrb[0].mxu0 %v3967
  %v4053 = vpop.f32.mrb[0].mxu0
  %v4054 = vadd.f32 0.0, %v4053
  %v4055 = vpop.f32.mrb[0].mxu0
  %4056 = vmatprep.mubr.f32.mxu0 0.0
  %4057 = vmatmul.mubr.f32.gmra.mrb[0].mxu0 %v3970
  %v4058 = vpop.f32.mrb[0].mxu0
  %v4059 = vadd.f32 0.0, %v4058
  %v4060 = vpop.f32.mrb[0].mxu0
  %4061 = vdwg.mxu0
  %v4062 = vsel %vm106, %v4039, 0.0
  %v4063 = vsel %vm106, %v4044, 0.0
  %v4064 = vadd.f32 %v4062, %v4063
  %v4065 = vsel %vm106, %v4049, 0.0
  %v4066 = vadd.f32 %v4064, %v4065
  %v4067 = vsel %vm106, %v4054, 0.0
  %v4068 = vadd.f32 %v4066, %v4067
  %v4069 = vsel %vm2241, %v4059, 0.0
  %v4070 = vadd.f32 %v4068, %v4069
  %v4071 = vrot.slane %v4070, 4
  %v4072 = vadd.f32 %v4070, %v4071
  %v4073 = vrot.slane %v4072, 2
  %v4074 = vadd.f32 %v4072, %v4073
  %v4075 = vrot.slane %v4074, 1
  %v4076 = vadd.f32 %v4074, %v4075
  %v4077 = vmul.f32 %v4076, %v2085
  %v4078 = vsub.f32 %v4039, %v4077
  %v4079 = vsub.f32 %v4044, %v4077
  %v4080 = vsub.f32 %v4049, %v4077
  %v4081 = vsub.f32 %v4054, %v4077
  %v4082 = vsub.f32 %v4059, %v4077
  %v4083 = vmul.f32 %v4078, %v4078
  %v4084 = vmul.f32 %v4079, %v4079
  %v4085 = vmul.f32 %v4080, %v4080
  %v4086 = vmul.f32 %v4081, %v4081
  %v4087 = vmul.f32 %v4082, %v4082
  %v4088 = vsel %vm106, %v4083, 0.0
  %v4089 = vsel %vm106, %v4084, 0.0
  %v4090 = vadd.f32 %v4088, %v4089
  %v4091 = vsel %vm106, %v4085, 0.0
  %v4092 = vadd.f32 %v4090, %v4091
  %v4093 = vsel %vm106, %v4086, 0.0
  %v4094 = vadd.f32 %v4092, %v4093
  %v4095 = vsel %vm2241, %v4087, 0.0
  %v4096 = vadd.f32 %v4094, %v4095
  %v4097 = vrot.slane %v4096, 4
  %v4098 = vadd.f32 %v4096, %v4097
  %v4099 = vrot.slane %v4098, 2
  %v4100 = vadd.f32 %v4098, %v4099
  %v4101 = vrot.slane %v4100, 1
  %v4102 = vadd.f32 %v4100, %v4101
  %v4103 = vmul.f32 %v4102, %v2085
  %v4104 = vadd.f32 %v4103, 1e-05
  %v4105 = vrsqrt.pop %v4104
  %v4106 = vmul.f32 %v4078, %v4105
  %v4107 = vmul.f32 %v4079, %v4105
  %v4108 = vmul.f32 %v4080, %v4105
  %v4109 = vmul.f32 %v4081, %v4105
  %v4110 = vmul.f32 %v4082, %v4105
  %v4111 = vmax.f32 %v4106, 0.0
  %v4112 = vmax.f32 %v4107, 0.0
  %v4113 = vmax.f32 %v4108, 0.0
  %v4114 = vmax.f32 %v4109, 0.0
  %v4115 = vmax.f32 %v4110, 0.0
  %v4116 = vadd.f32 %v1161, %v2621
  %v4117 = vadd.f32 %v1162, %v2622
  %v4118 = vadd.f32 %v581, %v4111
  %v4119 = vadd.f32 %v582, %v4112
  %v4120 = vadd.f32 %v583, %v4113
  %v4121 = vadd.f32 %v584, %v4114
  %v4122 = vadd.f32 %v585, %v4115
  %v4123 = vadd.f32 %v978, %v3925
  %v4124 = vadd.f32 %v979, %v3926
  %v4125 = vadd.f32 %v980, %v3927
  %v4127 = vsel %vm228, %v4122, 0
  %4129 = vmatprep.subr.mxu0 0.0
  %4130 = vmatpush1.msra.mxu0 %v4118
  %4131 = vmatprep.subr.mxu0 0.0
  %4132 = vmatpush1.msra.mxu0 %v4119
  %4133 = vmatprep.subr.mxu0 0.0
  %4134 = vmatpush1.msra.mxu0 %v4120
  %4135 = vmatprep.subr.mxu0 0.0
  %4136 = vmatpush1.msra.mxu0 %v4121
  %4137 = vmatprep.subr.mxu0 0.0
  %4138 = vmatpush1.msra.mxu0 %v4127
  %4139 = vmatprep.subr.mxu0 0.0
  %4140 = vmatpush1.msra.mxu0 0.0
  %4141 = vmatprep.subr.mxu0 0.0
  %4142 = vmatpush1.msra.mxu0 0.0
  %4143 = vmatprep.subr.mxu0 0.0
  %4144 = vmatpush1.msra.mxu0 0.0
  %4145 = vmatprep.subr.mxu0 0.0
  %4146 = vmatpush1.msra.mxu0 0.0
  %4147 = vmatprep.subr.mxu0 0.0
  %4148 = vmatpush1.msra.mxu0 0.0
  %4149 = vmatprep.subr.mxu0 0.0
  %4150 = vmatpush1.msra.mxu0 0.0
  %4151 = vmatprep.subr.mxu0 0.0
  %4152 = vmatpush1.msra.mxu0 0.0
  %4153 = vmatprep.subr.mxu0 0.0
  %4154 = vmatpush1.msra.mxu0 0.0
  %4155 = vmatprep.subr.mxu0 0.0
  %4156 = vmatpush1.msra.mxu0 0.0
  %4157 = vmatprep.subr.mxu0 0.0
  %4158 = vmatpush1.msra.mxu0 0.0
  %4159 = vmatprep.subr.mxu0 0.0
  %4160 = vmatpush1.msra.mxu0 0.0
  %4161 = vmatprep.subr.mxu0 0.0
  %4162 = vmatpush1.msra.mxu0 0.0
  %4163 = vmatprep.subr.mxu0 0.0
  %4164 = vmatpush1.msra.mxu0 0.0
  %4165 = vmatprep.subr.mxu0 0.0
  %4166 = vmatpush1.msra.mxu0 0.0
  %4167 = vmatprep.subr.mxu0 0.0
  %4168 = vmatpush1.msra.mxu0 0.0
  %4169 = vmatprep.subr.mxu0 0.0
  %4170 = vmatpush1.msra.mxu0 0.0
  %4171 = vmatprep.subr.mxu0 0.0
  %4172 = vmatpush1.msra.mxu0 0.0
  %4173 = vmatprep.subr.mxu0 0.0
  %4174 = vmatpush1.msra.mxu0 0.0
  %4175 = vmatprep.subr.mxu0 0.0
  %4176 = vmatpush1.msra.mxu0 0.0
  %4177 = vmatprep.subr.mxu0 0.0
  %4178 = vmatpush1.msra.mxu0 0.0
  %4179 = vmatprep.subr.mxu0 0.0
  %4180 = vmatpush1.msra.mxu0 0.0
  %4181 = vmatprep.subr.mxu0 0.0
  %4182 = vmatpush1.msra.mxu0 0.0
  %4183 = vmatprep.subr.mxu0 0.0
  %4184 = vmatpush1.msra.mxu0 0.0
  %4185 = vmatprep.subr.mxu0 0.0
  %4186 = vmatpush1.msra.mxu0 0.0
  %4187 = vmatprep.subr.mxu0 0.0
  %4188 = vmatpush1.msra.mxu0 0.0
  %4189 = vmatprep.subr.mxu0 0.0
  %4190 = vmatpush1.msra.mxu0 0.0
  %4191 = vmatprep.subr.mxu0 0.0
  %4192 = vmatpush1.msra.mxu0 0.0
  %4193 = vmatprep.mubr.f32.mxu0 0.0
  %4194 = vmatmul.mubr.f32.gmra.mrb[0].mxu0 %v2290
  %v4195 = vpop.f32.mrb[0].mxu0
  %v4196 = vadd.f32 0.0, %v4195
  %v4197 = vpop.f32.mrb[0].mxu0
  %4198 = vmatprep.mubr.f32.mxu0 0.0
  %4199 = vmatmul.mubr.f32.gmra.mrb[0].mxu0 %v2293
  %v4200 = vpop.f32.mrb[0].mxu0
  %v4201 = vadd.f32 0.0, %v4200
  %v4202 = vpop.f32.mrb[0].mxu0
  %4203 = vdwg.mxu0
  %v4205 = vsel %vm3039, %v103, 0
  %v4208 = vsel %vm3039, %v104, 0
  %v4211 = vsel %vm3055, %v4125, 0
  %4213 = vmatprep.subr.mxu0 0.0
  %4214 = vmatpush1.msra.mxu0 %v4123
  %4215 = vmatprep.subr.mxu0 0.0
  %4216 = vmatpush1.msra.mxu0 %v4124
  %4217 = vmatprep.subr.mxu0 0.0
  %4218 = vmatpush1.msra.mxu0 %v4211
  %4219 = vmatprep.subr.mxu0 0.0
  %4220 = vmatpush1.msra.mxu0 0.0
  %4221 = vmatprep.subr.mxu0 0.0
  %4222 = vmatpush1.msra.mxu0 0.0
  %4223 = vmatprep.subr.mxu0 0.0
  %4224 = vmatpush1.msra.mxu0 0.0
  %4225 = vmatprep.subr.mxu0 0.0
  %4226 = vmatpush1.msra.mxu0 0.0
  %4227 = vmatprep.subr.mxu0 0.0
  %4228 = vmatpush1.msra.mxu0 0.0
  %4229 = vmatprep.subr.mxu0 0.0
  %4230 = vmatpush1.msra.mxu0 0.0
  %4231 = vmatprep.subr.mxu0 0.0
  %4232 = vmatpush1.msra.mxu0 0.0
  %4233 = vmatprep.subr.mxu0 0.0
  %4234 = vmatpush1.msra.mxu0 0.0
  %4235 = vmatprep.subr.mxu0 0.0
  %4236 = vmatpush1.msra.mxu0 0.0
  %4237 = vmatprep.subr.mxu0 0.0
  %4238 = vmatpush1.msra.mxu0 0.0
  %4239 = vmatprep.subr.mxu0 0.0
  %4240 = vmatpush1.msra.mxu0 0.0
  %4241 = vmatprep.subr.mxu0 0.0
  %4242 = vmatpush1.msra.mxu0 0.0
  %4243 = vmatprep.subr.mxu0 0.0
  %4244 = vmatpush1.msra.mxu0 0.0
  %4245 = vmatprep.subr.mxu0 0.0
  %4246 = vmatpush1.msra.mxu0 0.0
  %4247 = vmatprep.subr.mxu0 0.0
  %4248 = vmatpush1.msra.mxu0 0.0
  %4249 = vmatprep.subr.mxu0 0.0
  %4250 = vmatpush1.msra.mxu0 0.0
  %4251 = vmatprep.subr.mxu0 0.0
  %4252 = vmatpush1.msra.mxu0 0.0
  %4253 = vmatprep.subr.mxu0 0.0
  %4254 = vmatpush1.msra.mxu0 0.0
  %4255 = vmatprep.subr.mxu0 0.0
  %4256 = vmatpush1.msra.mxu0 0.0
  %4257 = vmatprep.subr.mxu0 0.0
  %4258 = vmatpush1.msra.mxu0 0.0
  %4259 = vmatprep.subr.mxu0 0.0
  %4260 = vmatpush1.msra.mxu0 0.0
  %4261 = vmatprep.subr.mxu0 0.0
  %4262 = vmatpush1.msra.mxu0 0.0
  %4263 = vmatprep.subr.mxu0 0.0
  %4264 = vmatpush1.msra.mxu0 0.0
  %4265 = vmatprep.subr.mxu0 0.0
  %4266 = vmatpush1.msra.mxu0 0.0
  %4267 = vmatprep.subr.mxu0 0.0
  %4268 = vmatpush1.msra.mxu0 0.0
  %4269 = vmatprep.subr.mxu0 0.0
  %4270 = vmatpush1.msra.mxu0 0.0
  %4271 = vmatprep.subr.mxu0 0.0
  %4272 = vmatpush1.msra.mxu0 0.0
  %4273 = vmatprep.subr.mxu0 0.0
  %4274 = vmatpush1.msra.mxu0 0.0
  %4275 = vmatprep.subr.mxu0 0.0
  %4276 = vmatpush1.msra.mxu0 0.0
  %4277 = vmatprep.mubr.f32.mxu0 0.0
  %4278 = vmatmul.mubr.f32.gmra.mrb[0].mxu0 %v4205
  %v4279 = vpop.f32.mrb[0].mxu0
  %v4280 = vadd.f32 0.0, %v4279
  %v4281 = vpop.f32.mrb[0].mxu0
  %4282 = vmatprep.mubr.f32.mxu0 0.0
  %4283 = vmatmul.mubr.f32.gmra.mrb[0].mxu0 %v4208
  %v4284 = vpop.f32.mrb[0].mxu0
  %v4285 = vadd.f32 0.0, %v4284
  %v4286 = vpop.f32.mrb[0].mxu0
  %4287 = vdwg.mxu0
  %4290 = vrot.lane.b32.xlu0 %v4196, 16
  %v4291 = vpop.permute.xlu0 %4290
  %4292 = vrot.lane.b32.xlu0 %v4201, 16
  %v4293 = vpop.permute.xlu0 %4292
  %4298 = vrot.lane.b32.xlu0 %v4280, 32
  %v4299 = vpop.permute.xlu0 %4298
  %4300 = vrot.lane.b32.xlu0 %v4285, 32
  %v4301 = vpop.permute.xlu0 %4300
  %v4304 = vsel %vm106, %v4116, %v4291
  %v4305 = vsel %vm106, %v4117, %v4293
  %v4306 = vsel %vm356, %v4304, %v4299
  %v4307 = vsel %vm356, %v4305, %v4301
  %v4309 = vsel %vm106, %v105, 0
  %4311 = vmatprep.subr.mxu0 0.0
  %4312 = vmatpush1.msra.mxu0 %v4306
  %4313 = vmatprep.subr.mxu0 0.0
  %4314 = vmatpush1.msra.mxu0 %v4307
  %4315 = vmatprep.subr.mxu0 0.0
  %4316 = vmatpush1.msra.mxu0 0.0
  %4317 = vmatprep.subr.mxu0 0.0
  %4318 = vmatpush1.msra.mxu0 0.0
  %4319 = vmatprep.subr.mxu0 0.0
  %4320 = vmatpush1.msra.mxu0 0.0
  %4321 = vmatprep.subr.mxu0 0.0
  %4322 = vmatpush1.msra.mxu0 0.0
  %4323 = vmatprep.subr.mxu0 0.0
  %4324 = vmatpush1.msra.mxu0 0.0
  %4325 = vmatprep.subr.mxu0 0.0
  %4326 = vmatpush1.msra.mxu0 0.0
  %4327 = vmatprep.subr.mxu0 0.0
  %4328 = vmatpush1.msra.mxu0 0.0
  %4329 = vmatprep.subr.mxu0 0.0
  %4330 = vmatpush1.msra.mxu0 0.0
  %4331 = vmatprep.subr.mxu0 0.0
  %4332 = vmatpush1.msra.mxu0 0.0
  %4333 = vmatprep.subr.mxu0 0.0
  %4334 = vmatpush1.msra.mxu0 0.0
  %4335 = vmatprep.subr.mxu0 0.0
  %4336 = vmatpush1.msra.mxu0 0.0
  %4337 = vmatprep.subr.mxu0 0.0
  %4338 = vmatpush1.msra.mxu0 0.0
  %4339 = vmatprep.subr.mxu0 0.0
  %4340 = vmatpush1.msra.mxu0 0.0
  %4341 = vmatprep.subr.mxu0 0.0
  %4342 = vmatpush1.msra.mxu0 0.0
  %4343 = vmatprep.subr.mxu0 0.0
  %4344 = vmatpush1.msra.mxu0 0.0
  %4345 = vmatprep.subr.mxu0 0.0
  %4346 = vmatpush1.msra.mxu0 0.0
  %4347 = vmatprep.subr.mxu0 0.0
  %4348 = vmatpush1.msra.mxu0 0.0
  %4349 = vmatprep.subr.mxu0 0.0
  %4350 = vmatpush1.msra.mxu0 0.0
  %4351 = vmatprep.subr.mxu0 0.0
  %4352 = vmatpush1.msra.mxu0 0.0
  %4353 = vmatprep.subr.mxu0 0.0
  %4354 = vmatpush1.msra.mxu0 0.0
  %4355 = vmatprep.subr.mxu0 0.0
  %4356 = vmatpush1.msra.mxu0 0.0
  %4357 = vmatprep.subr.mxu0 0.0
  %4358 = vmatpush1.msra.mxu0 0.0
  %4359 = vmatprep.subr.mxu0 0.0
  %4360 = vmatpush1.msra.mxu0 0.0
  %4361 = vmatprep.subr.mxu0 0.0
  %4362 = vmatpush1.msra.mxu0 0.0
  %4363 = vmatprep.subr.mxu0 0.0
  %4364 = vmatpush1.msra.mxu0 0.0
  %4365 = vmatprep.subr.mxu0 0.0
  %4366 = vmatpush1.msra.mxu0 0.0
  %4367 = vmatprep.subr.mxu0 0.0
  %4368 = vmatpush1.msra.mxu0 0.0
  %4369 = vmatprep.subr.mxu0 0.0
  %4370 = vmatpush1.msra.mxu0 0.0
  %4371 = vmatprep.subr.mxu0 0.0
  %4372 = vmatpush1.msra.mxu0 0.0
  %4373 = vmatprep.subr.mxu0 0.0
  %4374 = vmatpush1.msra.mxu0 0.0
  %4375 = vmatprep.mubr.f32.mxu0 0.0
  %4376 = vmatmul.mubr.f32.gmra.mrb[0].mxu0 %v4309
  %v4377 = vpop.f32.mrb[0].mxu0
  %v4378 = vadd.f32 0.0, %v4377
  %v4379 = vpop.f32.mrb[0].mxu0
  %4380 = vdwg.mxu0
  %v4381 = vld [vmem:[%s3 + $0x238] sm:$0xff]
  %v4382 = vld [vmem:[%s3 + $0x240] sm:$0xff]
  %v4383 = vld [vmem:[%s3 + $0x248] sm:$0xff]
  %v4384 = vld [vmem:[%s3 + $0x250] sm:$0xff]
  %v4385 = vld [vmem:[%s3 + $0x258] sm:$0xff]
  %v4386 = vld [vmem:[%s3 + $0x260] sm:$0xff]
  %v4387 = vld [vmem:[%s3 + $0x230] sm:$0x1]
  %v4388 = vlaneseq
  %v4389 = vshrl.u32 %v4388, 7
  %v4390 = vsub.s32 0, %v4389
  %v4391 = vrot.slane %v4387, %v4390
  %v4393 = vsel %vm1906, %v4378, 0
  %4395 = vmatprep.subr.mxu0 0.0
  %4396 = vmatpush1.msra.mxu0 %v4381
  %4397 = vmatprep.subr.mxu0 0.0
  %4398 = vmatpush1.msra.mxu0 %v4382
  %4399 = vmatprep.subr.mxu0 0.0
  %4400 = vmatpush1.msra.mxu0 %v4383
  %4401 = vmatprep.subr.mxu0 0.0
  %4402 = vmatpush1.msra.mxu0 %v4384
  %4403 = vmatprep.subr.mxu0 0.0
  %4404 = vmatpush1.msra.mxu0 %v4385
  %4405 = vmatprep.subr.mxu0 0.0
  %4406 = vmatpush1.msra.mxu0 %v4386
  %4407 = vmatprep.subr.mxu0 0.0
  %4408 = vmatpush1.msra.mxu0 0.0
  %4409 = vmatprep.subr.mxu0 0.0
  %4410 = vmatpush1.msra.mxu0 0.0
  %4411 = vmatprep.subr.mxu0 0.0
  %4412 = vmatpush1.msra.mxu0 0.0
  %4413 = vmatprep.subr.mxu0 0.0
  %4414 = vmatpush1.msra.mxu0 0.0
  %4415 = vmatprep.subr.mxu0 0.0
  %4416 = vmatpush1.msra.mxu0 0.0
  %4417 = vmatprep.subr.mxu0 0.0
  %4418 = vmatpush1.msra.mxu0 0.0
  %4419 = vmatprep.subr.mxu0 0.0
  %4420 = vmatpush1.msra.mxu0 0.0
  %4421 = vmatprep.subr.mxu0 0.0
  %4422 = vmatpush1.msra.mxu0 0.0
  %4423 = vmatprep.subr.mxu0 0.0
  %4424 = vmatpush1.msra.mxu0 0.0
  %4425 = vmatprep.subr.mxu0 0.0
  %4426 = vmatpush1.msra.mxu0 0.0
  %4427 = vmatprep.subr.mxu0 0.0
  %4428 = vmatpush1.msra.mxu0 0.0
  %4429 = vmatprep.subr.mxu0 0.0
  %4430 = vmatpush1.msra.mxu0 0.0
  %4431 = vmatprep.subr.mxu0 0.0
  %4432 = vmatpush1.msra.mxu0 0.0
  %4433 = vmatprep.subr.mxu0 0.0
  %4434 = vmatpush1.msra.mxu0 0.0
  %4435 = vmatprep.subr.mxu0 0.0
  %4436 = vmatpush1.msra.mxu0 0.0
  %4437 = vmatprep.subr.mxu0 0.0
  %4438 = vmatpush1.msra.mxu0 0.0
  %4439 = vmatprep.subr.mxu0 0.0
  %4440 = vmatpush1.msra.mxu0 0.0
  %4441 = vmatprep.subr.mxu0 0.0
  %4442 = vmatpush1.msra.mxu0 0.0
  %4443 = vmatprep.subr.mxu0 0.0
  %4444 = vmatpush1.msra.mxu0 0.0
  %4445 = vmatprep.subr.mxu0 0.0
  %4446 = vmatpush1.msra.mxu0 0.0
  %4447 = vmatprep.subr.mxu0 0.0
  %4448 = vmatpush1.msra.mxu0 0.0
  %4449 = vmatprep.subr.mxu0 0.0
  %4450 = vmatpush1.msra.mxu0 0.0
  %4451 = vmatprep.subr.mxu0 0.0
  %4452 = vmatpush1.msra.mxu0 0.0
  %4453 = vmatprep.subr.mxu0 0.0
  %4454 = vmatpush1.msra.mxu0 0.0
  %4455 = vmatprep.subr.mxu0 0.0
  %4456 = vmatpush1.msra.mxu0 0.0
  %4457 = vmatprep.subr.mxu0 0.0
  %4458 = vmatpush1.msra.mxu0 0.0
  %4459 = vmatprep.mubr.f32.mxu0 0.0
  %4460 = vmatmul.mubr.f32.gmra.mrb[0].mxu0 %v4393
  %v4461 = vpop.f32.mrb[0].mxu0
  %v4462 = vadd.f32 %v4391, %v4461
  %v4463 = vpop.f32.mrb[0].mxu0
  %4464 = vdwg.mxu0
  %vm4465 = vcmask 254976
  %v4466 = vsel %vm4465, %v4462, 0.0
  %v4467 = vrot.slane %v4466, 4
  %v4468 = vadd.f32 %v4466, %v4467
  %v4469 = vrot.slane %v4468, 2
  %v4470 = vadd.f32 %v4468, %v4469
  %v4471 = vrot.slane %v4470, 1
  %v4472 = vadd.f32 %v4470, %v4471
  %v4473 = vrcp.pop 2.0
  %v4474 = vmul.f32 %v4472, %v4473
  %v4475 = vsub.f32 %v4462, %v4474
  %v4476 = vmul.f32 %v4475, %v4475
  %v4477 = vsel %vm4465, %v4476, 0.0
  %v4478 = vrot.slane %v4477, 4
  %v4479 = vadd.f32 %v4477, %v4478
  %v4480 = vrot.slane %v4479, 2
  %v4481 = vadd.f32 %v4479, %v4480
  %v4482 = vrot.slane %v4481, 1
  %v4483 = vadd.f32 %v4481, %v4482
  %v4484 = vmul.f32 %v4483, %v4473
  %v4485 = vadd.f32 %v4484, 1e-05
  %v4486 = vrsqrt.pop %v4485
  %v4487 = vmul.f32 %v4475, %v4486
  %v4488 = vmax.f32 %v4487, 0.0
  %v4489 = vld [vmem:[%s3 + $0x270] sm:$0xff]
  %v4490 = vld [vmem:[%s3 + $0x278] sm:$0xff]
  %v4491 = vld [vmem:[%s3 + $0x280] sm:$0xff]
  %v4492 = vld [vmem:[%s3 + $0x288] sm:$0xff]
  %v4493 = vld [vmem:[%s3 + $0x268] sm:$0x1]
  %v4494 = vlaneseq
  %v4495 = vshrl.u32 %v4494, 7
  %v4496 = vsub.s32 0, %v4495
  %v4497 = vrot.slane %v4493, %v4496
  %v4499 = vsel %vm356, %v4488, 0
  %4501 = vmatprep.subr.mxu0 0.0
  %4502 = vmatpush1.msra.mxu0 %v4489
  %4503 = vmatprep.subr.mxu0 0.0
  %4504 = vmatpush1.msra.mxu0 %v4490
  %4505 = vmatprep.subr.mxu0 0.0
  %4506 = vmatpush1.msra.mxu0 %v4491
  %4507 = vmatprep.subr.mxu0 0.0
  %4508 = vmatpush1.msra.mxu0 %v4492
  %4509 = vmatprep.subr.mxu0 0.0
  %4510 = vmatpush1.msra.mxu0 0.0
  %4511 = vmatprep.subr.mxu0 0.0
  %4512 = vmatpush1.msra.mxu0 0.0
  %4513 = vmatprep.subr.mxu0 0.0
  %4514 = vmatpush1.msra.mxu0 0.0
  %4515 = vmatprep.subr.mxu0 0.0
  %4516 = vmatpush1.msra.mxu0 0.0
  %4517 = vmatprep.subr.mxu0 0.0
  %4518 = vmatpush1.msra.mxu0 0.0
  %4519 = vmatprep.subr.mxu0 0.0
  %4520 = vmatpush1.msra.mxu0 0.0
  %4521 = vmatprep.subr.mxu0 0.0
  %4522 = vmatpush1.msra.mxu0 0.0
  %4523 = vmatprep.subr.mxu0 0.0
  %4524 = vmatpush1.msra.mxu0 0.0
  %4525 = vmatprep.subr.mxu0 0.0
  %4526 = vmatpush1.msra.mxu0 0.0
  %4527 = vmatprep.subr.mxu0 0.0
  %4528 = vmatpush1.msra.mxu0 0.0
  %4529 = vmatprep.subr.mxu0 0.0
  %4530 = vmatpush1.msra.mxu0 0.0
  %4531 = vmatprep.subr.mxu0 0.0
  %4532 = vmatpush1.msra.mxu0 0.0
  %4533 = vmatprep.subr.mxu0 0.0
  %4534 = vmatpush1.msra.mxu0 0.0
  %4535 = vmatprep.subr.mxu0 0.0
  %4536 = vmatpush1.msra.mxu0 0.0
  %4537 = vmatprep.subr.mxu0 0.0
  %4538 = vmatpush1.msra.mxu0 0.0
  %4539 = vmatprep.subr.mxu0 0.0
  %4540 = vmatpush1.msra.mxu0 0.0
  %4541 = vmatprep.subr.mxu0 0.0
  %4542 = vmatpush1.msra.mxu0 0.0
  %4543 = vmatprep.subr.mxu0 0.0
  %4544 = vmatpush1.msra.mxu0 0.0
  %4545 = vmatprep.subr.mxu0 0.0
  %4546 = vmatpush1.msra.mxu0 0.0
  %4547 = vmatprep.subr.mxu0 0.0
  %4548 = vmatpush1.msra.mxu0 0.0
  %4549 = vmatprep.subr.mxu0 0.0
  %4550 = vmatpush1.msra.mxu0 0.0
  %4551 = vmatprep.subr.mxu0 0.0
  %4552 = vmatpush1.msra.mxu0 0.0
  %4553 = vmatprep.subr.mxu0 0.0
  %4554 = vmatpush1.msra.mxu0 0.0
  %4555 = vmatprep.subr.mxu0 0.0
  %4556 = vmatpush1.msra.mxu0 0.0
  %4557 = vmatprep.subr.mxu0 0.0
  %4558 = vmatpush1.msra.mxu0 0.0
  %4559 = vmatprep.subr.mxu0 0.0
  %4560 = vmatpush1.msra.mxu0 0.0
  %4561 = vmatprep.subr.mxu0 0.0
  %4562 = vmatpush1.msra.mxu0 0.0
  %4563 = vmatprep.subr.mxu0 0.0
  %4564 = vmatpush1.msra.mxu0 0.0
  %4565 = vmatprep.mubr.f32.mxu0 0.0
  %4566 = vmatmul.mubr.f32.gmra.mrb[0].mxu0 %v4499
  %v4567 = vpop.f32.mrb[0].mxu0
  %v4568 = vadd.f32 %v4497, %v4567
  %v4569 = vpop.f32.mrb[0].mxu0
  %4570 = vdwg.mxu0
  %v4571 = vsel %vm4465, %v4568, 0.0
  %v4572 = vrot.slane %v4571, 4
  %v4573 = vadd.f32 %v4571, %v4572
  %v4574 = vrot.slane %v4573, 2
  %v4575 = vadd.f32 %v4573, %v4574
  %v4576 = vrot.slane %v4575, 1
  %v4577 = vadd.f32 %v4575, %v4576
  %v4578 = vmul.f32 %v4577, %v4473
  %v4579 = vsub.f32 %v4568, %v4578
  %v4580 = vmul.f32 %v4579, %v4579
  %v4581 = vsel %vm4465, %v4580, 0.0
  %v4582 = vrot.slane %v4581, 4
  %v4583 = vadd.f32 %v4581, %v4582
  %v4584 = vrot.slane %v4583, 2
  %v4585 = vadd.f32 %v4583, %v4584
  %v4586 = vrot.slane %v4585, 1
  %v4587 = vadd.f32 %v4585, %v4586
  %v4588 = vmul.f32 %v4587, %v4473
  %v4589 = vadd.f32 %v4588, 1e-05
  %v4590 = vrsqrt.pop %v4589
  %v4591 = vmul.f32 %v4579, %v4590
  %v4592 = vmax.f32 %v4591, 0.0
  %v4593 = vld [vmem:[%s0 + $0x8] sm:$0xff]
  %v4594 = vld [vmem:[%s0 + $0x10] sm:$0xff]
  %v4595 = vld [vmem:[%s0 + $0x18] sm:$0xff]
  %v4596 = vld [vmem:[%s0 + $0x20] sm:$0xff]
  %v4597 = vld [vmem:[%s0] sm:$0x1]
  %v4598 = vlaneseq
  %v4599 = vshrl.u32 %v4598, 7
  %v4600 = vsub.s32 0, %v4599
  %v4601 = vrot.slane %v4597, %v4600
  %v4603 = vsel %vm356, %v4592, 0
  %4605 = vmatprep.subr.mxu0 0.0
  %4606 = vmatpush1.msra.mxu0 %v4593
  %4607 = vmatprep.subr.mxu0 0.0
  %4608 = vmatpush1.msra.mxu0 %v4594
  %4609 = vmatprep.subr.mxu0 0.0
  %4610 = vmatpush1.msra.mxu0 %v4595
  %4611 = vmatprep.subr.mxu0 0.0
  %4612 = vmatpush1.msra.mxu0 %v4596
  %4613 = vmatprep.subr.mxu0 0.0
  %4614 = vmatpush1.msra.mxu0 0.0
  %4615 = vmatprep.subr.mxu0 0.0
  %4616 = vmatpush1.msra.mxu0 0.0
  %4617 = vmatprep.subr.mxu0 0.0
  %4618 = vmatpush1.msra.mxu0 0.0
  %4619 = vmatprep.subr.mxu0 0.0
  %4620 = vmatpush1.msra.mxu0 0.0
  %4621 = vmatprep.subr.mxu0 0.0
  %4622 = vmatpush1.msra.mxu0 0.0
  %4623 = vmatprep.subr.mxu0 0.0
  %4624 = vmatpush1.msra.mxu0 0.0
  %4625 = vmatprep.subr.mxu0 0.0
  %4626 = vmatpush1.msra.mxu0 0.0
  %4627 = vmatprep.subr.mxu0 0.0
  %4628 = vmatpush1.msra.mxu0 0.0
  %4629 = vmatprep.subr.mxu0 0.0
  %4630 = vmatpush1.msra.mxu0 0.0
  %4631 = vmatprep.subr.mxu0 0.0
  %4632 = vmatpush1.msra.mxu0 0.0
  %4633 = vmatprep.subr.mxu0 0.0
  %4634 = vmatpush1.msra.mxu0 0.0
  %4635 = vmatprep.subr.mxu0 0.0
  %4636 = vmatpush1.msra.mxu0 0.0
  %4637 = vmatprep.subr.mxu0 0.0
  %4638 = vmatpush1.msra.mxu0 0.0
  %4639 = vmatprep.subr.mxu0 0.0
  %4640 = vmatpush1.msra.mxu0 0.0
  %4641 = vmatprep.subr.mxu0 0.0
  %4642 = vmatpush1.msra.mxu0 0.0
  %4643 = vmatprep.subr.mxu0 0.0
  %4644 = vmatpush1.msra.mxu0 0.0
  %4645 = vmatprep.subr.mxu0 0.0
  %4646 = vmatpush1.msra.mxu0 0.0
  %4647 = vmatprep.subr.mxu0 0.0
  %4648 = vmatpush1.msra.mxu0 0.0
  %4649 = vmatprep.subr.mxu0 0.0
  %4650 = vmatpush1.msra.mxu0 0.0
  %4651 = vmatprep.subr.mxu0 0.0
  %4652 = vmatpush1.msra.mxu0 0.0
  %4653 = vmatprep.subr.mxu0 0.0
  %4654 = vmatpush1.msra.mxu0 0.0
  %4655 = vmatprep.subr.mxu0 0.0
  %4656 = vmatpush1.msra.mxu0 0.0
  %4657 = vmatprep.subr.mxu0 0.0
  %4658 = vmatpush1.msra.mxu0 0.0
  %4659 = vmatprep.subr.mxu0 0.0
  %4660 = vmatpush1.msra.mxu0 0.0
  %4661 = vmatprep.subr.mxu0 0.0
  %4662 = vmatpush1.msra.mxu0 0.0
  %4663 = vmatprep.subr.mxu0 0.0
  %4664 = vmatpush1.msra.mxu0 0.0
  %4665 = vmatprep.subr.mxu0 0.0
  %4666 = vmatpush1.msra.mxu0 0.0
  %4667 = vmatprep.subr.mxu0 0.0
  %4668 = vmatpush1.msra.mxu0 0.0
  %4669 = vmatprep.mubr.f32.mxu0 0.0
  %4670 = vmatmul.mubr.f32.gmra.mrb[0].mxu0 %v4603
  %v4671 = vpop.f32.mrb[0].mxu0
  %v4672 = vadd.f32 %v4601, %v4671
  %v4673 = vpop.f32.mrb[0].mxu0
  %4674 = vdwg.mxu0
  %vm4675 = vcmask 1024
  %4676 = vst.msk [vmem:[%s7] sm:$0x3] %vm4675, %v4672
  // Predicated region
  $region30: #{forward.1} parent=0 // pred_check
    _
  $region31: #{forward.1} parent=0 // pred_check_branch
    %4678 = sbr.rel (0) target = $region33
  $region32: #{forward.1} parent=0 // pred_region
    _
  $region33: #{forward.1} parent=0 // pred_fallthru
    _
  // Predicated region
  $region34: #{forward.1} parent=0 // pred_check
    _
  $region35: #{forward.1} parent=0 // pred_check_branch
    %4680 = sbr.rel (0) target = $region37
  $region36: #{forward.1} parent=0 // pred_region
    _
  $region37: #{forward.1} parent=0 // pred_fallthru
    _

</llo_original>
